<compile_context>
chip_gen: v7x
topology: tpu7x:2x2x1
jax: 0.10.0
libtpu: 0.0.40
codegen_flags: <defaults>
</compile_context>

<pallas_src>
import functools

import jax
import jax.numpy as jnp
from jax import lax
from jax.experimental import pallas as pl
from jax.experimental.pallas import tpu as pltpu


def _round_up(v, m):
    return (v + m - 1) // m * m


def _pick_batch_chunk(bp):
    # Largest multiple-of-8 divisor of bp that is <= 64 rows per grid step.
    for c in range(min(bp, 64), 0, -8):
        if bp % c == 0:
            return c
    return bp


# ---------------------------------------------------------------------------
# Fused kernel: whole BiLSTM stack + final Linear for one batch chunk.
# Packed gate-major lane layout (width 8*Hp):
#   [ i_f i_b | f_f f_b | g_f g_b | o_f o_b ],  each gate chunk 2*Hp wide
#   (fwd half then bwd half), 128-lane aligned because Hp % 64 == 0.
# Row layout of the flattened input / scratches: row = t*Bc + b.
# ---------------------------------------------------------------------------
def _bilstm_fused_kernel(*refs, num_layers, hidden_p, seq_len, batch_chunk):
    Hp, T, Bc = hidden_p, seq_len, batch_chunk
    G = 2 * Hp            # one gate chunk  = [fwd | bwd]
    W = 4 * G             # full packed gate width (i, f, g, o)

    n_in = 1 + 3 * num_layers + 2
    x_ref = refs[0]
    w_refs = refs[1:1 + 3 * num_layers]
    wfc_ref = refs[1 + 3 * num_layers]
    bfc_ref = refs[2 + 3 * num_layers]
    o_ref = refs[n_in]
    proj_sc = refs[n_in + 1]      # (T*Bc, W) f32: projection / merged px
    hbuf_sc = refs[n_in + 2]      # (T*Bc, G) f32: inter-layer activation

    # Lane masks hoisted out of every loop.
    lanes_w = lax.broadcasted_iota(jnp.int32, (Bc, W), 1)
    fwd_w = (lanes_w % G) < Hp                    # fwd half of each gate chunk
    lanes_g = lax.broadcasted_iota(jnp.int32, (Bc, G), 1)
    fwd_g = lanes_g < Hp                          # fwd half of the state

    def reverse_bwd_half(buf, mask):
        # In-place pairwise time reversal of the bwd lane half of `buf`
        # (row block s <-> row block T-1-s). All pairs independent: this is a
        # vectorized pass OFF the serial recurrence chain.
        for s in range(T // 2):
            r = T - 1 - s
            a = buf[s * Bc:(s + 1) * Bc, :]
            b = buf[r * Bc:(r + 1) * Bc, :]
            buf[s * Bc:(s + 1) * Bc, :] = jnp.where(mask, a, b)
            buf[r * Bc:(r + 1) * Bc, :] = jnp.where(mask, b, a)

    def run_layer(layer, x2_bf16, last_layer):
        wih = w_refs[3 * layer][...]          # (Din_p, W) bf16
        whh = w_refs[3 * layer + 1][...]      # (G, W)     bf16, block-diagonal
        bias = w_refs[3 * layer + 2][...]     # (1, W)     f32

        # (1) Input projection for ALL timesteps & BOTH directions in one bf16
        #     MXU matmul, with the bias folded in once (not per step).
        proj_sc[...] = (
            jnp.dot(x2_bf16, wih, preferred_element_type=jnp.float32) + bias)

        # (2) Pre-merge fwd/bwd per-step inputs: after this pass, row block s
        #     holds fwd lanes from t=s and bwd lanes from t=T-1-s.
        reverse_bwd_half(proj_sc, fwd_w)

        # (3) Serial recurrence, fully unrolled (T is small and static here).
        #     TODO(synk): use lax.fori_loop(..., unroll=2..4) for long T.
        h = jnp.zeros((Bc, G), jnp.float32)
        c = jnp.zeros((Bc, G), jnp.float32)
        h_first = h
        for s in range(T):
            px = proj_sc[s * Bc:(s + 1) * Bc, :]             # one aligned load
            gates = px + jnp.dot(h.astype(jnp.bfloat16), whh,
                                 preferred_element_type=jnp.float32)
            # 128-aligned gate slices are free views; only the needed
            # transcendental per gate region.
            act_if = jax.nn.sigmoid(gates[:, 0:2 * G])       # i, f
            g_g = jnp.tanh(gates[:, 2 * G:3 * G])            # g
            o_g = jax.nn.sigmoid(gates[:, 3 * G:4 * G])      # o
            i_g = act_if[:, 0:G]
            f_g = act_if[:, G:2 * G]
            c = f_g * c + i_g * g_g
            h = o_g * jnp.tanh(c)
            if last_layer:
                if s == 0:
                    h_first = h        # bwd half == h_bwd at t = T-1
            else:
                # One full-row aligned store (skewed: bwd half is t=T-1-s).
                hbuf_sc[s * Bc:(s + 1) * Bc, :] = h
        if last_layer:
            return h, h_first
        # (4) Un-skew: row block t becomes [h_fwd(t) | h_bwd(t)].
        reverse_bwd_half(hbuf_sc, fwd_g)
        return None, None

    x2 = x_ref[...].astype(jnp.bfloat16)                     # (T*Bc, D)
    h_final = h_first = None
    for layer in range(num_layers):
        last = layer == num_layers - 1
        if layer > 0:
            x2 = hbuf_sc[...].astype(jnp.bfloat16)           # (T*Bc, G)
        h_final, h_first = run_layer(layer, x2, last)

    # out[:, -1, :] == [h_fwd(final) | h_bwd(t=T-1)], fused with the Linear.
    h_last = jnp.where(fwd_g, h_final, h_first)              # (Bc, G)
    o_ref[...] = (jnp.dot(h_last.astype(jnp.bfloat16), wfc_ref[...],
                          preferred_element_type=jnp.float32)
                  + bfc_ref[...]).astype(o_ref.dtype)


# ---------------------------------------------------------------------------
# Weight packing: PyTorch per-direction (i,f,g,o) weights -> padded gate-major
# packed layouts used by the fused kernel (H zero-padded to Hp).
# ---------------------------------------------------------------------------
def _pack_gate_cols(m_f, m_b, H, Hp):
    """(rows, 4H) fwd & bwd -> (rows, 8*Hp) gate-major, zero-padded H->Hp."""
    rows = m_f.shape[0]
    out = jnp.zeros((rows, 8 * Hp), jnp.float32)
    for g in range(4):
        base = g * 2 * Hp
        out = out.at[:, base:base + H].set(m_f[:, g * H:(g + 1) * H])
        out = out.at[:, base + Hp:base + Hp + H].set(m_b[:, g * H:(g + 1) * H])
    return out


def _pad_state_rows(m_t, H, Hp):
    """(2H, cols) [fwd rows | bwd rows] -> (2Hp, cols) with zero row padding."""
    cols = m_t.shape[1]
    out = jnp.zeros((2 * Hp, cols), m_t.dtype)
    out = out.at[0:H, :].set(m_t[0:H, :])
    out = out.at[Hp:Hp + H, :].set(m_t[H:2 * H, :])
    return out


def _pack_layer(fwd_p, bwd_p, H, Hp, first_layer):
    wih_f, wih_b = fwd_p["wih_t"], bwd_p["wih_t"]
    if not first_layer:
        # Rows of layer>=1 input weights follow the padded [h_fwd | h_bwd].
        wih_f = _pad_state_rows(wih_f, H, Hp)
        wih_b = _pad_state_rows(wih_b, H, Hp)
    wih_p = _pack_gate_cols(wih_f, wih_b, H, Hp)

    zf = jnp.zeros_like(fwd_p["whh_t"])
    top = _pack_gate_cols(fwd_p["whh_t"], zf, H, Hp)     # fwd columns only
    bot = _pack_gate_cols(zf, bwd_p["whh_t"], H, Hp)     # bwd columns only
    whh_p = jnp.zeros((2 * Hp, 8 * Hp), jnp.float32)
    whh_p = whh_p.at[0:H, :].set(top)
    whh_p = whh_p.at[Hp:Hp + H, :].set(bot)              # block-diagonal

    b_p = _pack_gate_cols(fwd_p["b"], bwd_p["b"], H, Hp)  # (1, 8Hp), f32
    return {"wih_p": wih_p.astype(jnp.bfloat16),
            "whh_p": whh_p.astype(jnp.bfloat16),
            "b_p": b_p}


# ---------------------------------------------------------------------------
# Parameter init (deterministic, PyTorch-style uniform(-1/sqrt(H), 1/sqrt(H)))
# ---------------------------------------------------------------------------
def init_bilstm_params(key, input_dim, hidden_dim, num_layers, output_dim):
    H = hidden_dim
    Hp = _round_up(H, 64)          # 2*Hp is a multiple of 128 (lane-aligned)
    k = 1.0 / jnp.sqrt(jnp.float32(H))
    params = {"layers": [], "packed": [], "hidden_p": Hp}
    for layer in range(num_layers):
        in_dim = input_dim if layer == 0 else 2 * H
        dirs = []
        for _ in range(2):  # forward, backward
            key, k1, k2, k3, k4 = jax.random.split(key, 5)
            w_ih = jax.random.uniform(k1, (4 * H, in_dim), jnp.float32, -k, k)
            w_hh = jax.random.uniform(k2, (4 * H, H), jnp.float32, -k, k)
            b_ih = jax.random.uniform(k3, (4 * H,), jnp.float32, -k, k)
            b_hh = jax.random.uniform(k4, (4 * H,), jnp.float32, -k, k)
            dirs.append({"wih_t": w_ih.T,                        # (in_dim, 4H)
                         "whh_t": w_hh.T,                        # (H, 4H)
                         "b": (b_ih + b_hh).reshape(1, 4 * H)})  # (1, 4H)
        params["layers"].append(dirs)
        params["packed"].append(_pack_layer(dirs[0], dirs[1], H, Hp, layer == 0))
    kf = 1.0 / jnp.sqrt(jnp.float32(2 * H))
    key, k1, k2 = jax.random.split(key, 3)
    fc_w = jax.random.uniform(k1, (output_dim, 2 * H), jnp.float32, -kf, kf)
    fc_b = jax.random.uniform(k2, (output_dim,), jnp.float32, -kf, kf)
    params["fc_w_t"] = fc_w.T                                    # (2H, O) f32
    params["fc_b"] = fc_b.reshape(1, output_dim)                 # (1, O)  f32
    params["fc_w_p"] = _pad_state_rows(fc_w.T, H, Hp).astype(jnp.bfloat16)
    return params


# ---------------------------------------------------------------------------
# Full BiLSTM forward (matches the PyTorch module semantics)
# ---------------------------------------------------------------------------
def bilstm_forward(params, x, hidden_dim, num_layers, output_dim):
    B, T, D = x.shape
    Hp = params["hidden_p"]
    G, W = 2 * Hp, 8 * Hp

    Bp = _round_up(max(B, 1), 8)          # sublane-fill the batch
    Bc = _pick_batch_chunk(Bp)            # batch chunk per grid step
    nchunks = Bp // Bc

    # chunk-major / time-major flattening: row ((chunk*T + t)*Bc + b) holds
    # x[chunk*Bc + b, t, :]
    x_p = jnp.pad(x, ((0, Bp - B), (0, 0), (0, 0)))
    x_cm = (x_p.reshape(nchunks, Bc, T, D)
                .transpose(0, 2, 1, 3)
                .reshape(nchunks * T * Bc, D))

    kernel = functools.partial(_bilstm_fused_kernel, num_layers=num_layers,
                               hidden_p=Hp, seq_len=T, batch_chunk=Bc)

    in_specs = [pl.BlockSpec((T * Bc, D), lambda i: (i, 0))]
    args = [x_cm]
    for layer in range(num_layers):
        p = params["packed"][layer]
        in_specs += [pl.BlockSpec(p["wih_p"].shape, lambda i: (0, 0)),
                     pl.BlockSpec(p["whh_p"].shape, lambda i: (0, 0)),
                     pl.BlockSpec(p["b_p"].shape, lambda i: (0, 0))]
        args += [p["wih_p"], p["whh_p"], p["b_p"]]
    in_specs += [pl.BlockSpec(params["fc_w_p"].shape, lambda i: (0, 0)),
                 pl.BlockSpec(params["fc_b"].shape, lambda i: (0, 0))]
    args += [params["fc_w_p"], params["fc_b"]]

    out = pl.pallas_call(
        kernel,
        out_shape=jax.ShapeDtypeStruct((Bp, output_dim), jnp.float32),
        grid_spec=pltpu.PrefetchScalarGridSpec(
            num_scalar_prefetch=0,
            grid=(nchunks,),
            in_specs=in_specs,
            out_specs=pl.BlockSpec((Bc, output_dim), lambda i: (i, 0)),
            scratch_shapes=[pltpu.VMEM((T * Bc, W), jnp.float32),
                            pltpu.VMEM((T * Bc, G), jnp.float32)],
        ),
        compiler_params=pltpu.CompilerParams(
            dimension_semantics=("parallel",),      # megacore on v7x
            vmem_limit_bytes=32 * 1024 * 1024),
    )(*args)
    return out[:B]


# ---------------------------------------------------------------------------
# Pure-JAX reference (correctness check)
# ---------------------------------------------------------------------------
def _ref_lstm_dir(x_tm, wih_t, whh_t, b, H, reverse):
    T, B, _ = x_tm.shape
    seq = x_tm[::-1] if reverse else x_tm

    def step(carry, x_t):
        h, c = carry
        gates = x_t @ wih_t + h @ whh_t + b
        i = jax.nn.sigmoid(gates[:, 0 * H:1 * H])
        f = jax.nn.sigmoid(gates[:, 1 * H:2 * H])
        g = jnp.tanh(gates[:, 2 * H:3 * H])
        o = jax.nn.sigmoid(gates[:, 3 * H:4 * H])
        c = f * c + i * g
        h = o * jnp.tanh(c)
        return (h, c), h

    init = (jnp.zeros((B, H), jnp.float32), jnp.zeros((B, H), jnp.float32))
    _, ys = jax.lax.scan(step, init, seq)
    return ys[::-1] if reverse else ys


def bilstm_reference(params, x, hidden_dim, num_layers):
    B, T, D = x.shape
    H = hidden_dim
    layer_in = jnp.transpose(x, (1, 0, 2))
    for layer in range(num_layers):
        fwd_p, bwd_p = params["layers"][layer]
        y_fwd = _ref_lstm_dir(layer_in, fwd_p["wih_t"], fwd_p["whh_t"],
                              fwd_p["b"], H, False)
        y_bwd = _ref_lstm_dir(layer_in, bwd_p["wih_t"], bwd_p["whh_t"],
                              bwd_p["b"], H, True)
        layer_in = jnp.concatenate([y_fwd, y_bwd], axis=-1)
    return layer_in[T - 1] @ params["fc_w_t"] + params["fc_b"]


if __name__ == "__main__":
    # Small shapes: batch=2, seq=8, input_dim=8, hidden=32, layers=2, out=4
    B, T, INPUT_DIM, HIDDEN_DIM, NUM_LAYERS, OUTPUT_DIM = 2, 8, 8, 32, 2, 4

    key = jax.random.PRNGKey(0)
    key, pkey, xkey = jax.random.split(key, 3)
    params = init_bilstm_params(pkey, INPUT_DIM, HIDDEN_DIM, NUM_LAYERS,
                                OUTPUT_DIM)
    x = jax.random.normal(xkey, (B, T, INPUT_DIM), jnp.float32)

    out = jax.block_until_ready(
        bilstm_forward(params, x, HIDDEN_DIM, NUM_LAYERS, OUTPUT_DIM))
    ref = jax.block_until_ready(
        bilstm_reference(params, x, HIDDEN_DIM, NUM_LAYERS))

    assert out.shape == (B, OUTPUT_DIM)
    assert jnp.allclose(out, ref, rtol=1e-2, atol=1e-2), "mismatch vs reference"

    print("KERNEL_OK")
</pallas_src>

<mosaic_0001>
module attributes {stable_mosaic.version = 11 : i64} {
  func.func @_bilstm_fused_kernel(%arg0: i32, %arg1: memref<64x8xf32, #tpu.memory_space<vmem>>, %arg2: memref<8x512xbf16, #tpu.memory_space<vmem>>, %arg3: memref<128x512xbf16, #tpu.memory_space<vmem>>, %arg4: memref<1x512xf32, #tpu.memory_space<vmem>>, %arg5: memref<128x512xbf16, #tpu.memory_space<vmem>>, %arg6: memref<128x512xbf16, #tpu.memory_space<vmem>>, %arg7: memref<1x512xf32, #tpu.memory_space<vmem>>, %arg8: memref<128x4xbf16, #tpu.memory_space<vmem>>, %arg9: memref<1x4xf32, #tpu.memory_space<vmem>>, %arg10: memref<8x4xf32, #tpu.memory_space<vmem>>, %arg11: memref<64x512xf32, #tpu.memory_space<vmem>>, %arg12: memref<64x128xf32, #tpu.memory_space<vmem>>) attributes {dimension_semantics = [#tpu.dimension_semantics<parallel>], iteration_bounds = array<i64: 1>, scalar_prefetch = 0 : i64, scratch_operands = 2 : i64, tpu.core_type = #tpu.core_type<tc>, window_params = [{transform_indices = @transform_0, window_bounds = array<i64: 64, 8>}, {pipeline_mode = #tpu.pipeline_mode<synchronous>, transform_indices = @transform_1, window_bounds = array<i64: 8, 512>}, {pipeline_mode = #tpu.pipeline_mode<synchronous>, transform_indices = @transform_2, window_bounds = array<i64: 128, 512>}, {pipeline_mode = #tpu.pipeline_mode<synchronous>, transform_indices = @transform_3, window_bounds = array<i64: 1, 512>}, {pipeline_mode = #tpu.pipeline_mode<synchronous>, transform_indices = @transform_4, window_bounds = array<i64: 128, 512>}, {pipeline_mode = #tpu.pipeline_mode<synchronous>, transform_indices = @transform_5, window_bounds = array<i64: 128, 512>}, {pipeline_mode = #tpu.pipeline_mode<synchronous>, transform_indices = @transform_6, window_bounds = array<i64: 1, 512>}, {pipeline_mode = #tpu.pipeline_mode<synchronous>, transform_indices = @transform_7, window_bounds = array<i64: 128, 4>}, {pipeline_mode = #tpu.pipeline_mode<synchronous>, transform_indices = @transform_8, window_bounds = array<i64: 1, 4>}, {transform_indices = @transform_9, window_bounds = array<i64: 8, 4>}]} {
    %0 = tpu.iota {dimensions = array<i32: 1>} : vector<8x512xi32>
    %c128_i32 = arith.constant 128 : i32
    %c0_i32 = arith.constant 0 : i32
    %1 = arith.cmpi eq, %c128_i32, %c0_i32 : i32
    %c1_i32 = arith.constant 1 : i32
    %2 = arith.select %1, %c1_i32, %c128_i32 : i32
    %3 = vector.broadcast %2 : i32 to vector<8x512xi32>
    %4 = arith.remsi %0, %3 : vector<8x512xi32>
    %c0_i32_0 = arith.constant 0 : i32
    %5 = vector.broadcast %c0_i32_0 : i32 to vector<8x512xi32>
    %6 = arith.cmpi ne, %4, %5 : vector<8x512xi32>
    %c0_i32_1 = arith.constant 0 : i32
    %7 = vector.broadcast %c0_i32_1 : i32 to vector<8x512xi32>
    %8 = arith.cmpi slt, %4, %7 : vector<8x512xi32>
    %c0_i32_2 = arith.constant 0 : i32
    %9 = arith.cmpi slt, %2, %c0_i32_2 : i32
    %10 = vector.broadcast %9 : i1 to vector<8x512xi1>
    %11 = vector.broadcast %10 : vector<8x512xi1> to vector<8x512xi1>
    %12 = arith.xori %8, %11 : vector<8x512xi1>
    %13 = arith.andi %12, %6 : vector<8x512xi1>
    %14 = vector.broadcast %2 : i32 to vector<8x512xi32>
    %15 = arith.addi %4, %14 : vector<8x512xi32>
    %16 = arith.select %13, %15, %4 : vector<8x512xi1>, vector<8x512xi32>
    %c64_i32 = arith.constant 64 : i32
    %17 = vector.broadcast %c64_i32 : i32 to vector<8x512xi32>
    %18 = arith.cmpi slt, %16, %17 : vector<8x512xi32>
    %19 = tpu.iota {dimensions = array<i32: 1>} : vector<8x128xi32>
    %c64_i32_3 = arith.constant 64 : i32
    %20 = vector.broadcast %c64_i32_3 : i32 to vector<8x128xi32>
    %21 = arith.cmpi slt, %19, %20 : vector<8x128xi32>
    %c0 = arith.constant 0 : index
    %c0_4 = arith.constant 0 : index
    %22 = vector.load %arg1[%c0, %c0_4] : memref<64x8xf32, #tpu.memory_space<vmem>>, vector<64x8xf32>
    %23 = arith.truncf %22 : vector<64x8xf32> to vector<64x8xbf16>
    %c0_5 = arith.constant 0 : index
    %c0_6 = arith.constant 0 : index
    %24 = vector.load %arg2[%c0_5, %c0_6] : memref<8x512xbf16, #tpu.memory_space<vmem>>, vector<8x512xbf16>
    %c0_7 = arith.constant 0 : index
    %c0_8 = arith.constant 0 : index
    %25 = vector.load %arg3[%c0_7, %c0_8] : memref<128x512xbf16, #tpu.memory_space<vmem>>, vector<128x512xbf16>
    %c0_9 = arith.constant 0 : index
    %c0_10 = arith.constant 0 : index
    %26 = vector.load %arg4[%c0_9, %c0_10] : memref<1x512xf32, #tpu.memory_space<vmem>>, vector<1x512xf32>
    %cst = arith.constant dense<0.000000e+00> : vector<64x512xf32>
    %27 = tpu.matmul %23, %24, %cst {dimension_numbers = #tpu.dot_dimension_numbers<[1], [0], [0], [1], [0, 0, 1, 1], [], []>} : vector<64x8xbf16>, vector<8x512xbf16>, vector<64x512xf32> -> vector<64x512xf32>
    %28 = vector.broadcast %26 : vector<1x512xf32> to vector<64x512xf32>
    %29 = arith.addf %27, %28 : vector<64x512xf32>
    %c0_11 = arith.constant 0 : index
    %c0_12 = arith.constant 0 : index
    %30 = vector.load %arg11[%c0_11, %c0_12] : memref<64x512xf32, #tpu.memory_space<vmem>>, vector<64x512xf32>
    tpu.vector_store %arg11[%c0_11, %c0_12], %29 {strides = array<i32>} : memref<64x512xf32, #tpu.memory_space<vmem>>, vector<64x512xf32>,
    %c0_13 = arith.constant 0 : index
    %c0_14 = arith.constant 0 : index
    %31 = vector.load %arg11[%c0_13, %c0_14] : memref<64x512xf32, #tpu.memory_space<vmem>>, vector<8x512xf32>
    %c56 = arith.constant 56 : index
    %c0_15 = arith.constant 0 : index
    %32 = vector.load %arg11[%c56, %c0_15] : memref<64x512xf32, #tpu.memory_space<vmem>>, vector<8x512xf32>
    %33 = arith.select %18, %31, %32 : vector<8x512xi1>, vector<8x512xf32>
    %c0_16 = arith.constant 0 : index
    %c0_17 = arith.constant 0 : index
    %34 = vector.load %arg11[%c0_16, %c0_17] : memref<64x512xf32, #tpu.memory_space<vmem>>, vector<8x512xf32>
    tpu.vector_store %arg11[%c0_16, %c0_17], %33 {strides = array<i32>} : memref<64x512xf32, #tpu.memory_space<vmem>>, vector<8x512xf32>,
    %35 = arith.select %18, %32, %31 : vector<8x512xi1>, vector<8x512xf32>
    %c56_18 = arith.constant 56 : index
    %c0_19 = arith.constant 0 : index
    %36 = vector.load %arg11[%c56_18, %c0_19] : memref<64x512xf32, #tpu.memory_space<vmem>>, vector<8x512xf32>
    tpu.vector_store %arg11[%c56_18, %c0_19], %35 {strides = array<i32>} : memref<64x512xf32, #tpu.memory_space<vmem>>, vector<8x512xf32>,
    %c8 = arith.constant 8 : index
    %c0_20 = arith.constant 0 : index
    %37 = vector.load %arg11[%c8, %c0_20] : memref<64x512xf32, #tpu.memory_space<vmem>>, vector<8x512xf32>
    %c48 = arith.constant 48 : index
    %c0_21 = arith.constant 0 : index
    %38 = vector.load %arg11[%c48, %c0_21] : memref<64x512xf32, #tpu.memory_space<vmem>>, vector<8x512xf32>
    %39 = arith.select %18, %37, %38 : vector<8x512xi1>, vector<8x512xf32>
    %c8_22 = arith.constant 8 : index
    %c0_23 = arith.constant 0 : index
    %40 = vector.load %arg11[%c8_22, %c0_23] : memref<64x512xf32, #tpu.memory_space<vmem>>, vector<8x512xf32>
    tpu.vector_store %arg11[%c8_22, %c0_23], %39 {strides = array<i32>} : memref<64x512xf32, #tpu.memory_space<vmem>>, vector<8x512xf32>,
    %41 = arith.select %18, %38, %37 : vector<8x512xi1>, vector<8x512xf32>
    %c48_24 = arith.constant 48 : index
    %c0_25 = arith.constant 0 : index
    %42 = vector.load %arg11[%c48_24, %c0_25] : memref<64x512xf32, #tpu.memory_space<vmem>>, vector<8x512xf32>
    tpu.vector_store %arg11[%c48_24, %c0_25], %41 {strides = array<i32>} : memref<64x512xf32, #tpu.memory_space<vmem>>, vector<8x512xf32>,
    %c16 = arith.constant 16 : index
    %c0_26 = arith.constant 0 : index
    %43 = vector.load %arg11[%c16, %c0_26] : memref<64x512xf32, #tpu.memory_space<vmem>>, vector<8x512xf32>
    %c40 = arith.constant 40 : index
    %c0_27 = arith.constant 0 : index
    %44 = vector.load %arg11[%c40, %c0_27] : memref<64x512xf32, #tpu.memory_space<vmem>>, vector<8x512xf32>
    %45 = arith.select %18, %43, %44 : vector<8x512xi1>, vector<8x512xf32>
    %c16_28 = arith.constant 16 : index
    %c0_29 = arith.constant 0 : index
    %46 = vector.load %arg11[%c16_28, %c0_29] : memref<64x512xf32, #tpu.memory_space<vmem>>, vector<8x512xf32>
    tpu.vector_store %arg11[%c16_28, %c0_29], %45 {strides = array<i32>} : memref<64x512xf32, #tpu.memory_space<vmem>>, vector<8x512xf32>,
    %47 = arith.select %18, %44, %43 : vector<8x512xi1>, vector<8x512xf32>
    %c40_30 = arith.constant 40 : index
    %c0_31 = arith.constant 0 : index
    %48 = vector.load %arg11[%c40_30, %c0_31] : memref<64x512xf32, #tpu.memory_space<vmem>>, vector<8x512xf32>
    tpu.vector_store %arg11[%c40_30, %c0_31], %47 {strides = array<i32>} : memref<64x512xf32, #tpu.memory_space<vmem>>, vector<8x512xf32>,
    %c24 = arith.constant 24 : index
    %c0_32 = arith.constant 0 : index
    %49 = vector.load %arg11[%c24, %c0_32] : memref<64x512xf32, #tpu.memory_space<vmem>>, vector<8x512xf32>
    %c32 = arith.constant 32 : index
    %c0_33 = arith.constant 0 : index
    %50 = vector.load %arg11[%c32, %c0_33] : memref<64x512xf32, #tpu.memory_space<vmem>>, vector<8x512xf32>
    %51 = arith.select %18, %49, %50 : vector<8x512xi1>, vector<8x512xf32>
    %c24_34 = arith.constant 24 : index
    %c0_35 = arith.constant 0 : index
    %52 = vector.load %arg11[%c24_34, %c0_35] : memref<64x512xf32, #tpu.memory_space<vmem>>, vector<8x512xf32>
    tpu.vector_store %arg11[%c24_34, %c0_35], %51 {strides = array<i32>} : memref<64x512xf32, #tpu.memory_space<vmem>>, vector<8x512xf32>,
    %53 = arith.select %18, %50, %49 : vector<8x512xi1>, vector<8x512xf32>
    %c32_36 = arith.constant 32 : index
    %c0_37 = arith.constant 0 : index
    %54 = vector.load %arg11[%c32_36, %c0_37] : memref<64x512xf32, #tpu.memory_space<vmem>>, vector<8x512xf32>
    tpu.vector_store %arg11[%c32_36, %c0_37], %53 {strides = array<i32>} : memref<64x512xf32, #tpu.memory_space<vmem>>, vector<8x512xf32>,
    %cst_38 = arith.constant 0.000000e+00 : f32
    %55 = vector.broadcast %cst_38 : f32 to vector<8x128xf32>
    %cst_39 = arith.constant 0.000000e+00 : f32
    %56 = vector.broadcast %cst_39 : f32 to vector<8x128xf32>
    %c0_40 = arith.constant 0 : index
    %c0_41 = arith.constant 0 : index
    %57 = vector.load %arg11[%c0_40, %c0_41] : memref<64x512xf32, #tpu.memory_space<vmem>>, vector<8x512xf32>
    %58 = arith.truncf %55 : vector<8x128xf32> to vector<8x128xbf16>
    %cst_42 = arith.constant dense<0.000000e+00> : vector<8x512xf32>
    %59 = tpu.matmul %58, %25, %cst_42 {dimension_numbers = #tpu.dot_dimension_numbers<[1], [0], [0], [1], [0, 0, 1, 1], [], []>} : vector<8x128xbf16>, vector<128x512xbf16>, vector<8x512xf32> -> vector<8x512xf32>
    %60 = arith.addf %57, %59 : vector<8x512xf32>
    %61 = vector.extract_strided_slice %60 {offsets = [0, 0], sizes = [8, 256], strides = [1, 1]} : vector<8x512xf32> to vector<8x256xf32>
    %62 = arith.negf %61 : vector<8x256xf32>
    %63 = math.exp %62 : vector<8x256xf32>
    %cst_43 = arith.constant 1.000000e+00 : f32
    %64 = vector.broadcast %cst_43 : f32 to vector<8x256xf32>
    %65 = arith.addf %64, %63 : vector<8x256xf32>
    %66 = arith.divf %64, %65 : vector<8x256xf32>
    %67 = vector.extract_strided_slice %60 {offsets = [0, 256], sizes = [8, 128], strides = [1, 1]} : vector<8x512xf32> to vector<8x128xf32>
    %68 = math.tanh %67 : vector<8x128xf32>
    %69 = vector.extract_strided_slice %60 {offsets = [0, 384], sizes = [8, 128], strides = [1, 1]} : vector<8x512xf32> to vector<8x128xf32>
    %70 = arith.negf %69 : vector<8x128xf32>
    %71 = math.exp %70 : vector<8x128xf32>
    %cst_44 = arith.constant 1.000000e+00 : f32
    %72 = vector.broadcast %cst_44 : f32 to vector<8x128xf32>
    %73 = arith.addf %72, %71 : vector<8x128xf32>
    %74 = arith.divf %72, %73 : vector<8x128xf32>
    %75 = vector.extract_strided_slice %66 {offsets = [0, 0], sizes = [8, 128], strides = [1, 1]} : vector<8x256xf32> to vector<8x128xf32>
    %76 = vector.extract_strided_slice %66 {offsets = [0, 128], sizes = [8, 128], strides = [1, 1]} : vector<8x256xf32> to vector<8x128xf32>
    %77 = arith.mulf %76, %56 : vector<8x128xf32>
    %78 = arith.mulf %75, %68 : vector<8x128xf32>
    %79 = arith.addf %77, %78 : vector<8x128xf32>
    %80 = math.tanh %79 : vector<8x128xf32>
    %81 = arith.mulf %74, %80 : vector<8x128xf32>
    %c0_45 = arith.constant 0 : index
    %c0_46 = arith.constant 0 : index
    %82 = vector.load %arg12[%c0_45, %c0_46] : memref<64x128xf32, #tpu.memory_space<vmem>>, vector<8x128xf32>
    tpu.vector_store %arg12[%c0_45, %c0_46], %81 {strides = array<i32>} : memref<64x128xf32, #tpu.memory_space<vmem>>, vector<8x128xf32>,
    %c8_47 = arith.constant 8 : index
    %c0_48 = arith.constant 0 : index
    %83 = vector.load %arg11[%c8_47, %c0_48] : memref<64x512xf32, #tpu.memory_space<vmem>>, vector<8x512xf32>
    %84 = arith.truncf %81 : vector<8x128xf32> to vector<8x128xbf16>
    %cst_49 = arith.constant dense<0.000000e+00> : vector<8x512xf32>
    %85 = tpu.matmul %84, %25, %cst_49 {dimension_numbers = #tpu.dot_dimension_numbers<[1], [0], [0], [1], [0, 0, 1, 1], [], []>} : vector<8x128xbf16>, vector<128x512xbf16>, vector<8x512xf32> -> vector<8x512xf32>
    %86 = arith.addf %83, %85 : vector<8x512xf32>
    %87 = vector.extract_strided_slice %86 {offsets = [0, 0], sizes = [8, 256], strides = [1, 1]} : vector<8x512xf32> to vector<8x256xf32>
    %88 = arith.negf %87 : vector<8x256xf32>
    %89 = math.exp %88 : vector<8x256xf32>
    %cst_50 = arith.constant 1.000000e+00 : f32
    %90 = vector.broadcast %cst_50 : f32 to vector<8x256xf32>
    %91 = arith.addf %90, %89 : vector<8x256xf32>
    %92 = arith.divf %90, %91 : vector<8x256xf32>
    %93 = vector.extract_strided_slice %86 {offsets = [0, 256], sizes = [8, 128], strides = [1, 1]} : vector<8x512xf32> to vector<8x128xf32>
    %94 = math.tanh %93 : vector<8x128xf32>
    %95 = vector.extract_strided_slice %86 {offsets = [0, 384], sizes = [8, 128], strides = [1, 1]} : vector<8x512xf32> to vector<8x128xf32>
    %96 = arith.negf %95 : vector<8x128xf32>
    %97 = math.exp %96 : vector<8x128xf32>
    %cst_51 = arith.constant 1.000000e+00 : f32
    %98 = vector.broadcast %cst_51 : f32 to vector<8x128xf32>
    %99 = arith.addf %98, %97 : vector<8x128xf32>
    %100 = arith.divf %98, %99 : vector<8x128xf32>
    %101 = vector.extract_strided_slice %92 {offsets = [0, 0], sizes = [8, 128], strides = [1, 1]} : vector<8x256xf32> to vector<8x128xf32>
    %102 = vector.extract_strided_slice %92 {offsets = [0, 128], sizes = [8, 128], strides = [1, 1]} : vector<8x256xf32> to vector<8x128xf32>
    %103 = arith.mulf %102, %79 : vector<8x128xf32>
    %104 = arith.mulf %101, %94 : vector<8x128xf32>
    %105 = arith.addf %103, %104 : vector<8x128xf32>
    %106 = math.tanh %105 : vector<8x128xf32>
    %107 = arith.mulf %100, %106 : vector<8x128xf32>
    %c8_52 = arith.constant 8 : index
    %c0_53 = arith.constant 0 : index
    %108 = vector.load %arg12[%c8_52, %c0_53] : memref<64x128xf32, #tpu.memory_space<vmem>>, vector<8x128xf32>
    tpu.vector_store %arg12[%c8_52, %c0_53], %107 {strides = array<i32>} : memref<64x128xf32, #tpu.memory_space<vmem>>, vector<8x128xf32>,
    %c16_54 = arith.constant 16 : index
    %c0_55 = arith.constant 0 : index
    %109 = vector.load %arg11[%c16_54, %c0_55] : memref<64x512xf32, #tpu.memory_space<vmem>>, vector<8x512xf32>
    %110 = arith.truncf %107 : vector<8x128xf32> to vector<8x128xbf16>
    %cst_56 = arith.constant dense<0.000000e+00> : vector<8x512xf32>
    %111 = tpu.matmul %110, %25, %cst_56 {dimension_numbers = #tpu.dot_dimension_numbers<[1], [0], [0], [1], [0, 0, 1, 1], [], []>} : vector<8x128xbf16>, vector<128x512xbf16>, vector<8x512xf32> -> vector<8x512xf32>
    %112 = arith.addf %109, %111 : vector<8x512xf32>
    %113 = vector.extract_strided_slice %112 {offsets = [0, 0], sizes = [8, 256], strides = [1, 1]} : vector<8x512xf32> to vector<8x256xf32>
    %114 = arith.negf %113 : vector<8x256xf32>
    %115 = math.exp %114 : vector<8x256xf32>
    %cst_57 = arith.constant 1.000000e+00 : f32
    %116 = vector.broadcast %cst_57 : f32 to vector<8x256xf32>
    %117 = arith.addf %116, %115 : vector<8x256xf32>
    %118 = arith.divf %116, %117 : vector<8x256xf32>
    %119 = vector.extract_strided_slice %112 {offsets = [0, 256], sizes = [8, 128], strides = [1, 1]} : vector<8x512xf32> to vector<8x128xf32>
    %120 = math.tanh %119 : vector<8x128xf32>
    %121 = vector.extract_strided_slice %112 {offsets = [0, 384], sizes = [8, 128], strides = [1, 1]} : vector<8x512xf32> to vector<8x128xf32>
    %122 = arith.negf %121 : vector<8x128xf32>
    %123 = math.exp %122 : vector<8x128xf32>
    %cst_58 = arith.constant 1.000000e+00 : f32
    %124 = vector.broadcast %cst_58 : f32 to vector<8x128xf32>
    %125 = arith.addf %124, %123 : vector<8x128xf32>
    %126 = arith.divf %124, %125 : vector<8x128xf32>
    %127 = vector.extract_strided_slice %118 {offsets = [0, 0], sizes = [8, 128], strides = [1, 1]} : vector<8x256xf32> to vector<8x128xf32>
    %128 = vector.extract_strided_slice %118 {offsets = [0, 128], sizes = [8, 128], strides = [1, 1]} : vector<8x256xf32> to vector<8x128xf32>
    %129 = arith.mulf %128, %105 : vector<8x128xf32>
    %130 = arith.mulf %127, %120 : vector<8x128xf32>
    %131 = arith.addf %129, %130 : vector<8x128xf32>
    %132 = math.tanh %131 : vector<8x128xf32>
    %133 = arith.mulf %126, %132 : vector<8x128xf32>
    %c16_59 = arith.constant 16 : index
    %c0_60 = arith.constant 0 : index
    %134 = vector.load %arg12[%c16_59, %c0_60] : memref<64x128xf32, #tpu.memory_space<vmem>>, vector<8x128xf32>
    tpu.vector_store %arg12[%c16_59, %c0_60], %133 {strides = array<i32>} : memref<64x128xf32, #tpu.memory_space<vmem>>, vector<8x128xf32>,
    %c24_61 = arith.constant 24 : index
    %c0_62 = arith.constant 0 : index
    %135 = vector.load %arg11[%c24_61, %c0_62] : memref<64x512xf32, #tpu.memory_space<vmem>>, vector<8x512xf32>
    %136 = arith.truncf %133 : vector<8x128xf32> to vector<8x128xbf16>
    %cst_63 = arith.constant dense<0.000000e+00> : vector<8x512xf32>
    %137 = tpu.matmul %136, %25, %cst_63 {dimension_numbers = #tpu.dot_dimension_numbers<[1], [0], [0], [1], [0, 0, 1, 1], [], []>} : vector<8x128xbf16>, vector<128x512xbf16>, vector<8x512xf32> -> vector<8x512xf32>
    %138 = arith.addf %135, %137 : vector<8x512xf32>
    %139 = vector.extract_strided_slice %138 {offsets = [0, 0], sizes = [8, 256], strides = [1, 1]} : vector<8x512xf32> to vector<8x256xf32>
    %140 = arith.negf %139 : vector<8x256xf32>
    %141 = math.exp %140 : vector<8x256xf32>
    %cst_64 = arith.constant 1.000000e+00 : f32
    %142 = vector.broadcast %cst_64 : f32 to vector<8x256xf32>
    %143 = arith.addf %142, %141 : vector<8x256xf32>
    %144 = arith.divf %142, %143 : vector<8x256xf32>
    %145 = vector.extract_strided_slice %138 {offsets = [0, 256], sizes = [8, 128], strides = [1, 1]} : vector<8x512xf32> to vector<8x128xf32>
    %146 = math.tanh %145 : vector<8x128xf32>
    %147 = vector.extract_strided_slice %138 {offsets = [0, 384], sizes = [8, 128], strides = [1, 1]} : vector<8x512xf32> to vector<8x128xf32>
    %148 = arith.negf %147 : vector<8x128xf32>
    %149 = math.exp %148 : vector<8x128xf32>
    %cst_65 = arith.constant 1.000000e+00 : f32
    %150 = vector.broadcast %cst_65 : f32 to vector<8x128xf32>
    %151 = arith.addf %150, %149 : vector<8x128xf32>
    %152 = arith.divf %150, %151 : vector<8x128xf32>
    %153 = vector.extract_strided_slice %144 {offsets = [0, 0], sizes = [8, 128], strides = [1, 1]} : vector<8x256xf32> to vector<8x128xf32>
    %154 = vector.extract_strided_slice %144 {offsets = [0, 128], sizes = [8, 128], strides = [1, 1]} : vector<8x256xf32> to vector<8x128xf32>
    %155 = arith.mulf %154, %131 : vector<8x128xf32>
    %156 = arith.mulf %153, %146 : vector<8x128xf32>
    %157 = arith.addf %155, %156 : vector<8x128xf32>
    %158 = math.tanh %157 : vector<8x128xf32>
    %159 = arith.mulf %152, %158 : vector<8x128xf32>
    %c24_66 = arith.constant 24 : index
    %c0_67 = arith.constant 0 : index
    %160 = vector.load %arg12[%c24_66, %c0_67] : memref<64x128xf32, #tpu.memory_space<vmem>>, vector<8x128xf32>
    tpu.vector_store %arg12[%c24_66, %c0_67], %159 {strides = array<i32>} : memref<64x128xf32, #tpu.memory_space<vmem>>, vector<8x128xf32>,
    %c32_68 = arith.constant 32 : index
    %c0_69 = arith.constant 0 : index
    %161 = vector.load %arg11[%c32_68, %c0_69] : memref<64x512xf32, #tpu.memory_space<vmem>>, vector<8x512xf32>
    %162 = arith.truncf %159 : vector<8x128xf32> to vector<8x128xbf16>
    %cst_70 = arith.constant dense<0.000000e+00> : vector<8x512xf32>
    %163 = tpu.matmul %162, %25, %cst_70 {dimension_numbers = #tpu.dot_dimension_numbers<[1], [0], [0], [1], [0, 0, 1, 1], [], []>} : vector<8x128xbf16>, vector<128x512xbf16>, vector<8x512xf32> -> vector<8x512xf32>
    %164 = arith.addf %161, %163 : vector<8x512xf32>
    %165 = vector.extract_strided_slice %164 {offsets = [0, 0], sizes = [8, 256], strides = [1, 1]} : vector<8x512xf32> to vector<8x256xf32>
    %166 = arith.negf %165 : vector<8x256xf32>
    %167 = math.exp %166 : vector<8x256xf32>
    %cst_71 = arith.constant 1.000000e+00 : f32
    %168 = vector.broadcast %cst_71 : f32 to vector<8x256xf32>
    %169 = arith.addf %168, %167 : vector<8x256xf32>
    %170 = arith.divf %168, %169 : vector<8x256xf32>
    %171 = vector.extract_strided_slice %164 {offsets = [0, 256], sizes = [8, 128], strides = [1, 1]} : vector<8x512xf32> to vector<8x128xf32>
    %172 = math.tanh %171 : vector<8x128xf32>
    %173 = vector.extract_strided_slice %164 {offsets = [0, 384], sizes = [8, 128], strides = [1, 1]} : vector<8x512xf32> to vector<8x128xf32>
    %174 = arith.negf %173 : vector<8x128xf32>
    %175 = math.exp %174 : vector<8x128xf32>
    %cst_72 = arith.constant 1.000000e+00 : f32
    %176 = vector.broadcast %cst_72 : f32 to vector<8x128xf32>
    %177 = arith.addf %176, %175 : vector<8x128xf32>
    %178 = arith.divf %176, %177 : vector<8x128xf32>
    %179 = vector.extract_strided_slice %170 {offsets = [0, 0], sizes = [8, 128], strides = [1, 1]} : vector<8x256xf32> to vector<8x128xf32>
    %180 = vector.extract_strided_slice %170 {offsets = [0, 128], sizes = [8, 128], strides = [1, 1]} : vector<8x256xf32> to vector<8x128xf32>
    %181 = arith.mulf %180, %157 : vector<8x128xf32>
    %182 = arith.mulf %179, %172 : vector<8x128xf32>
    %183 = arith.addf %181, %182 : vector<8x128xf32>
    %184 = math.tanh %183 : vector<8x128xf32>
    %185 = arith.mulf %178, %184 : vector<8x128xf32>
    %c32_73 = arith.constant 32 : index
    %c0_74 = arith.constant 0 : index
    %186 = vector.load %arg12[%c32_73, %c0_74] : memref<64x128xf32, #tpu.memory_space<vmem>>, vector<8x128xf32>
    tpu.vector_store %arg12[%c32_73, %c0_74], %185 {strides = array<i32>} : memref<64x128xf32, #tpu.memory_space<vmem>>, vector<8x128xf32>,
    %c40_75 = arith.constant 40 : index
    %c0_76 = arith.constant 0 : index
    %187 = vector.load %arg11[%c40_75, %c0_76] : memref<64x512xf32, #tpu.memory_space<vmem>>, vector<8x512xf32>
    %188 = arith.truncf %185 : vector<8x128xf32> to vector<8x128xbf16>
    %cst_77 = arith.constant dense<0.000000e+00> : vector<8x512xf32>
    %189 = tpu.matmul %188, %25, %cst_77 {dimension_numbers = #tpu.dot_dimension_numbers<[1], [0], [0], [1], [0, 0, 1, 1], [], []>} : vector<8x128xbf16>, vector<128x512xbf16>, vector<8x512xf32> -> vector<8x512xf32>
    %190 = arith.addf %187, %189 : vector<8x512xf32>
    %191 = vector.extract_strided_slice %190 {offsets = [0, 0], sizes = [8, 256], strides = [1, 1]} : vector<8x512xf32> to vector<8x256xf32>
    %192 = arith.negf %191 : vector<8x256xf32>
    %193 = math.exp %192 : vector<8x256xf32>
    %cst_78 = arith.constant 1.000000e+00 : f32
    %194 = vector.broadcast %cst_78 : f32 to vector<8x256xf32>
    %195 = arith.addf %194, %193 : vector<8x256xf32>
    %196 = arith.divf %194, %195 : vector<8x256xf32>
    %197 = vector.extract_strided_slice %190 {offsets = [0, 256], sizes = [8, 128], strides = [1, 1]} : vector<8x512xf32> to vector<8x128xf32>
    %198 = math.tanh %197 : vector<8x128xf32>
    %199 = vector.extract_strided_slice %190 {offsets = [0, 384], sizes = [8, 128], strides = [1, 1]} : vector<8x512xf32> to vector<8x128xf32>
    %200 = arith.negf %199 : vector<8x128xf32>
    %201 = math.exp %200 : vector<8x128xf32>
    %cst_79 = arith.constant 1.000000e+00 : f32
    %202 = vector.broadcast %cst_79 : f32 to vector<8x128xf32>
    %203 = arith.addf %202, %201 : vector<8x128xf32>
    %204 = arith.divf %202, %203 : vector<8x128xf32>
    %205 = vector.extract_strided_slice %196 {offsets = [0, 0], sizes = [8, 128], strides = [1, 1]} : vector<8x256xf32> to vector<8x128xf32>
    %206 = vector.extract_strided_slice %196 {offsets = [0, 128], sizes = [8, 128], strides = [1, 1]} : vector<8x256xf32> to vector<8x128xf32>
    %207 = arith.mulf %206, %183 : vector<8x128xf32>
    %208 = arith.mulf %205, %198 : vector<8x128xf32>
    %209 = arith.addf %207, %208 : vector<8x128xf32>
    %210 = math.tanh %209 : vector<8x128xf32>
    %211 = arith.mulf %204, %210 : vector<8x128xf32>
    %c40_80 = arith.constant 40 : index
    %c0_81 = arith.constant 0 : index
    %212 = vector.load %arg12[%c40_80, %c0_81] : memref<64x128xf32, #tpu.memory_space<vmem>>, vector<8x128xf32>
    tpu.vector_store %arg12[%c40_80, %c0_81], %211 {strides = array<i32>} : memref<64x128xf32, #tpu.memory_space<vmem>>, vector<8x128xf32>,
    %c48_82 = arith.constant 48 : index
    %c0_83 = arith.constant 0 : index
    %213 = vector.load %arg11[%c48_82, %c0_83] : memref<64x512xf32, #tpu.memory_space<vmem>>, vector<8x512xf32>
    %214 = arith.truncf %211 : vector<8x128xf32> to vector<8x128xbf16>
    %cst_84 = arith.constant dense<0.000000e+00> : vector<8x512xf32>
    %215 = tpu.matmul %214, %25, %cst_84 {dimension_numbers = #tpu.dot_dimension_numbers<[1], [0], [0], [1], [0, 0, 1, 1], [], []>} : vector<8x128xbf16>, vector<128x512xbf16>, vector<8x512xf32> -> vector<8x512xf32>
    %216 = arith.addf %213, %215 : vector<8x512xf32>
    %217 = vector.extract_strided_slice %216 {offsets = [0, 0], sizes = [8, 256], strides = [1, 1]} : vector<8x512xf32> to vector<8x256xf32>
    %218 = arith.negf %217 : vector<8x256xf32>
    %219 = math.exp %218 : vector<8x256xf32>
    %cst_85 = arith.constant 1.000000e+00 : f32
    %220 = vector.broadcast %cst_85 : f32 to vector<8x256xf32>
    %221 = arith.addf %220, %219 : vector<8x256xf32>
    %222 = arith.divf %220, %221 : vector<8x256xf32>
    %223 = vector.extract_strided_slice %216 {offsets = [0, 256], sizes = [8, 128], strides = [1, 1]} : vector<8x512xf32> to vector<8x128xf32>
    %224 = math.tanh %223 : vector<8x128xf32>
    %225 = vector.extract_strided_slice %216 {offsets = [0, 384], sizes = [8, 128], strides = [1, 1]} : vector<8x512xf32> to vector<8x128xf32>
    %226 = arith.negf %225 : vector<8x128xf32>
    %227 = math.exp %226 : vector<8x128xf32>
    %cst_86 = arith.constant 1.000000e+00 : f32
    %228 = vector.broadcast %cst_86 : f32 to vector<8x128xf32>
    %229 = arith.addf %228, %227 : vector<8x128xf32>
    %230 = arith.divf %228, %229 : vector<8x128xf32>
    %231 = vector.extract_strided_slice %222 {offsets = [0, 0], sizes = [8, 128], strides = [1, 1]} : vector<8x256xf32> to vector<8x128xf32>
    %232 = vector.extract_strided_slice %222 {offsets = [0, 128], sizes = [8, 128], strides = [1, 1]} : vector<8x256xf32> to vector<8x128xf32>
    %233 = arith.mulf %232, %209 : vector<8x128xf32>
    %234 = arith.mulf %231, %224 : vector<8x128xf32>
    %235 = arith.addf %233, %234 : vector<8x128xf32>
    %236 = math.tanh %235 : vector<8x128xf32>
    %237 = arith.mulf %230, %236 : vector<8x128xf32>
    %c48_87 = arith.constant 48 : index
    %c0_88 = arith.constant 0 : index
    %238 = vector.load %arg12[%c48_87, %c0_88] : memref<64x128xf32, #tpu.memory_space<vmem>>, vector<8x128xf32>
    tpu.vector_store %arg12[%c48_87, %c0_88], %237 {strides = array<i32>} : memref<64x128xf32, #tpu.memory_space<vmem>>, vector<8x128xf32>,
    %c56_89 = arith.constant 56 : index
    %c0_90 = arith.constant 0 : index
    %239 = vector.load %arg11[%c56_89, %c0_90] : memref<64x512xf32, #tpu.memory_space<vmem>>, vector<8x512xf32>
    %240 = arith.truncf %237 : vector<8x128xf32> to vector<8x128xbf16>
    %cst_91 = arith.constant dense<0.000000e+00> : vector<8x512xf32>
    %241 = tpu.matmul %240, %25, %cst_91 {dimension_numbers = #tpu.dot_dimension_numbers<[1], [0], [0], [1], [0, 0, 1, 1], [], []>} : vector<8x128xbf16>, vector<128x512xbf16>, vector<8x512xf32> -> vector<8x512xf32>
    %242 = arith.addf %239, %241 : vector<8x512xf32>
    %243 = vector.extract_strided_slice %242 {offsets = [0, 0], sizes = [8, 256], strides = [1, 1]} : vector<8x512xf32> to vector<8x256xf32>
    %244 = arith.negf %243 : vector<8x256xf32>
    %245 = math.exp %244 : vector<8x256xf32>
    %cst_92 = arith.constant 1.000000e+00 : f32
    %246 = vector.broadcast %cst_92 : f32 to vector<8x256xf32>
    %247 = arith.addf %246, %245 : vector<8x256xf32>
    %248 = arith.divf %246, %247 : vector<8x256xf32>
    %249 = vector.extract_strided_slice %242 {offsets = [0, 256], sizes = [8, 128], strides = [1, 1]} : vector<8x512xf32> to vector<8x128xf32>
    %250 = math.tanh %249 : vector<8x128xf32>
    %251 = vector.extract_strided_slice %242 {offsets = [0, 384], sizes = [8, 128], strides = [1, 1]} : vector<8x512xf32> to vector<8x128xf32>
    %252 = arith.negf %251 : vector<8x128xf32>
    %253 = math.exp %252 : vector<8x128xf32>
    %cst_93 = arith.constant 1.000000e+00 : f32
    %254 = vector.broadcast %cst_93 : f32 to vector<8x128xf32>
    %255 = arith.addf %254, %253 : vector<8x128xf32>
    %256 = arith.divf %254, %255 : vector<8x128xf32>
    %257 = vector.extract_strided_slice %248 {offsets = [0, 0], sizes = [8, 128], strides = [1, 1]} : vector<8x256xf32> to vector<8x128xf32>
    %258 = vector.extract_strided_slice %248 {offsets = [0, 128], sizes = [8, 128], strides = [1, 1]} : vector<8x256xf32> to vector<8x128xf32>
    %259 = arith.mulf %258, %235 : vector<8x128xf32>
    %260 = arith.mulf %257, %250 : vector<8x128xf32>
    %261 = arith.addf %259, %260 : vector<8x128xf32>
    %262 = math.tanh %261 : vector<8x128xf32>
    %263 = arith.mulf %256, %262 : vector<8x128xf32>
    %c56_94 = arith.constant 56 : index
    %c0_95 = arith.constant 0 : index
    %264 = vector.load %arg12[%c56_94, %c0_95] : memref<64x128xf32, #tpu.memory_space<vmem>>, vector<8x128xf32>
    tpu.vector_store %arg12[%c56_94, %c0_95], %263 {strides = array<i32>} : memref<64x128xf32, #tpu.memory_space<vmem>>, vector<8x128xf32>,
    %c0_96 = arith.constant 0 : index
    %c0_97 = arith.constant 0 : index
    %265 = vector.load %arg12[%c0_96, %c0_97] : memref<64x128xf32, #tpu.memory_space<vmem>>, vector<8x128xf32>
    %c56_98 = arith.constant 56 : index
    %c0_99 = arith.constant 0 : index
    %266 = vector.load %arg12[%c56_98, %c0_99] : memref<64x128xf32, #tpu.memory_space<vmem>>, vector<8x128xf32>
    %267 = arith.select %21, %265, %266 : vector<8x128xi1>, vector<8x128xf32>
    %c0_100 = arith.constant 0 : index
    %c0_101 = arith.constant 0 : index
    %268 = vector.load %arg12[%c0_100, %c0_101] : memref<64x128xf32, #tpu.memory_space<vmem>>, vector<8x128xf32>
    tpu.vector_store %arg12[%c0_100, %c0_101], %267 {strides = array<i32>} : memref<64x128xf32, #tpu.memory_space<vmem>>, vector<8x128xf32>,
    %269 = arith.select %21, %266, %265 : vector<8x128xi1>, vector<8x128xf32>
    %c56_102 = arith.constant 56 : index
    %c0_103 = arith.constant 0 : index
    %270 = vector.load %arg12[%c56_102, %c0_103] : memref<64x128xf32, #tpu.memory_space<vmem>>, vector<8x128xf32>
    tpu.vector_store %arg12[%c56_102, %c0_103], %269 {strides = array<i32>} : memref<64x128xf32, #tpu.memory_space<vmem>>, vector<8x128xf32>,
    %c8_104 = arith.constant 8 : index
    %c0_105 = arith.constant 0 : index
    %271 = vector.load %arg12[%c8_104, %c0_105] : memref<64x128xf32, #tpu.memory_space<vmem>>, vector<8x128xf32>
    %c48_106 = arith.constant 48 : index
    %c0_107 = arith.constant 0 : index
    %272 = vector.load %arg12[%c48_106, %c0_107] : memref<64x128xf32, #tpu.memory_space<vmem>>, vector<8x128xf32>
    %273 = arith.select %21, %271, %272 : vector<8x128xi1>, vector<8x128xf32>
    %c8_108 = arith.constant 8 : index
    %c0_109 = arith.constant 0 : index
    %274 = vector.load %arg12[%c8_108, %c0_109] : memref<64x128xf32, #tpu.memory_space<vmem>>, vector<8x128xf32>
    tpu.vector_store %arg12[%c8_108, %c0_109], %273 {strides = array<i32>} : memref<64x128xf32, #tpu.memory_space<vmem>>, vector<8x128xf32>,
    %275 = arith.select %21, %272, %271 : vector<8x128xi1>, vector<8x128xf32>
    %c48_110 = arith.constant 48 : index
    %c0_111 = arith.constant 0 : index
    %276 = vector.load %arg12[%c48_110, %c0_111] : memref<64x128xf32, #tpu.memory_space<vmem>>, vector<8x128xf32>
    tpu.vector_store %arg12[%c48_110, %c0_111], %275 {strides = array<i32>} : memref<64x128xf32, #tpu.memory_space<vmem>>, vector<8x128xf32>,
    %c16_112 = arith.constant 16 : index
    %c0_113 = arith.constant 0 : index
    %277 = vector.load %arg12[%c16_112, %c0_113] : memref<64x128xf32, #tpu.memory_space<vmem>>, vector<8x128xf32>
    %c40_114 = arith.constant 40 : index
    %c0_115 = arith.constant 0 : index
    %278 = vector.load %arg12[%c40_114, %c0_115] : memref<64x128xf32, #tpu.memory_space<vmem>>, vector<8x128xf32>
    %279 = arith.select %21, %277, %278 : vector<8x128xi1>, vector<8x128xf32>
    %c16_116 = arith.constant 16 : index
    %c0_117 = arith.constant 0 : index
    %280 = vector.load %arg12[%c16_116, %c0_117] : memref<64x128xf32, #tpu.memory_space<vmem>>, vector<8x128xf32>
    tpu.vector_store %arg12[%c16_116, %c0_117], %279 {strides = array<i32>} : memref<64x128xf32, #tpu.memory_space<vmem>>, vector<8x128xf32>,
    %281 = arith.select %21, %278, %277 : vector<8x128xi1>, vector<8x128xf32>
    %c40_118 = arith.constant 40 : index
    %c0_119 = arith.constant 0 : index
    %282 = vector.load %arg12[%c40_118, %c0_119] : memref<64x128xf32, #tpu.memory_space<vmem>>, vector<8x128xf32>
    tpu.vector_store %arg12[%c40_118, %c0_119], %281 {strides = array<i32>} : memref<64x128xf32, #tpu.memory_space<vmem>>, vector<8x128xf32>,
    %c24_120 = arith.constant 24 : index
    %c0_121 = arith.constant 0 : index
    %283 = vector.load %arg12[%c24_120, %c0_121] : memref<64x128xf32, #tpu.memory_space<vmem>>, vector<8x128xf32>
    %c32_122 = arith.constant 32 : index
    %c0_123 = arith.constant 0 : index
    %284 = vector.load %arg12[%c32_122, %c0_123] : memref<64x128xf32, #tpu.memory_space<vmem>>, vector<8x128xf32>
    %285 = arith.select %21, %283, %284 : vector<8x128xi1>, vector<8x128xf32>
    %c24_124 = arith.constant 24 : index
    %c0_125 = arith.constant 0 : index
    %286 = vector.load %arg12[%c24_124, %c0_125] : memref<64x128xf32, #tpu.memory_space<vmem>>, vector<8x128xf32>
    tpu.vector_store %arg12[%c24_124, %c0_125], %285 {strides = array<i32>} : memref<64x128xf32, #tpu.memory_space<vmem>>, vector<8x128xf32>,
    %287 = arith.select %21, %284, %283 : vector<8x128xi1>, vector<8x128xf32>
    %c32_126 = arith.constant 32 : index
    %c0_127 = arith.constant 0 : index
    %288 = vector.load %arg12[%c32_126, %c0_127] : memref<64x128xf32, #tpu.memory_space<vmem>>, vector<8x128xf32>
    tpu.vector_store %arg12[%c32_126, %c0_127], %287 {strides = array<i32>} : memref<64x128xf32, #tpu.memory_space<vmem>>, vector<8x128xf32>,
    %c0_128 = arith.constant 0 : index
    %c0_129 = arith.constant 0 : index
    %289 = vector.load %arg12[%c0_128, %c0_129] : memref<64x128xf32, #tpu.memory_space<vmem>>, vector<64x128xf32>
    %290 = arith.truncf %289 : vector<64x128xf32> to vector<64x128xbf16>
    %c0_130 = arith.constant 0 : index
    %c0_131 = arith.constant 0 : index
    %291 = vector.load %arg5[%c0_130, %c0_131] : memref<128x512xbf16, #tpu.memory_space<vmem>>, vector<128x512xbf16>
    %c0_132 = arith.constant 0 : index
    %c0_133 = arith.constant 0 : index
    %292 = vector.load %arg6[%c0_132, %c0_133] : memref<128x512xbf16, #tpu.memory_space<vmem>>, vector<128x512xbf16>
    %c0_134 = arith.constant 0 : index
    %c0_135 = arith.constant 0 : index
    %293 = vector.load %arg7[%c0_134, %c0_135] : memref<1x512xf32, #tpu.memory_space<vmem>>, vector<1x512xf32>
    %cst_136 = arith.constant dense<0.000000e+00> : vector<64x512xf32>
    %294 = tpu.matmul %290, %291, %cst_136 {dimension_numbers = #tpu.dot_dimension_numbers<[1], [0], [0], [1], [0, 0, 1, 1], [], []>} : vector<64x128xbf16>, vector<128x512xbf16>, vector<64x512xf32> -> vector<64x512xf32>
    %295 = vector.broadcast %293 : vector<1x512xf32> to vector<64x512xf32>
    %296 = arith.addf %294, %295 : vector<64x512xf32>
    %c0_137 = arith.constant 0 : index
    %c0_138 = arith.constant 0 : index
    %297 = vector.load %arg11[%c0_137, %c0_138] : memref<64x512xf32, #tpu.memory_space<vmem>>, vector<64x512xf32>
    tpu.vector_store %arg11[%c0_137, %c0_138], %296 {strides = array<i32>} : memref<64x512xf32, #tpu.memory_space<vmem>>, vector<64x512xf32>,
    %c0_139 = arith.constant 0 : index
    %c0_140 = arith.constant 0 : index
    %298 = vector.load %arg11[%c0_139, %c0_140] : memref<64x512xf32, #tpu.memory_space<vmem>>, vector<8x512xf32>
    %c56_141 = arith.constant 56 : index
    %c0_142 = arith.constant 0 : index
    %299 = vector.load %arg11[%c56_141, %c0_142] : memref<64x512xf32, #tpu.memory_space<vmem>>, vector<8x512xf32>
    %300 = arith.select %18, %298, %299 : vector<8x512xi1>, vector<8x512xf32>
    %c0_143 = arith.constant 0 : index
    %c0_144 = arith.constant 0 : index
    %301 = vector.load %arg11[%c0_143, %c0_144] : memref<64x512xf32, #tpu.memory_space<vmem>>, vector<8x512xf32>
    tpu.vector_store %arg11[%c0_143, %c0_144], %300 {strides = array<i32>} : memref<64x512xf32, #tpu.memory_space<vmem>>, vector<8x512xf32>,
    %302 = arith.select %18, %299, %298 : vector<8x512xi1>, vector<8x512xf32>
    %c56_145 = arith.constant 56 : index
    %c0_146 = arith.constant 0 : index
    %303 = vector.load %arg11[%c56_145, %c0_146] : memref<64x512xf32, #tpu.memory_space<vmem>>, vector<8x512xf32>
    tpu.vector_store %arg11[%c56_145, %c0_146], %302 {strides = array<i32>} : memref<64x512xf32, #tpu.memory_space<vmem>>, vector<8x512xf32>,
    %c8_147 = arith.constant 8 : index
    %c0_148 = arith.constant 0 : index
    %304 = vector.load %arg11[%c8_147, %c0_148] : memref<64x512xf32, #tpu.memory_space<vmem>>, vector<8x512xf32>
    %c48_149 = arith.constant 48 : index
    %c0_150 = arith.constant 0 : index
    %305 = vector.load %arg11[%c48_149, %c0_150] : memref<64x512xf32, #tpu.memory_space<vmem>>, vector<8x512xf32>
    %306 = arith.select %18, %304, %305 : vector<8x512xi1>, vector<8x512xf32>
    %c8_151 = arith.constant 8 : index
    %c0_152 = arith.constant 0 : index
    %307 = vector.load %arg11[%c8_151, %c0_152] : memref<64x512xf32, #tpu.memory_space<vmem>>, vector<8x512xf32>
    tpu.vector_store %arg11[%c8_151, %c0_152], %306 {strides = array<i32>} : memref<64x512xf32, #tpu.memory_space<vmem>>, vector<8x512xf32>,
    %308 = arith.select %18, %305, %304 : vector<8x512xi1>, vector<8x512xf32>
    %c48_153 = arith.constant 48 : index
    %c0_154 = arith.constant 0 : index
    %309 = vector.load %arg11[%c48_153, %c0_154] : memref<64x512xf32, #tpu.memory_space<vmem>>, vector<8x512xf32>
    tpu.vector_store %arg11[%c48_153, %c0_154], %308 {strides = array<i32>} : memref<64x512xf32, #tpu.memory_space<vmem>>, vector<8x512xf32>,
    %c16_155 = arith.constant 16 : index
    %c0_156 = arith.constant 0 : index
    %310 = vector.load %arg11[%c16_155, %c0_156] : memref<64x512xf32, #tpu.memory_space<vmem>>, vector<8x512xf32>
    %c40_157 = arith.constant 40 : index
    %c0_158 = arith.constant 0 : index
    %311 = vector.load %arg11[%c40_157, %c0_158] : memref<64x512xf32, #tpu.memory_space<vmem>>, vector<8x512xf32>
    %312 = arith.select %18, %310, %311 : vector<8x512xi1>, vector<8x512xf32>
    %c16_159 = arith.constant 16 : index
    %c0_160 = arith.constant 0 : index
    %313 = vector.load %arg11[%c16_159, %c0_160] : memref<64x512xf32, #tpu.memory_space<vmem>>, vector<8x512xf32>
    tpu.vector_store %arg11[%c16_159, %c0_160], %312 {strides = array<i32>} : memref<64x512xf32, #tpu.memory_space<vmem>>, vector<8x512xf32>,
    %314 = arith.select %18, %311, %310 : vector<8x512xi1>, vector<8x512xf32>
    %c40_161 = arith.constant 40 : index
    %c0_162 = arith.constant 0 : index
    %315 = vector.load %arg11[%c40_161, %c0_162] : memref<64x512xf32, #tpu.memory_space<vmem>>, vector<8x512xf32>
    tpu.vector_store %arg11[%c40_161, %c0_162], %314 {strides = array<i32>} : memref<64x512xf32, #tpu.memory_space<vmem>>, vector<8x512xf32>,
    %c24_163 = arith.constant 24 : index
    %c0_164 = arith.constant 0 : index
    %316 = vector.load %arg11[%c24_163, %c0_164] : memref<64x512xf32, #tpu.memory_space<vmem>>, vector<8x512xf32>
    %c32_165 = arith.constant 32 : index
    %c0_166 = arith.constant 0 : index
    %317 = vector.load %arg11[%c32_165, %c0_166] : memref<64x512xf32, #tpu.memory_space<vmem>>, vector<8x512xf32>
    %318 = arith.select %18, %316, %317 : vector<8x512xi1>, vector<8x512xf32>
    %c24_167 = arith.constant 24 : index
    %c0_168 = arith.constant 0 : index
    %319 = vector.load %arg11[%c24_167, %c0_168] : memref<64x512xf32, #tpu.memory_space<vmem>>, vector<8x512xf32>
    tpu.vector_store %arg11[%c24_167, %c0_168], %318 {strides = array<i32>} : memref<64x512xf32, #tpu.memory_space<vmem>>, vector<8x512xf32>,
    %320 = arith.select %18, %317, %316 : vector<8x512xi1>, vector<8x512xf32>
    %c32_169 = arith.constant 32 : index
    %c0_170 = arith.constant 0 : index
    %321 = vector.load %arg11[%c32_169, %c0_170] : memref<64x512xf32, #tpu.memory_space<vmem>>, vector<8x512xf32>
    tpu.vector_store %arg11[%c32_169, %c0_170], %320 {strides = array<i32>} : memref<64x512xf32, #tpu.memory_space<vmem>>, vector<8x512xf32>,
    %cst_171 = arith.constant 0.000000e+00 : f32
    %322 = vector.broadcast %cst_171 : f32 to vector<8x128xf32>
    %cst_172 = arith.constant 0.000000e+00 : f32
    %323 = vector.broadcast %cst_172 : f32 to vector<8x128xf32>
    %c0_173 = arith.constant 0 : index
    %c0_174 = arith.constant 0 : index
    %324 = vector.load %arg11[%c0_173, %c0_174] : memref<64x512xf32, #tpu.memory_space<vmem>>, vector<8x512xf32>
    %325 = arith.truncf %322 : vector<8x128xf32> to vector<8x128xbf16>
    %cst_175 = arith.constant dense<0.000000e+00> : vector<8x512xf32>
    %326 = tpu.matmul %325, %292, %cst_175 {dimension_numbers = #tpu.dot_dimension_numbers<[1], [0], [0], [1], [0, 0, 1, 1], [], []>} : vector<8x128xbf16>, vector<128x512xbf16>, vector<8x512xf32> -> vector<8x512xf32>
    %327 = arith.addf %324, %326 : vector<8x512xf32>
    %328 = vector.extract_strided_slice %327 {offsets = [0, 0], sizes = [8, 256], strides = [1, 1]} : vector<8x512xf32> to vector<8x256xf32>
    %329 = arith.negf %328 : vector<8x256xf32>
    %330 = math.exp %329 : vector<8x256xf32>
    %cst_176 = arith.constant 1.000000e+00 : f32
    %331 = vector.broadcast %cst_176 : f32 to vector<8x256xf32>
    %332 = arith.addf %331, %330 : vector<8x256xf32>
    %333 = arith.divf %331, %332 : vector<8x256xf32>
    %334 = vector.extract_strided_slice %327 {offsets = [0, 256], sizes = [8, 128], strides = [1, 1]} : vector<8x512xf32> to vector<8x128xf32>
    %335 = math.tanh %334 : vector<8x128xf32>
    %336 = vector.extract_strided_slice %327 {offsets = [0, 384], sizes = [8, 128], strides = [1, 1]} : vector<8x512xf32> to vector<8x128xf32>
    %337 = arith.negf %336 : vector<8x128xf32>
    %338 = math.exp %337 : vector<8x128xf32>
    %cst_177 = arith.constant 1.000000e+00 : f32
    %339 = vector.broadcast %cst_177 : f32 to vector<8x128xf32>
    %340 = arith.addf %339, %338 : vector<8x128xf32>
    %341 = arith.divf %339, %340 : vector<8x128xf32>
    %342 = vector.extract_strided_slice %333 {offsets = [0, 0], sizes = [8, 128], strides = [1, 1]} : vector<8x256xf32> to vector<8x128xf32>
    %343 = vector.extract_strided_slice %333 {offsets = [0, 128], sizes = [8, 128], strides = [1, 1]} : vector<8x256xf32> to vector<8x128xf32>
    %344 = arith.mulf %343, %323 : vector<8x128xf32>
    %345 = arith.mulf %342, %335 : vector<8x128xf32>
    %346 = arith.addf %344, %345 : vector<8x128xf32>
    %347 = math.tanh %346 : vector<8x128xf32>
    %348 = arith.mulf %341, %347 : vector<8x128xf32>
    %c8_178 = arith.constant 8 : index
    %c0_179 = arith.constant 0 : index
    %349 = vector.load %arg11[%c8_178, %c0_179] : memref<64x512xf32, #tpu.memory_space<vmem>>, vector<8x512xf32>
    %350 = arith.truncf %348 : vector<8x128xf32> to vector<8x128xbf16>
    %cst_180 = arith.constant dense<0.000000e+00> : vector<8x512xf32>
    %351 = tpu.matmul %350, %292, %cst_180 {dimension_numbers = #tpu.dot_dimension_numbers<[1], [0], [0], [1], [0, 0, 1, 1], [], []>} : vector<8x128xbf16>, vector<128x512xbf16>, vector<8x512xf32> -> vector<8x512xf32>
    %352 = arith.addf %349, %351 : vector<8x512xf32>
    %353 = vector.extract_strided_slice %352 {offsets = [0, 0], sizes = [8, 256], strides = [1, 1]} : vector<8x512xf32> to vector<8x256xf32>
    %354 = arith.negf %353 : vector<8x256xf32>
    %355 = math.exp %354 : vector<8x256xf32>
    %cst_181 = arith.constant 1.000000e+00 : f32
    %356 = vector.broadcast %cst_181 : f32 to vector<8x256xf32>
    %357 = arith.addf %356, %355 : vector<8x256xf32>
    %358 = arith.divf %356, %357 : vector<8x256xf32>
    %359 = vector.extract_strided_slice %352 {offsets = [0, 256], sizes = [8, 128], strides = [1, 1]} : vector<8x512xf32> to vector<8x128xf32>
    %360 = math.tanh %359 : vector<8x128xf32>
    %361 = vector.extract_strided_slice %352 {offsets = [0, 384], sizes = [8, 128], strides = [1, 1]} : vector<8x512xf32> to vector<8x128xf32>
    %362 = arith.negf %361 : vector<8x128xf32>
    %363 = math.exp %362 : vector<8x128xf32>
    %cst_182 = arith.constant 1.000000e+00 : f32
    %364 = vector.broadcast %cst_182 : f32 to vector<8x128xf32>
    %365 = arith.addf %364, %363 : vector<8x128xf32>
    %366 = arith.divf %364, %365 : vector<8x128xf32>
    %367 = vector.extract_strided_slice %358 {offsets = [0, 0], sizes = [8, 128], strides = [1, 1]} : vector<8x256xf32> to vector<8x128xf32>
    %368 = vector.extract_strided_slice %358 {offsets = [0, 128], sizes = [8, 128], strides = [1, 1]} : vector<8x256xf32> to vector<8x128xf32>
    %369 = arith.mulf %368, %346 : vector<8x128xf32>
    %370 = arith.mulf %367, %360 : vector<8x128xf32>
    %371 = arith.addf %369, %370 : vector<8x128xf32>
    %372 = math.tanh %371 : vector<8x128xf32>
    %373 = arith.mulf %366, %372 : vector<8x128xf32>
    %c16_183 = arith.constant 16 : index
    %c0_184 = arith.constant 0 : index
    %374 = vector.load %arg11[%c16_183, %c0_184] : memref<64x512xf32, #tpu.memory_space<vmem>>, vector<8x512xf32>
    %375 = arith.truncf %373 : vector<8x128xf32> to vector<8x128xbf16>
    %cst_185 = arith.constant dense<0.000000e+00> : vector<8x512xf32>
    %376 = tpu.matmul %375, %292, %cst_185 {dimension_numbers = #tpu.dot_dimension_numbers<[1], [0], [0], [1], [0, 0, 1, 1], [], []>} : vector<8x128xbf16>, vector<128x512xbf16>, vector<8x512xf32> -> vector<8x512xf32>
    %377 = arith.addf %374, %376 : vector<8x512xf32>
    %378 = vector.extract_strided_slice %377 {offsets = [0, 0], sizes = [8, 256], strides = [1, 1]} : vector<8x512xf32> to vector<8x256xf32>
    %379 = arith.negf %378 : vector<8x256xf32>
    %380 = math.exp %379 : vector<8x256xf32>
    %cst_186 = arith.constant 1.000000e+00 : f32
    %381 = vector.broadcast %cst_186 : f32 to vector<8x256xf32>
    %382 = arith.addf %381, %380 : vector<8x256xf32>
    %383 = arith.divf %381, %382 : vector<8x256xf32>
    %384 = vector.extract_strided_slice %377 {offsets = [0, 256], sizes = [8, 128], strides = [1, 1]} : vector<8x512xf32> to vector<8x128xf32>
    %385 = math.tanh %384 : vector<8x128xf32>
    %386 = vector.extract_strided_slice %377 {offsets = [0, 384], sizes = [8, 128], strides = [1, 1]} : vector<8x512xf32> to vector<8x128xf32>
    %387 = arith.negf %386 : vector<8x128xf32>
    %388 = math.exp %387 : vector<8x128xf32>
    %cst_187 = arith.constant 1.000000e+00 : f32
    %389 = vector.broadcast %cst_187 : f32 to vector<8x128xf32>
    %390 = arith.addf %389, %388 : vector<8x128xf32>
    %391 = arith.divf %389, %390 : vector<8x128xf32>
    %392 = vector.extract_strided_slice %383 {offsets = [0, 0], sizes = [8, 128], strides = [1, 1]} : vector<8x256xf32> to vector<8x128xf32>
    %393 = vector.extract_strided_slice %383 {offsets = [0, 128], sizes = [8, 128], strides = [1, 1]} : vector<8x256xf32> to vector<8x128xf32>
    %394 = arith.mulf %393, %371 : vector<8x128xf32>
    %395 = arith.mulf %392, %385 : vector<8x128xf32>
    %396 = arith.addf %394, %395 : vector<8x128xf32>
    %397 = math.tanh %396 : vector<8x128xf32>
    %398 = arith.mulf %391, %397 : vector<8x128xf32>
    %c24_188 = arith.constant 24 : index
    %c0_189 = arith.constant 0 : index
    %399 = vector.load %arg11[%c24_188, %c0_189] : memref<64x512xf32, #tpu.memory_space<vmem>>, vector<8x512xf32>
    %400 = arith.truncf %398 : vector<8x128xf32> to vector<8x128xbf16>
    %cst_190 = arith.constant dense<0.000000e+00> : vector<8x512xf32>
    %401 = tpu.matmul %400, %292, %cst_190 {dimension_numbers = #tpu.dot_dimension_numbers<[1], [0], [0], [1], [0, 0, 1, 1], [], []>} : vector<8x128xbf16>, vector<128x512xbf16>, vector<8x512xf32> -> vector<8x512xf32>
    %402 = arith.addf %399, %401 : vector<8x512xf32>
    %403 = vector.extract_strided_slice %402 {offsets = [0, 0], sizes = [8, 256], strides = [1, 1]} : vector<8x512xf32> to vector<8x256xf32>
    %404 = arith.negf %403 : vector<8x256xf32>
    %405 = math.exp %404 : vector<8x256xf32>
    %cst_191 = arith.constant 1.000000e+00 : f32
    %406 = vector.broadcast %cst_191 : f32 to vector<8x256xf32>
    %407 = arith.addf %406, %405 : vector<8x256xf32>
    %408 = arith.divf %406, %407 : vector<8x256xf32>
    %409 = vector.extract_strided_slice %402 {offsets = [0, 256], sizes = [8, 128], strides = [1, 1]} : vector<8x512xf32> to vector<8x128xf32>
    %410 = math.tanh %409 : vector<8x128xf32>
    %411 = vector.extract_strided_slice %402 {offsets = [0, 384], sizes = [8, 128], strides = [1, 1]} : vector<8x512xf32> to vector<8x128xf32>
    %412 = arith.negf %411 : vector<8x128xf32>
    %413 = math.exp %412 : vector<8x128xf32>
    %cst_192 = arith.constant 1.000000e+00 : f32
    %414 = vector.broadcast %cst_192 : f32 to vector<8x128xf32>
    %415 = arith.addf %414, %413 : vector<8x128xf32>
    %416 = arith.divf %414, %415 : vector<8x128xf32>
    %417 = vector.extract_strided_slice %408 {offsets = [0, 0], sizes = [8, 128], strides = [1, 1]} : vector<8x256xf32> to vector<8x128xf32>
    %418 = vector.extract_strided_slice %408 {offsets = [0, 128], sizes = [8, 128], strides = [1, 1]} : vector<8x256xf32> to vector<8x128xf32>
    %419 = arith.mulf %418, %396 : vector<8x128xf32>
    %420 = arith.mulf %417, %410 : vector<8x128xf32>
    %421 = arith.addf %419, %420 : vector<8x128xf32>
    %422 = math.tanh %421 : vector<8x128xf32>
    %423 = arith.mulf %416, %422 : vector<8x128xf32>
    %c32_193 = arith.constant 32 : index
    %c0_194 = arith.constant 0 : index
    %424 = vector.load %arg11[%c32_193, %c0_194] : memref<64x512xf32, #tpu.memory_space<vmem>>, vector<8x512xf32>
    %425 = arith.truncf %423 : vector<8x128xf32> to vector<8x128xbf16>
    %cst_195 = arith.constant dense<0.000000e+00> : vector<8x512xf32>
    %426 = tpu.matmul %425, %292, %cst_195 {dimension_numbers = #tpu.dot_dimension_numbers<[1], [0], [0], [1], [0, 0, 1, 1], [], []>} : vector<8x128xbf16>, vector<128x512xbf16>, vector<8x512xf32> -> vector<8x512xf32>
    %427 = arith.addf %424, %426 : vector<8x512xf32>
    %428 = vector.extract_strided_slice %427 {offsets = [0, 0], sizes = [8, 256], strides = [1, 1]} : vector<8x512xf32> to vector<8x256xf32>
    %429 = arith.negf %428 : vector<8x256xf32>
    %430 = math.exp %429 : vector<8x256xf32>
    %cst_196 = arith.constant 1.000000e+00 : f32
    %431 = vector.broadcast %cst_196 : f32 to vector<8x256xf32>
    %432 = arith.addf %431, %430 : vector<8x256xf32>
    %433 = arith.divf %431, %432 : vector<8x256xf32>
    %434 = vector.extract_strided_slice %427 {offsets = [0, 256], sizes = [8, 128], strides = [1, 1]} : vector<8x512xf32> to vector<8x128xf32>
    %435 = math.tanh %434 : vector<8x128xf32>
    %436 = vector.extract_strided_slice %427 {offsets = [0, 384], sizes = [8, 128], strides = [1, 1]} : vector<8x512xf32> to vector<8x128xf32>
    %437 = arith.negf %436 : vector<8x128xf32>
    %438 = math.exp %437 : vector<8x128xf32>
    %cst_197 = arith.constant 1.000000e+00 : f32
    %439 = vector.broadcast %cst_197 : f32 to vector<8x128xf32>
    %440 = arith.addf %439, %438 : vector<8x128xf32>
    %441 = arith.divf %439, %440 : vector<8x128xf32>
    %442 = vector.extract_strided_slice %433 {offsets = [0, 0], sizes = [8, 128], strides = [1, 1]} : vector<8x256xf32> to vector<8x128xf32>
    %443 = vector.extract_strided_slice %433 {offsets = [0, 128], sizes = [8, 128], strides = [1, 1]} : vector<8x256xf32> to vector<8x128xf32>
    %444 = arith.mulf %443, %421 : vector<8x128xf32>
    %445 = arith.mulf %442, %435 : vector<8x128xf32>
    %446 = arith.addf %444, %445 : vector<8x128xf32>
    %447 = math.tanh %446 : vector<8x128xf32>
    %448 = arith.mulf %441, %447 : vector<8x128xf32>
    %c40_198 = arith.constant 40 : index
    %c0_199 = arith.constant 0 : index
    %449 = vector.load %arg11[%c40_198, %c0_199] : memref<64x512xf32, #tpu.memory_space<vmem>>, vector<8x512xf32>
    %450 = arith.truncf %448 : vector<8x128xf32> to vector<8x128xbf16>
    %cst_200 = arith.constant dense<0.000000e+00> : vector<8x512xf32>
    %451 = tpu.matmul %450, %292, %cst_200 {dimension_numbers = #tpu.dot_dimension_numbers<[1], [0], [0], [1], [0, 0, 1, 1], [], []>} : vector<8x128xbf16>, vector<128x512xbf16>, vector<8x512xf32> -> vector<8x512xf32>
    %452 = arith.addf %449, %451 : vector<8x512xf32>
    %453 = vector.extract_strided_slice %452 {offsets = [0, 0], sizes = [8, 256], strides = [1, 1]} : vector<8x512xf32> to vector<8x256xf32>
    %454 = arith.negf %453 : vector<8x256xf32>
    %455 = math.exp %454 : vector<8x256xf32>
    %cst_201 = arith.constant 1.000000e+00 : f32
    %456 = vector.broadcast %cst_201 : f32 to vector<8x256xf32>
    %457 = arith.addf %456, %455 : vector<8x256xf32>
    %458 = arith.divf %456, %457 : vector<8x256xf32>
    %459 = vector.extract_strided_slice %452 {offsets = [0, 256], sizes = [8, 128], strides = [1, 1]} : vector<8x512xf32> to vector<8x128xf32>
    %460 = math.tanh %459 : vector<8x128xf32>
    %461 = vector.extract_strided_slice %452 {offsets = [0, 384], sizes = [8, 128], strides = [1, 1]} : vector<8x512xf32> to vector<8x128xf32>
    %462 = arith.negf %461 : vector<8x128xf32>
    %463 = math.exp %462 : vector<8x128xf32>
    %cst_202 = arith.constant 1.000000e+00 : f32
    %464 = vector.broadcast %cst_202 : f32 to vector<8x128xf32>
    %465 = arith.addf %464, %463 : vector<8x128xf32>
    %466 = arith.divf %464, %465 : vector<8x128xf32>
    %467 = vector.extract_strided_slice %458 {offsets = [0, 0], sizes = [8, 128], strides = [1, 1]} : vector<8x256xf32> to vector<8x128xf32>
    %468 = vector.extract_strided_slice %458 {offsets = [0, 128], sizes = [8, 128], strides = [1, 1]} : vector<8x256xf32> to vector<8x128xf32>
    %469 = arith.mulf %468, %446 : vector<8x128xf32>
    %470 = arith.mulf %467, %460 : vector<8x128xf32>
    %471 = arith.addf %469, %470 : vector<8x128xf32>
    %472 = math.tanh %471 : vector<8x128xf32>
    %473 = arith.mulf %466, %472 : vector<8x128xf32>
    %c48_203 = arith.constant 48 : index
    %c0_204 = arith.constant 0 : index
    %474 = vector.load %arg11[%c48_203, %c0_204] : memref<64x512xf32, #tpu.memory_space<vmem>>, vector<8x512xf32>
    %475 = arith.truncf %473 : vector<8x128xf32> to vector<8x128xbf16>
    %cst_205 = arith.constant dense<0.000000e+00> : vector<8x512xf32>
    %476 = tpu.matmul %475, %292, %cst_205 {dimension_numbers = #tpu.dot_dimension_numbers<[1], [0], [0], [1], [0, 0, 1, 1], [], []>} : vector<8x128xbf16>, vector<128x512xbf16>, vector<8x512xf32> -> vector<8x512xf32>
    %477 = arith.addf %474, %476 : vector<8x512xf32>
    %478 = vector.extract_strided_slice %477 {offsets = [0, 0], sizes = [8, 256], strides = [1, 1]} : vector<8x512xf32> to vector<8x256xf32>
    %479 = arith.negf %478 : vector<8x256xf32>
    %480 = math.exp %479 : vector<8x256xf32>
    %cst_206 = arith.constant 1.000000e+00 : f32
    %481 = vector.broadcast %cst_206 : f32 to vector<8x256xf32>
    %482 = arith.addf %481, %480 : vector<8x256xf32>
    %483 = arith.divf %481, %482 : vector<8x256xf32>
    %484 = vector.extract_strided_slice %477 {offsets = [0, 256], sizes = [8, 128], strides = [1, 1]} : vector<8x512xf32> to vector<8x128xf32>
    %485 = math.tanh %484 : vector<8x128xf32>
    %486 = vector.extract_strided_slice %477 {offsets = [0, 384], sizes = [8, 128], strides = [1, 1]} : vector<8x512xf32> to vector<8x128xf32>
    %487 = arith.negf %486 : vector<8x128xf32>
    %488 = math.exp %487 : vector<8x128xf32>
    %cst_207 = arith.constant 1.000000e+00 : f32
    %489 = vector.broadcast %cst_207 : f32 to vector<8x128xf32>
    %490 = arith.addf %489, %488 : vector<8x128xf32>
    %491 = arith.divf %489, %490 : vector<8x128xf32>
    %492 = vector.extract_strided_slice %483 {offsets = [0, 0], sizes = [8, 128], strides = [1, 1]} : vector<8x256xf32> to vector<8x128xf32>
    %493 = vector.extract_strided_slice %483 {offsets = [0, 128], sizes = [8, 128], strides = [1, 1]} : vector<8x256xf32> to vector<8x128xf32>
    %494 = arith.mulf %493, %471 : vector<8x128xf32>
    %495 = arith.mulf %492, %485 : vector<8x128xf32>
    %496 = arith.addf %494, %495 : vector<8x128xf32>
    %497 = math.tanh %496 : vector<8x128xf32>
    %498 = arith.mulf %491, %497 : vector<8x128xf32>
    %c56_208 = arith.constant 56 : index
    %c0_209 = arith.constant 0 : index
    %499 = vector.load %arg11[%c56_208, %c0_209] : memref<64x512xf32, #tpu.memory_space<vmem>>, vector<8x512xf32>
    %500 = arith.truncf %498 : vector<8x128xf32> to vector<8x128xbf16>
    %cst_210 = arith.constant dense<0.000000e+00> : vector<8x512xf32>
    %501 = tpu.matmul %500, %292, %cst_210 {dimension_numbers = #tpu.dot_dimension_numbers<[1], [0], [0], [1], [0, 0, 1, 1], [], []>} : vector<8x128xbf16>, vector<128x512xbf16>, vector<8x512xf32> -> vector<8x512xf32>
    %502 = arith.addf %499, %501 : vector<8x512xf32>
    %503 = vector.extract_strided_slice %502 {offsets = [0, 0], sizes = [8, 256], strides = [1, 1]} : vector<8x512xf32> to vector<8x256xf32>
    %504 = arith.negf %503 : vector<8x256xf32>
    %505 = math.exp %504 : vector<8x256xf32>
    %cst_211 = arith.constant 1.000000e+00 : f32
    %506 = vector.broadcast %cst_211 : f32 to vector<8x256xf32>
    %507 = arith.addf %506, %505 : vector<8x256xf32>
    %508 = arith.divf %506, %507 : vector<8x256xf32>
    %509 = vector.extract_strided_slice %502 {offsets = [0, 256], sizes = [8, 128], strides = [1, 1]} : vector<8x512xf32> to vector<8x128xf32>
    %510 = math.tanh %509 : vector<8x128xf32>
    %511 = vector.extract_strided_slice %502 {offsets = [0, 384], sizes = [8, 128], strides = [1, 1]} : vector<8x512xf32> to vector<8x128xf32>
    %512 = arith.negf %511 : vector<8x128xf32>
    %513 = math.exp %512 : vector<8x128xf32>
    %cst_212 = arith.constant 1.000000e+00 : f32
    %514 = vector.broadcast %cst_212 : f32 to vector<8x128xf32>
    %515 = arith.addf %514, %513 : vector<8x128xf32>
    %516 = arith.divf %514, %515 : vector<8x128xf32>
    %517 = vector.extract_strided_slice %508 {offsets = [0, 0], sizes = [8, 128], strides = [1, 1]} : vector<8x256xf32> to vector<8x128xf32>
    %518 = vector.extract_strided_slice %508 {offsets = [0, 128], sizes = [8, 128], strides = [1, 1]} : vector<8x256xf32> to vector<8x128xf32>
    %519 = arith.mulf %518, %496 : vector<8x128xf32>
    %520 = arith.mulf %517, %510 : vector<8x128xf32>
    %521 = arith.addf %519, %520 : vector<8x128xf32>
    %522 = math.tanh %521 : vector<8x128xf32>
    %523 = arith.mulf %516, %522 : vector<8x128xf32>
    %524 = arith.select %21, %523, %348 : vector<8x128xi1>, vector<8x128xf32>
    %525 = arith.truncf %524 : vector<8x128xf32> to vector<8x128xbf16>
    %c0_213 = arith.constant 0 : index
    %c0_214 = arith.constant 0 : index
    %526 = vector.load %arg8[%c0_213, %c0_214] : memref<128x4xbf16, #tpu.memory_space<vmem>>, vector<128x4xbf16>
    %cst_215 = arith.constant dense<0.000000e+00> : vector<8x4xf32>
    %527 = tpu.matmul %525, %526, %cst_215 {dimension_numbers = #tpu.dot_dimension_numbers<[1], [0], [0], [1], [0, 0, 1, 1], [], []>} : vector<8x128xbf16>, vector<128x4xbf16>, vector<8x4xf32> -> vector<8x4xf32>
    %c0_216 = arith.constant 0 : index
    %c0_217 = arith.constant 0 : index
    %528 = vector.load %arg9[%c0_216, %c0_217] : memref<1x4xf32, #tpu.memory_space<vmem>>, vector<1x4xf32>
    %529 = vector.broadcast %528 : vector<1x4xf32> to vector<8x4xf32>
    %530 = arith.addf %527, %529 : vector<8x4xf32>
    %c0_218 = arith.constant 0 : index
    %c0_219 = arith.constant 0 : index
    %531 = vector.load %arg10[%c0_218, %c0_219] : memref<8x4xf32, #tpu.memory_space<vmem>>, vector<8x4xf32>
    tpu.vector_store %arg10[%c0_218, %c0_219], %530 {strides = array<i32>} : memref<8x4xf32, #tpu.memory_space<vmem>>, vector<8x4xf32>,
    return
  }
  func.func @transform_0(%arg0: i32) -> (i32, i32) {
    %c0_i32 = arith.constant 0 : i32
    %c0_i32_0 = arith.constant 0 : i32
    return %arg0, %c0_i32 : i32, i32
  }
  func.func @transform_1(%arg0: i32) -> (i32, i32) {
    %c0_i32 = arith.constant 0 : i32
    %c0_i32_0 = arith.constant 0 : i32
    %c0_i32_1 = arith.constant 0 : i32
    return %c0_i32, %c0_i32_0 : i32, i32
  }
  func.func @transform_2(%arg0: i32) -> (i32, i32) {
    %c0_i32 = arith.constant 0 : i32
    %c0_i32_0 = arith.constant 0 : i32
    %c0_i32_1 = arith.constant 0 : i32
    return %c0_i32, %c0_i32_0 : i32, i32
  }
  func.func @transform_3(%arg0: i32) -> (i32, i32) {
    %c0_i32 = arith.constant 0 : i32
    %c0_i32_0 = arith.constant 0 : i32
    %c0_i32_1 = arith.constant 0 : i32
    return %c0_i32, %c0_i32_0 : i32, i32
  }
  func.func @transform_4(%arg0: i32) -> (i32, i32) {
    %c0_i32 = arith.constant 0 : i32
    %c0_i32_0 = arith.constant 0 : i32
    %c0_i32_1 = arith.constant 0 : i32
    return %c0_i32, %c0_i32_0 : i32, i32
  }
  func.func @transform_5(%arg0: i32) -> (i32, i32) {
    %c0_i32 = arith.constant 0 : i32
    %c0_i32_0 = arith.constant 0 : i32
    %c0_i32_1 = arith.constant 0 : i32
    return %c0_i32, %c0_i32_0 : i32, i32
  }
  func.func @transform_6(%arg0: i32) -> (i32, i32) {
    %c0_i32 = arith.constant 0 : i32
    %c0_i32_0 = arith.constant 0 : i32
    %c0_i32_1 = arith.constant 0 : i32
    return %c0_i32, %c0_i32_0 : i32, i32
  }
  func.func @transform_7(%arg0: i32) -> (i32, i32) {
    %c0_i32 = arith.constant 0 : i32
    %c0_i32_0 = arith.constant 0 : i32
    %c0_i32_1 = arith.constant 0 : i32
    return %c0_i32, %c0_i32_0 : i32, i32
  }
  func.func @transform_8(%arg0: i32) -> (i32, i32) {
    %c0_i32 = arith.constant 0 : i32
    %c0_i32_0 = arith.constant 0 : i32
    %c0_i32_1 = arith.constant 0 : i32
    return %c0_i32, %c0_i32_0 : i32, i32
  }
  func.func @transform_9(%arg0: i32) -> (i32, i32) {
    %c0_i32 = arith.constant 0 : i32
    %c0_i32_0 = arith.constant 0 : i32
    return %arg0, %c0_i32 : i32, i32
  }
}

</mosaic_0001>

<llo_original>
// kernel: tpu_custom_call.1
$region0: #{tpu_custom_call.1}
  #allocation0 [shape = 'u32[]', space=smem, size = 0x4, offset = 0x4, fixed_abs, tag = 'smem constant byte address 0x4 - core index']
  #allocation1 [shape = 'u32[144,128]{1,0:T(1,128)}', space=vmem, size = 0x12000, scoped, tag = 'internal scratch']
  #allocation2 [shape = 'f32[64,512]{1,0:T(8,128)}', space=vmem, size = 0x20000, scoped, tag = 'scratch operand']
  #allocation3 [shape = 'f32[64,128]{1,0:T(8,128)}', space=vmem, size = 0x8000, scoped, tag = 'scratch operand']
  %s0 = inlined_call_operand.vmem [shape: f32[64,8], index: 0, kind: input, shape index: {}]
  %s1 = inlined_call_operand.vmem [shape: bf16[8,512], index: 1, kind: input, shape index: {}]
  %s2 = inlined_call_operand.hbm [shape: bf16[128,512], index: 2, kind: input, shape index: {}]
  %s3 = inlined_call_operand.vmem [shape: f32[1,512], index: 3, kind: input, shape index: {}]
  %s4 = inlined_call_operand.hbm [shape: bf16[128,512], index: 4, kind: input, shape index: {}]
  %s5 = inlined_call_operand.hbm [shape: bf16[128,512], index: 5, kind: input, shape index: {}]
  %s6 = inlined_call_operand.vmem [shape: f32[1,512], index: 6, kind: input, shape index: {}]
  %s7 = inlined_call_operand.vmem [shape: bf16[128,4], index: 7, kind: input, shape index: {}]
  %s8 = inlined_call_operand.vmem [shape: f32[1,4], index: 8, kind: input, shape index: {}]
  %s9 = inlined_call_operand.vmem [shape: f32[8,4], index: 9, kind: output, shape index: {}]
  %s10 = sld [smem:[#allocation0]]
  $region58: #{tpu_custom_call.1} parent=0
    _
  %s12 = ssub.s32 1, %s10
  %s13 = scalar_select 0, %s12, %s10
  $region1: #{tpu_custom_call.1} parent=0
    #allocation4 [shape = 'u8[131072]{0}', space=vmem, size = 0x20000, scoped, tag = 'input window, operand 2, single buffered']
    #allocation5 [shape = 's32[1]{0}', space=sflag, size = 0x4, scoped, tag = 'scoped memory for tpu_custom_call.1']
    #allocation6 [shape = 'u8[131072]{0}', space=vmem, size = 0x20000, scoped, tag = 'input window, operand 4, single buffered']
    #allocation7 [shape = 's32[1]{0}', space=sflag, size = 0x4, scoped, tag = 'scoped memory for tpu_custom_call.1']
    #allocation8 [shape = 'u8[131072]{0}', space=vmem, size = 0x20000, scoped, tag = 'input window, operand 5, single buffered']
    %14 = vsyncpa [#allocation5], 0
    %15 = vsyncpa [#allocation7], 0
    // Predicated region
    $region2: #{tpu_custom_call.1} parent=1 // pred_check
      _
    $region3: #{tpu_custom_call.1} parent=1 // pred_check_branch
      %17 = sbr.rel (0) target = $region5
    $region4: #{tpu_custom_call.1} parent=1 // pred_region
      _
    $region5: #{tpu_custom_call.1} parent=1 // pred_fallthru
      _
    // Predicated region
    $region6: #{tpu_custom_call.1} parent=1 // pred_check
      _
    $region7: #{tpu_custom_call.1} parent=1 // pred_check_branch
      %19 = sbr.rel (0) target = $region9
    $region8: #{tpu_custom_call.1} parent=1 // pred_region
      _
    $region9: #{tpu_custom_call.1} parent=1 // pred_fallthru
      _
    // Predicated region
    $region10: #{tpu_custom_call.1} parent=1 // pred_check
      _
    $region11: #{tpu_custom_call.1} parent=1 // pred_check_branch
      %21 = sbr.rel (0) target = $region13
    $region12: #{tpu_custom_call.1} parent=1 // pred_region
      %s23 = ssub.s32 4096, 4096
      %24 = vsyncadd [#allocation5], %s23
      %s25 = sshll.u32 [#allocation4], 4
      %s26 = int_to_ptr.vmem [resolvable:$true] %s25
      %31 = dma.hbm_to_vmem [thread:$0]  %s2, 4096, %s26, [#allocation5], 256, 256, 16
    $region13: #{tpu_custom_call.1} parent=1 // pred_fallthru
      _
    // Predicated region
    $region14: #{tpu_custom_call.1} parent=1 // pred_check
      _
    $region15: #{tpu_custom_call.1} parent=1 // pred_check_branch
      %33 = sbr.rel (0) target = $region17
    $region16: #{tpu_custom_call.1} parent=1 // pred_region
      _
    $region17: #{tpu_custom_call.1} parent=1 // pred_fallthru
      _
    // Predicated region
    $region18: #{tpu_custom_call.1} parent=1 // pred_check
      _
    $region19: #{tpu_custom_call.1} parent=1 // pred_check_branch
      %35 = sbr.rel (0) target = $region21
    $region20: #{tpu_custom_call.1} parent=1 // pred_region
      %s37 = ssub.s32 4096, 4096
      %38 = vsyncadd [#allocation7], %s37
      %s39 = sshll.u32 [#allocation6], 4
      %s40 = int_to_ptr.vmem [resolvable:$true] %s39
      %45 = dma.hbm_to_vmem [thread:$0]  %s4, 4096, %s40, [#allocation7], 256, 256, 16
    $region21: #{tpu_custom_call.1} parent=1 // pred_fallthru
      _
    // Predicated region
    $region22: #{tpu_custom_call.1} parent=1 // pred_check
      _
    $region23: #{tpu_custom_call.1} parent=1 // pred_check_branch
      %47 = sbr.rel (0) target = $region25
    $region24: #{tpu_custom_call.1} parent=1 // pred_region
      %s49 = ssub.s32 4096, 4096
      %50 = vsyncadd [#allocation7], %s49
      %s51 = sshll.u32 [#allocation8], 4
      %s52 = int_to_ptr.vmem [resolvable:$true] %s51
      %57 = dma.hbm_to_vmem [thread:$0]  %s5, 4096, %s52, [#allocation7], 256, 256, 16
    $region25: #{tpu_custom_call.1} parent=1 // pred_fallthru
      _
    // Predicated region
    $region26: #{tpu_custom_call.1} parent=1 // pred_check
      _
    $region27: #{tpu_custom_call.1} parent=1 // pred_check_branch
      %59 = sbr.rel (0) target = $region29
    $region28: #{tpu_custom_call.1} parent=1 // pred_region
      _
    $region29: #{tpu_custom_call.1} parent=1 // pred_fallthru
      _
    // Predicated region
    $region30: #{tpu_custom_call.1} parent=1 // pred_check
      _
    $region31: #{tpu_custom_call.1} parent=1 // pred_check_branch
      %61 = sbr.rel (0) target = $region33
    $region32: #{tpu_custom_call.1} parent=1 // pred_region
      _
    $region33: #{tpu_custom_call.1} parent=1 // pred_fallthru
      _
    // Predicated region
    $region34: #{tpu_custom_call.1} parent=1 // pred_check
      _
    $region35: #{tpu_custom_call.1} parent=1 // pred_check_branch
      %63 = sbr.rel (0) target = $region37
    $region36: #{tpu_custom_call.1} parent=1 // pred_region
      _
    $region37: #{tpu_custom_call.1} parent=1 // pred_fallthru
      _
    // Predicated region
    $region38: #{tpu_custom_call.1} parent=1 // pred_check
      _
    $region39: #{tpu_custom_call.1} parent=1 // pred_check_branch
      %65 = sbr.rel (0) target = $region41
    $region40: #{tpu_custom_call.1} parent=1 // pred_region
      %66 = dma.done [#allocation5], 4096
    $region41: #{tpu_custom_call.1} parent=1 // pred_fallthru
      _
    // Predicated region
    $region42: #{tpu_custom_call.1} parent=1 // pred_check
      _
    $region43: #{tpu_custom_call.1} parent=1 // pred_check_branch
      %68 = sbr.rel (0) target = $region45
    $region44: #{tpu_custom_call.1} parent=1 // pred_region
      %69 = dma.done [#allocation7], 4096
    $region45: #{tpu_custom_call.1} parent=1 // pred_fallthru
      _
    // Predicated region
    $region46: #{tpu_custom_call.1} parent=1 // pred_check
      _
    $region47: #{tpu_custom_call.1} parent=1 // pred_check_branch
      %71 = sbr.rel (0) target = $region49
    $region48: #{tpu_custom_call.1} parent=1 // pred_region
      %72 = dma.done [#allocation7], 4096
    $region49: #{tpu_custom_call.1} parent=1 // pred_fallthru
      _
    %v74 = vlaneseq
    %v75 = vand.u32 %v74, 127
    %v76 = vadd.s32 %v75, 128
    %v77 = vadd.s32 %v75, 256
    %v78 = vadd.s32 %v75, 384
    %vm79 = vcmp.lt.s32.totalorder %v75, 0
    %v80 = vsub.s32 0, %v75
    %v81 = vsel %vm79, %v80, %v75
    %v82 = vshrl.u32 %v81, 7
    %v83 = vand.u32 %v81, 127
    %v84 = vsub.s32 0, %v83
    %v85 = vsel %vm79, %v84, %v83
    %vm86 = vcmp.lt.s32.totalorder %v76, 0
    %v87 = vsub.s32 0, %v76
    %v88 = vsel %vm86, %v87, %v76
    %v89 = vshrl.u32 %v88, 7
    %v90 = vand.u32 %v88, 127
    %v91 = vsub.s32 0, %v90
    %v92 = vsel %vm86, %v91, %v90
    %vm93 = vcmp.lt.s32.totalorder %v77, 0
    %v94 = vsub.s32 0, %v77
    %v95 = vsel %vm93, %v94, %v77
    %v96 = vshrl.u32 %v95, 7
    %v97 = vand.u32 %v95, 127
    %v98 = vsub.s32 0, %v97
    %v99 = vsel %vm93, %v98, %v97
    %vm100 = vcmp.lt.s32.totalorder %v78, 0
    %v101 = vsub.s32 0, %v78
    %v102 = vsel %vm100, %v101, %v78
    %v103 = vshrl.u32 %v102, 7
    %v104 = vand.u32 %v102, 127
    %v105 = vsub.s32 0, %v104
    %v106 = vsel %vm100, %v105, %v104
    %vm107 = vcmp.ne.s32.totalorder %v85, 0
    %vm108 = vcmp.ne.s32.totalorder %v92, 0
    %vm109 = vcmp.ne.s32.totalorder %v99, 0
    %vm110 = vcmp.ne.s32.totalorder %v106, 0
    %vm111 = vcmp.lt.s32.totalorder %v85, 0
    %vm112 = vcmp.lt.s32.totalorder %v92, 0
    %vm113 = vcmp.lt.s32.totalorder %v99, 0
    %vm114 = vcmp.lt.s32.totalorder %v106, 0
    %vm115 = vmand %vm111, %vm107
    %vm116 = vmand %vm112, %vm108
    %vm117 = vmand %vm113, %vm109
    %vm118 = vmand %vm114, %vm110
    %v119 = vadd.s32 %v85, 128
    %v120 = vadd.s32 %v92, 128
    %v121 = vadd.s32 %v99, 128
    %v122 = vadd.s32 %v106, 128
    %v123 = vsel %vm115, %v119, %v85
    %v124 = vsel %vm116, %v120, %v92
    %v125 = vsel %vm117, %v121, %v99
    %v126 = vsel %vm118, %v122, %v106
    %vm127 = vcmp.lt.s32.totalorder %v123, 64
    %vm128 = vcmp.lt.s32.totalorder %v124, 64
    %vm129 = vcmp.lt.s32.totalorder %v125, 64
    %vm130 = vcmp.lt.s32.totalorder %v126, 64
    %vm131 = vcmp.lt.s32.totalorder %v75, 64
    %v132 = vld [vmem:[%s0] sm:$0xff]
    %v133 = vld [vmem:[%s0 + $0x8] sm:$0xff]
    %v134 = vld [vmem:[%s0 + $0x10] sm:$0xff]
    %v135 = vld [vmem:[%s0 + $0x18] sm:$0xff]
    %v136 = vld [vmem:[%s0 + $0x20] sm:$0xff]
    %v137 = vld [vmem:[%s0 + $0x28] sm:$0xff]
    %v138 = vld [vmem:[%s0 + $0x30] sm:$0xff]
    %v139 = vld [vmem:[%s0 + $0x38] sm:$0xff]
    %v140 = vpack.c.bf16 %v133, %v132
    %v141 = vpack.c.bf16 %v135, %v134
    %v142 = vpack.c.bf16 %v137, %v136
    %v143 = vpack.c.bf16 %v139, %v138
    %v144 = vld [vmem:[%s1] sm:$0xff]
    %v145 = vld [vmem:[%s1 + $0x8] sm:$0xff]
    %v146 = vld [vmem:[#allocation4] sm:$0xff]
    %v147 = vld [vmem:[#allocation4 + $0x8] sm:$0xff]
    %v148 = vld [vmem:[#allocation4 + $0x10] sm:$0xff]
    %v149 = vld [vmem:[#allocation4 + $0x18] sm:$0xff]
    %v150 = vld [vmem:[#allocation4 + $0x20] sm:$0xff]
    %v151 = vld [vmem:[#allocation4 + $0x28] sm:$0xff]
    %v152 = vld [vmem:[#allocation4 + $0x30] sm:$0xff]
    %v153 = vld [vmem:[#allocation4 + $0x38] sm:$0xff]
    %v154 = vld [vmem:[#allocation4 + $0x40] sm:$0xff]
    %v155 = vld [vmem:[#allocation4 + $0x48] sm:$0xff]
    %v156 = vld [vmem:[#allocation4 + $0x50] sm:$0xff]
    %v157 = vld [vmem:[#allocation4 + $0x58] sm:$0xff]
    %v158 = vld [vmem:[#allocation4 + $0x60] sm:$0xff]
    %v159 = vld [vmem:[#allocation4 + $0x68] sm:$0xff]
    %v160 = vld [vmem:[#allocation4 + $0x70] sm:$0xff]
    %v161 = vld [vmem:[#allocation4 + $0x78] sm:$0xff]
    %v162 = vld [vmem:[#allocation4 + $0x80] sm:$0xff]
    %v163 = vld [vmem:[#allocation4 + $0x88] sm:$0xff]
    %v164 = vld [vmem:[#allocation4 + $0x90] sm:$0xff]
    %v165 = vld [vmem:[#allocation4 + $0x98] sm:$0xff]
    %v166 = vld [vmem:[#allocation4 + $0xa0] sm:$0xff]
    %v167 = vld [vmem:[#allocation4 + $0xa8] sm:$0xff]
    %v168 = vld [vmem:[#allocation4 + $0xb0] sm:$0xff]
    %v169 = vld [vmem:[#allocation4 + $0xb8] sm:$0xff]
    %v170 = vld [vmem:[#allocation4 + $0xc0] sm:$0xff]
    %v171 = vld [vmem:[#allocation4 + $0xc8] sm:$0xff]
    %v172 = vld [vmem:[#allocation4 + $0xd0] sm:$0xff]
    %v173 = vld [vmem:[#allocation4 + $0xd8] sm:$0xff]
    %v174 = vld [vmem:[#allocation4 + $0xe0] sm:$0xff]
    %v175 = vld [vmem:[#allocation4 + $0xe8] sm:$0xff]
    %v176 = vld [vmem:[#allocation4 + $0xf0] sm:$0xff]
    %v177 = vld [vmem:[#allocation4 + $0xf8] sm:$0xff]
    %v178 = vld [vmem:[%s3] sm:$0xf]
    %v180 = vlaneseq
    %v181 = vshrl.u32 %v180, 7
    %v182 = vsub.s32 0, %v181
    %v183 = vrot.slane %v178, %v182
    %v184 = vlaneseq
    %v185 = vshrl.u32 %v184, 7
    %v186 = vsub.s32 1, %v185
    %v187 = vrot.slane %v178, %v186
    %v188 = vlaneseq
    %v189 = vshrl.u32 %v188, 7
    %v190 = vsub.s32 2, %v189
    %v191 = vrot.slane %v178, %v190
    %v192 = vlaneseq
    %v193 = vshrl.u32 %v192, 7
    %v194 = vsub.s32 3, %v193
    %v195 = vrot.slane %v178, %v194
    %v202 = vunpack.c.l.b16 %v144
    %v203 = vunpack.c.h.b16 %v144
    %v204 = vunpack.c.l.b16 %v145
    %v205 = vunpack.c.h.b16 %v145
    %v206 = vpack.c.b16 %v202, %v202
    %v207 = vpack.c.b16 %v203, %v203
    %v208 = vpack.c.b16 %v204, %v204
    %v209 = vpack.c.b16 %v205, %v205
    %vm210 = vcmask 64512
    %v212 = vsel %vm210, %v140, 0
    %v215 = vsel %vm210, %v141, 0
    %v218 = vsel %vm210, %v142, 0
    %v221 = vsel %vm210, %v143, 0
    %vm223 = vcmask 1043456
    %v225 = vsel %vm223, %v206, 0
    %v228 = vsel %vm223, %v207, 0
    %v231 = vsel %vm223, %v208, 0
    %v234 = vsel %vm223, %v209, 0
    %236 = vmatprep.subr.bf16.mxu0 %v228
    %237 = vmatpush1.bf16.msra.mxu0 %v225
    %238 = vmatprep.subr.bf16.mxu0 0
    %239 = vmatpush1.bf16.msra.mxu0 0
    %240 = vmatprep.subr.bf16.mxu0 0
    %241 = vmatpush1.bf16.msra.mxu0 0
    %242 = vmatprep.subr.bf16.mxu0 0
    %243 = vmatpush1.bf16.msra.mxu0 0
    %244 = vmatprep.subr.bf16.mxu0 0
    %245 = vmatpush1.bf16.msra.mxu0 0
    %246 = vmatprep.subr.bf16.mxu0 0
    %247 = vmatpush1.bf16.msra.mxu0 0
    %248 = vmatprep.subr.bf16.mxu0 0
    %249 = vmatpush1.bf16.msra.mxu0 0
    %250 = vmatprep.subr.bf16.mxu0 0
    %251 = vmatpush1.bf16.msra.mxu0 0
    %252 = vmatprep.subr.bf16.mxu0 0
    %253 = vmatpush1.bf16.msra.mxu0 0
    %254 = vmatprep.subr.bf16.mxu0 0
    %255 = vmatpush1.bf16.msra.mxu0 0
    %256 = vmatprep.subr.bf16.mxu0 0
    %257 = vmatpush1.bf16.msra.mxu0 0
    %258 = vmatprep.subr.bf16.mxu0 0
    %259 = vmatpush1.bf16.msra.mxu0 0
    %260 = vmatprep.subr.bf16.mxu0 0
    %261 = vmatpush1.bf16.msra.mxu0 0
    %262 = vmatprep.subr.bf16.mxu0 0
    %263 = vmatpush1.bf16.msra.mxu0 0
    %264 = vmatprep.subr.bf16.mxu0 0
    %265 = vmatpush1.bf16.msra.mxu0 0
    %266 = vmatprep.subr.bf16.mxu0 0
    %267 = vmatpush1.bf16.msra.mxu0 0
    %268 = vmatprep.mubr.bf16.mxu0 0
    %269 = vmatmul.mubr.bf16.gmra.mrb[0].mxu0 %v212
    %v270 = vpop.f32.mrb[0].mxu0
    %v271 = vadd.f32 %v183, %v270
    %v272 = vpop.f32.mrb[0].mxu0
    %v273 = vadd.f32 %v187, %v272
    %v274 = vpop.f32.mrb[0].mxu0
    %v275 = vadd.f32 %v183, %v274
    %v276 = vpop.f32.mrb[0].mxu0
    %v277 = vadd.f32 %v187, %v276
    %278 = vmatprep.mubr.bf16.mxu0 0
    %279 = vmatmul.mubr.bf16.gmra.mrb[0].mxu0 %v215
    %v280 = vpop.f32.mrb[0].mxu0
    %v281 = vadd.f32 %v183, %v280
    %v282 = vpop.f32.mrb[0].mxu0
    %v283 = vadd.f32 %v187, %v282
    %v284 = vpop.f32.mrb[0].mxu0
    %v285 = vadd.f32 %v183, %v284
    %v286 = vpop.f32.mrb[0].mxu0
    %v287 = vadd.f32 %v187, %v286
    %288 = vmatprep.mubr.bf16.mxu0 0
    %289 = vmatmul.mubr.bf16.gmra.mrb[0].mxu0 %v218
    %v290 = vpop.f32.mrb[0].mxu0
    %v291 = vadd.f32 %v183, %v290
    %v292 = vpop.f32.mrb[0].mxu0
    %v293 = vadd.f32 %v187, %v292
    %v294 = vpop.f32.mrb[0].mxu0
    %v295 = vadd.f32 %v183, %v294
    %v296 = vpop.f32.mrb[0].mxu0
    %v297 = vadd.f32 %v187, %v296
    %298 = vmatprep.mubr.bf16.mxu0 0
    %299 = vmatmul.mubr.bf16.gmra.mrb[0].mxu0 %v221
    %v300 = vpop.f32.mrb[0].mxu0
    %v301 = vadd.f32 %v183, %v300
    %v302 = vpop.f32.mrb[0].mxu0
    %v303 = vadd.f32 %v187, %v302
    %v304 = vpop.f32.mrb[0].mxu0
    %v305 = vadd.f32 %v183, %v304
    %v306 = vpop.f32.mrb[0].mxu0
    %v307 = vadd.f32 %v187, %v306
    %308 = vdwg.mxu0
    %309 = vmatprep.subr.bf16.mxu0 %v234
    %310 = vmatpush1.bf16.msra.mxu0 %v231
    %311 = vmatprep.subr.bf16.mxu0 0
    %312 = vmatpush1.bf16.msra.mxu0 0
    %313 = vmatprep.subr.bf16.mxu0 0
    %314 = vmatpush1.bf16.msra.mxu0 0
    %315 = vmatprep.subr.bf16.mxu0 0
    %316 = vmatpush1.bf16.msra.mxu0 0
    %317 = vmatprep.subr.bf16.mxu0 0
    %318 = vmatpush1.bf16.msra.mxu0 0
    %319 = vmatprep.subr.bf16.mxu0 0
    %320 = vmatpush1.bf16.msra.mxu0 0
    %321 = vmatprep.subr.bf16.mxu0 0
    %322 = vmatpush1.bf16.msra.mxu0 0
    %323 = vmatprep.subr.bf16.mxu0 0
    %324 = vmatpush1.bf16.msra.mxu0 0
    %325 = vmatprep.subr.bf16.mxu0 0
    %326 = vmatpush1.bf16.msra.mxu0 0
    %327 = vmatprep.subr.bf16.mxu0 0
    %328 = vmatpush1.bf16.msra.mxu0 0
    %329 = vmatprep.subr.bf16.mxu0 0
    %330 = vmatpush1.bf16.msra.mxu0 0
    %331 = vmatprep.subr.bf16.mxu0 0
    %332 = vmatpush1.bf16.msra.mxu0 0
    %333 = vmatprep.subr.bf16.mxu0 0
    %334 = vmatpush1.bf16.msra.mxu0 0
    %335 = vmatprep.subr.bf16.mxu0 0
    %336 = vmatpush1.bf16.msra.mxu0 0
    %337 = vmatprep.subr.bf16.mxu0 0
    %338 = vmatpush1.bf16.msra.mxu0 0
    %339 = vmatprep.subr.bf16.mxu0 0
    %340 = vmatpush1.bf16.msra.mxu0 0
    %341 = vmatprep.mubr.bf16.mxu0 0
    %342 = vmatmul.mubr.bf16.gmra.mrb[0].mxu0 %v212
    %v343 = vpop.f32.mrb[0].mxu0
    %v344 = vadd.f32 %v191, %v343
    %v345 = vpop.f32.mrb[0].mxu0
    %v346 = vadd.f32 %v195, %v345
    %v347 = vpop.f32.mrb[0].mxu0
    %v348 = vadd.f32 %v191, %v347
    %v349 = vpop.f32.mrb[0].mxu0
    %v350 = vadd.f32 %v195, %v349
    %351 = vmatprep.mubr.bf16.mxu0 0
    %352 = vmatmul.mubr.bf16.gmra.mrb[0].mxu0 %v215
    %v353 = vpop.f32.mrb[0].mxu0
    %v354 = vadd.f32 %v191, %v353
    %v355 = vpop.f32.mrb[0].mxu0
    %v356 = vadd.f32 %v195, %v355
    %v357 = vpop.f32.mrb[0].mxu0
    %v358 = vadd.f32 %v191, %v357
    %v359 = vpop.f32.mrb[0].mxu0
    %v360 = vadd.f32 %v195, %v359
    %361 = vmatprep.mubr.bf16.mxu0 0
    %362 = vmatmul.mubr.bf16.gmra.mrb[0].mxu0 %v218
    %v363 = vpop.f32.mrb[0].mxu0
    %v364 = vadd.f32 %v191, %v363
    %v365 = vpop.f32.mrb[0].mxu0
    %v366 = vadd.f32 %v195, %v365
    %v367 = vpop.f32.mrb[0].mxu0
    %v368 = vadd.f32 %v191, %v367
    %v369 = vpop.f32.mrb[0].mxu0
    %v370 = vadd.f32 %v195, %v369
    %371 = vmatprep.mubr.bf16.mxu0 0
    %372 = vmatmul.mubr.bf16.gmra.mrb[0].mxu0 %v221
    %v373 = vpop.f32.mrb[0].mxu0
    %v374 = vadd.f32 %v191, %v373
    %v375 = vpop.f32.mrb[0].mxu0
    %v376 = vadd.f32 %v195, %v375
    %v377 = vpop.f32.mrb[0].mxu0
    %v378 = vadd.f32 %v191, %v377
    %v379 = vpop.f32.mrb[0].mxu0
    %v380 = vadd.f32 %v195, %v379
    %381 = vdwg.mxu0
    %382 = vst [vmem:[#allocation2] sm:$0xff] %v271
    %383 = vst [vmem:[#allocation2 + $0x8] sm:$0xff] %v273
    %384 = vst [vmem:[#allocation2 + $0x10] sm:$0xff] %v344
    %385 = vst [vmem:[#allocation2 + $0x18] sm:$0xff] %v346
    %386 = vst [vmem:[#allocation2 + $0x20] sm:$0xff] %v275
    %387 = vst [vmem:[#allocation2 + $0x28] sm:$0xff] %v277
    %388 = vst [vmem:[#allocation2 + $0x30] sm:$0xff] %v348
    %389 = vst [vmem:[#allocation2 + $0x38] sm:$0xff] %v350
    %390 = vst [vmem:[#allocation2 + $0x40] sm:$0xff] %v281
    %391 = vst [vmem:[#allocation2 + $0x48] sm:$0xff] %v283
    %392 = vst [vmem:[#allocation2 + $0x50] sm:$0xff] %v354
    %393 = vst [vmem:[#allocation2 + $0x58] sm:$0xff] %v356
    %394 = vst [vmem:[#allocation2 + $0x60] sm:$0xff] %v285
    %395 = vst [vmem:[#allocation2 + $0x68] sm:$0xff] %v287
    %396 = vst [vmem:[#allocation2 + $0x70] sm:$0xff] %v358
    %397 = vst [vmem:[#allocation2 + $0x78] sm:$0xff] %v360
    %398 = vst [vmem:[#allocation2 + $0x80] sm:$0xff] %v291
    %399 = vst [vmem:[#allocation2 + $0x88] sm:$0xff] %v293
    %400 = vst [vmem:[#allocation2 + $0x90] sm:$0xff] %v364
    %401 = vst [vmem:[#allocation2 + $0x98] sm:$0xff] %v366
    %402 = vst [vmem:[#allocation2 + $0xa0] sm:$0xff] %v295
    %403 = vst [vmem:[#allocation2 + $0xa8] sm:$0xff] %v297
    %404 = vst [vmem:[#allocation2 + $0xb0] sm:$0xff] %v368
    %405 = vst [vmem:[#allocation2 + $0xb8] sm:$0xff] %v370
    %406 = vst [vmem:[#allocation2 + $0xc0] sm:$0xff] %v301
    %407 = vst [vmem:[#allocation2 + $0xc8] sm:$0xff] %v303
    %408 = vst [vmem:[#allocation2 + $0xd0] sm:$0xff] %v374
    %409 = vst [vmem:[#allocation2 + $0xd8] sm:$0xff] %v376
    %410 = vst [vmem:[#allocation2 + $0xe0] sm:$0xff] %v305
    %411 = vst [vmem:[#allocation2 + $0xe8] sm:$0xff] %v307
    %412 = vst [vmem:[#allocation2 + $0xf0] sm:$0xff] %v378
    %413 = vst [vmem:[#allocation2 + $0xf8] sm:$0xff] %v380
    %v414 = vld [vmem:[#allocation2] sm:$0xff]
    %v415 = vld [vmem:[#allocation2 + $0x8] sm:$0xff]
    %v416 = vld [vmem:[#allocation2 + $0x10] sm:$0xff]
    %v417 = vld [vmem:[#allocation2 + $0x18] sm:$0xff]
    %v418 = vld [vmem:[#allocation2 + $0xe0] sm:$0xff]
    %v419 = vld [vmem:[#allocation2 + $0xe8] sm:$0xff]
    %v420 = vld [vmem:[#allocation2 + $0xf0] sm:$0xff]
    %v421 = vld [vmem:[#allocation2 + $0xf8] sm:$0xff]
    %v422 = vsel %vm127, %v414, %v418
    %v423 = vsel %vm128, %v415, %v419
    %v424 = vsel %vm129, %v416, %v420
    %v425 = vsel %vm130, %v417, %v421
    %426 = vst [vmem:[#allocation2] sm:$0xff] %v422
    %427 = vst [vmem:[#allocation2 + $0x8] sm:$0xff] %v423
    %428 = vst [vmem:[#allocation2 + $0x10] sm:$0xff] %v424
    %429 = vst [vmem:[#allocation2 + $0x18] sm:$0xff] %v425
    %v430 = vsel %vm127, %v418, %v414
    %v431 = vsel %vm128, %v419, %v415
    %v432 = vsel %vm129, %v420, %v416
    %v433 = vsel %vm130, %v421, %v417
    %434 = vst [vmem:[#allocation2 + $0xe0] sm:$0xff] %v430
    %435 = vst [vmem:[#allocation2 + $0xe8] sm:$0xff] %v431
    %436 = vst [vmem:[#allocation2 + $0xf0] sm:$0xff] %v432
    %437 = vst [vmem:[#allocation2 + $0xf8] sm:$0xff] %v433
    %v438 = vld [vmem:[#allocation2 + $0x20] sm:$0xff]
    %v439 = vld [vmem:[#allocation2 + $0x28] sm:$0xff]
    %v440 = vld [vmem:[#allocation2 + $0x30] sm:$0xff]
    %v441 = vld [vmem:[#allocation2 + $0x38] sm:$0xff]
    %v442 = vld [vmem:[#allocation2 + $0xc0] sm:$0xff]
    %v443 = vld [vmem:[#allocation2 + $0xc8] sm:$0xff]
    %v444 = vld [vmem:[#allocation2 + $0xd0] sm:$0xff]
    %v445 = vld [vmem:[#allocation2 + $0xd8] sm:$0xff]
    %v446 = vsel %vm127, %v438, %v442
    %v447 = vsel %vm128, %v439, %v443
    %v448 = vsel %vm129, %v440, %v444
    %v449 = vsel %vm130, %v441, %v445
    %450 = vst [vmem:[#allocation2 + $0x20] sm:$0xff] %v446
    %451 = vst [vmem:[#allocation2 + $0x28] sm:$0xff] %v447
    %452 = vst [vmem:[#allocation2 + $0x30] sm:$0xff] %v448
    %453 = vst [vmem:[#allocation2 + $0x38] sm:$0xff] %v449
    %v454 = vsel %vm127, %v442, %v438
    %v455 = vsel %vm128, %v443, %v439
    %v456 = vsel %vm129, %v444, %v440
    %v457 = vsel %vm130, %v445, %v441
    %458 = vst [vmem:[#allocation2 + $0xc0] sm:$0xff] %v454
    %459 = vst [vmem:[#allocation2 + $0xc8] sm:$0xff] %v455
    %460 = vst [vmem:[#allocation2 + $0xd0] sm:$0xff] %v456
    %461 = vst [vmem:[#allocation2 + $0xd8] sm:$0xff] %v457
    %v462 = vld [vmem:[#allocation2 + $0x40] sm:$0xff]
    %v463 = vld [vmem:[#allocation2 + $0x48] sm:$0xff]
    %v464 = vld [vmem:[#allocation2 + $0x50] sm:$0xff]
    %v465 = vld [vmem:[#allocation2 + $0x58] sm:$0xff]
    %v466 = vld [vmem:[#allocation2 + $0xa0] sm:$0xff]
    %v467 = vld [vmem:[#allocation2 + $0xa8] sm:$0xff]
    %v468 = vld [vmem:[#allocation2 + $0xb0] sm:$0xff]
    %v469 = vld [vmem:[#allocation2 + $0xb8] sm:$0xff]
    %v470 = vsel %vm127, %v462, %v466
    %v471 = vsel %vm128, %v463, %v467
    %v472 = vsel %vm129, %v464, %v468
    %v473 = vsel %vm130, %v465, %v469
    %474 = vst [vmem:[#allocation2 + $0x40] sm:$0xff] %v470
    %475 = vst [vmem:[#allocation2 + $0x48] sm:$0xff] %v471
    %476 = vst [vmem:[#allocation2 + $0x50] sm:$0xff] %v472
    %477 = vst [vmem:[#allocation2 + $0x58] sm:$0xff] %v473
    %v478 = vsel %vm127, %v466, %v462
    %v479 = vsel %vm128, %v467, %v463
    %v480 = vsel %vm129, %v468, %v464
    %v481 = vsel %vm130, %v469, %v465
    %482 = vst [vmem:[#allocation2 + $0xa0] sm:$0xff] %v478
    %483 = vst [vmem:[#allocation2 + $0xa8] sm:$0xff] %v479
    %484 = vst [vmem:[#allocation2 + $0xb0] sm:$0xff] %v480
    %485 = vst [vmem:[#allocation2 + $0xb8] sm:$0xff] %v481
    %v486 = vld [vmem:[#allocation2 + $0x60] sm:$0xff]
    %v487 = vld [vmem:[#allocation2 + $0x68] sm:$0xff]
    %v488 = vld [vmem:[#allocation2 + $0x70] sm:$0xff]
    %v489 = vld [vmem:[#allocation2 + $0x78] sm:$0xff]
    %v490 = vld [vmem:[#allocation2 + $0x80] sm:$0xff]
    %v491 = vld [vmem:[#allocation2 + $0x88] sm:$0xff]
    %v492 = vld [vmem:[#allocation2 + $0x90] sm:$0xff]
    %v493 = vld [vmem:[#allocation2 + $0x98] sm:$0xff]
    %v494 = vsel %vm127, %v486, %v490
    %v495 = vsel %vm128, %v487, %v491
    %v496 = vsel %vm129, %v488, %v492
    %v497 = vsel %vm130, %v489, %v493
    %498 = vst [vmem:[#allocation2 + $0x60] sm:$0xff] %v494
    %499 = vst [vmem:[#allocation2 + $0x68] sm:$0xff] %v495
    %500 = vst [vmem:[#allocation2 + $0x70] sm:$0xff] %v496
    %501 = vst [vmem:[#allocation2 + $0x78] sm:$0xff] %v497
    %v502 = vsel %vm127, %v490, %v486
    %v503 = vsel %vm128, %v491, %v487
    %v504 = vsel %vm129, %v492, %v488
    %v505 = vsel %vm130, %v493, %v489
    %506 = vst [vmem:[#allocation2 + $0x80] sm:$0xff] %v502
    %507 = vst [vmem:[#allocation2 + $0x88] sm:$0xff] %v503
    %508 = vst [vmem:[#allocation2 + $0x90] sm:$0xff] %v504
    %509 = vst [vmem:[#allocation2 + $0x98] sm:$0xff] %v505
    %v510 = vld [vmem:[#allocation2] sm:$0xff]
    %v511 = vld [vmem:[#allocation2 + $0x8] sm:$0xff]
    %v512 = vld [vmem:[#allocation2 + $0x10] sm:$0xff]
    %v513 = vld [vmem:[#allocation2 + $0x18] sm:$0xff]
    %v546 = vunpack.c.l.b16 %v146
    %v547 = vunpack.c.h.b16 %v146
    %v548 = vunpack.c.l.b16 %v147
    %v549 = vunpack.c.h.b16 %v147
    %v550 = vunpack.c.l.b16 %v148
    %v551 = vunpack.c.h.b16 %v148
    %v552 = vunpack.c.l.b16 %v149
    %v553 = vunpack.c.h.b16 %v149
    %v554 = vunpack.c.l.b16 %v150
    %v555 = vunpack.c.h.b16 %v150
    %v556 = vunpack.c.l.b16 %v151
    %v557 = vunpack.c.h.b16 %v151
    %v558 = vunpack.c.l.b16 %v152
    %v559 = vunpack.c.h.b16 %v152
    %v560 = vunpack.c.l.b16 %v153
    %v561 = vunpack.c.h.b16 %v153
    %v562 = vunpack.c.l.b16 %v154
    %v563 = vunpack.c.h.b16 %v154
    %v564 = vunpack.c.l.b16 %v155
    %v565 = vunpack.c.h.b16 %v155
    %v566 = vunpack.c.l.b16 %v156
    %v567 = vunpack.c.h.b16 %v156
    %v568 = vunpack.c.l.b16 %v157
    %v569 = vunpack.c.h.b16 %v157
    %v570 = vunpack.c.l.b16 %v158
    %v571 = vunpack.c.h.b16 %v158
    %v572 = vunpack.c.l.b16 %v159
    %v573 = vunpack.c.h.b16 %v159
    %v574 = vunpack.c.l.b16 %v160
    %v575 = vunpack.c.h.b16 %v160
    %v576 = vunpack.c.l.b16 %v161
    %v577 = vunpack.c.h.b16 %v161
    %v578 = vunpack.c.l.b16 %v162
    %v579 = vunpack.c.h.b16 %v162
    %v580 = vunpack.c.l.b16 %v163
    %v581 = vunpack.c.h.b16 %v163
    %v582 = vunpack.c.l.b16 %v164
    %v583 = vunpack.c.h.b16 %v164
    %v584 = vunpack.c.l.b16 %v165
    %v585 = vunpack.c.h.b16 %v165
    %v586 = vunpack.c.l.b16 %v166
    %v587 = vunpack.c.h.b16 %v166
    %v588 = vunpack.c.l.b16 %v167
    %v589 = vunpack.c.h.b16 %v167
    %v590 = vunpack.c.l.b16 %v168
    %v591 = vunpack.c.h.b16 %v168
    %v592 = vunpack.c.l.b16 %v169
    %v593 = vunpack.c.h.b16 %v169
    %v594 = vunpack.c.l.b16 %v170
    %v595 = vunpack.c.h.b16 %v170
    %v596 = vunpack.c.l.b16 %v171
    %v597 = vunpack.c.h.b16 %v171
    %v598 = vunpack.c.l.b16 %v172
    %v599 = vunpack.c.h.b16 %v172
    %v600 = vunpack.c.l.b16 %v173
    %v601 = vunpack.c.h.b16 %v173
    %v602 = vunpack.c.l.b16 %v174
    %v603 = vunpack.c.h.b16 %v174
    %v604 = vunpack.c.l.b16 %v175
    %v605 = vunpack.c.h.b16 %v175
    %v606 = vunpack.c.l.b16 %v176
    %v607 = vunpack.c.h.b16 %v176
    %v608 = vunpack.c.l.b16 %v177
    %v609 = vunpack.c.h.b16 %v177
    %v610 = vpack.c.b16 %v550, %v546
    %v611 = vpack.c.b16 %v551, %v547
    %v612 = vpack.c.b16 %v552, %v548
    %v613 = vpack.c.b16 %v553, %v549
    %v614 = vpack.c.b16 %v558, %v554
    %v615 = vpack.c.b16 %v559, %v555
    %v616 = vpack.c.b16 %v560, %v556
    %v617 = vpack.c.b16 %v561, %v557
    %v618 = vpack.c.b16 %v566, %v562
    %v619 = vpack.c.b16 %v567, %v563
    %v620 = vpack.c.b16 %v568, %v564
    %v621 = vpack.c.b16 %v569, %v565
    %v622 = vpack.c.b16 %v574, %v570
    %v623 = vpack.c.b16 %v575, %v571
    %v624 = vpack.c.b16 %v576, %v572
    %v625 = vpack.c.b16 %v577, %v573
    %v626 = vpack.c.b16 %v582, %v578
    %v627 = vpack.c.b16 %v583, %v579
    %v628 = vpack.c.b16 %v584, %v580
    %v629 = vpack.c.b16 %v585, %v581
    %v630 = vpack.c.b16 %v590, %v586
    %v631 = vpack.c.b16 %v591, %v587
    %v632 = vpack.c.b16 %v592, %v588
    %v633 = vpack.c.b16 %v593, %v589
    %v634 = vpack.c.b16 %v598, %v594
    %v635 = vpack.c.b16 %v599, %v595
    %v636 = vpack.c.b16 %v600, %v596
    %v637 = vpack.c.b16 %v601, %v597
    %v638 = vpack.c.b16 %v606, %v602
    %v639 = vpack.c.b16 %v607, %v603
    %v640 = vpack.c.b16 %v608, %v604
    %v641 = vpack.c.b16 %v609, %v605
    %674 = vmatprep.subr.bf16.mxu0 %v611
    %675 = vmatpush1.bf16.msra.mxu0 %v610
    %676 = vmatprep.subr.bf16.mxu0 %v615
    %677 = vmatpush1.bf16.msra.mxu0 %v614
    %678 = vmatprep.subr.bf16.mxu0 %v619
    %679 = vmatpush1.bf16.msra.mxu0 %v618
    %680 = vmatprep.subr.bf16.mxu0 %v623
    %681 = vmatpush1.bf16.msra.mxu0 %v622
    %682 = vmatprep.subr.bf16.mxu0 %v627
    %683 = vmatpush1.bf16.msra.mxu0 %v626
    %684 = vmatprep.subr.bf16.mxu0 %v631
    %685 = vmatpush1.bf16.msra.mxu0 %v630
    %686 = vmatprep.subr.bf16.mxu0 %v635
    %687 = vmatpush1.bf16.msra.mxu0 %v634
    %688 = vmatprep.subr.bf16.mxu0 %v639
    %689 = vmatpush1.bf16.msra.mxu0 %v638
    %690 = vmatprep.subr.bf16.mxu0 0
    %691 = vmatpush1.bf16.msra.mxu0 0
    %692 = vmatprep.subr.bf16.mxu0 0
    %693 = vmatpush1.bf16.msra.mxu0 0
    %694 = vmatprep.subr.bf16.mxu0 0
    %695 = vmatpush1.bf16.msra.mxu0 0
    %696 = vmatprep.subr.bf16.mxu0 0
    %697 = vmatpush1.bf16.msra.mxu0 0
    %698 = vmatprep.subr.bf16.mxu0 0
    %699 = vmatpush1.bf16.msra.mxu0 0
    %700 = vmatprep.subr.bf16.mxu0 0
    %701 = vmatpush1.bf16.msra.mxu0 0
    %702 = vmatprep.subr.bf16.mxu0 0
    %703 = vmatpush1.bf16.msra.mxu0 0
    %704 = vmatprep.subr.bf16.mxu0 0
    %705 = vmatpush1.bf16.msra.mxu0 0
    %706 = vmatprep.mubr.bf16.mxu0 0
    %707 = vmatmul.mubr.bf16.gmra.mrb[0].mxu0 0
    %v708 = vpop.f32.mrb[0].mxu0
    %v709 = vadd.f32 0.0, %v708
    %v710 = vpop.f32.mrb[0].mxu0
    %v711 = vadd.f32 0.0, %v710
    %v712 = vpop.f32.mrb[0].mxu0
    %v713 = vpop.f32.mrb[0].mxu0
    %714 = vdwg.mxu0
    %715 = vmatprep.subr.bf16.mxu0 %v613
    %716 = vmatpush1.bf16.msra.mxu0 %v612
    %717 = vmatprep.subr.bf16.mxu0 %v617
    %718 = vmatpush1.bf16.msra.mxu0 %v616
    %719 = vmatprep.subr.bf16.mxu0 %v621
    %720 = vmatpush1.bf16.msra.mxu0 %v620
    %721 = vmatprep.subr.bf16.mxu0 %v625
    %722 = vmatpush1.bf16.msra.mxu0 %v624
    %723 = vmatprep.subr.bf16.mxu0 %v629
    %724 = vmatpush1.bf16.msra.mxu0 %v628
    %725 = vmatprep.subr.bf16.mxu0 %v633
    %726 = vmatpush1.bf16.msra.mxu0 %v632
    %727 = vmatprep.subr.bf16.mxu0 %v637
    %728 = vmatpush1.bf16.msra.mxu0 %v636
    %729 = vmatprep.subr.bf16.mxu0 %v641
    %730 = vmatpush1.bf16.msra.mxu0 %v640
    %731 = vmatprep.subr.bf16.mxu0 0
    %732 = vmatpush1.bf16.msra.mxu0 0
    %733 = vmatprep.subr.bf16.mxu0 0
    %734 = vmatpush1.bf16.msra.mxu0 0
    %735 = vmatprep.subr.bf16.mxu0 0
    %736 = vmatpush1.bf16.msra.mxu0 0
    %737 = vmatprep.subr.bf16.mxu0 0
    %738 = vmatpush1.bf16.msra.mxu0 0
    %739 = vmatprep.subr.bf16.mxu0 0
    %740 = vmatpush1.bf16.msra.mxu0 0
    %741 = vmatprep.subr.bf16.mxu0 0
    %742 = vmatpush1.bf16.msra.mxu0 0
    %743 = vmatprep.subr.bf16.mxu0 0
    %744 = vmatpush1.bf16.msra.mxu0 0
    %745 = vmatprep.subr.bf16.mxu0 0
    %746 = vmatpush1.bf16.msra.mxu0 0
    %747 = vmatprep.mubr.bf16.mxu0 0
    %748 = vmatmul.mubr.bf16.gmra.mrb[0].mxu0 0
    %v749 = vpop.f32.mrb[0].mxu0
    %v750 = vadd.f32 0.0, %v749
    %v751 = vpop.f32.mrb[0].mxu0
    %v752 = vadd.f32 0.0, %v751
    %v753 = vpop.f32.mrb[0].mxu0
    %v754 = vpop.f32.mrb[0].mxu0
    %755 = vdwg.mxu0
    %v756 = vadd.f32 %v510, %v709
    %v757 = vadd.f32 %v511, %v711
    %v758 = vadd.f32 %v512, %v750
    %v759 = vadd.f32 %v513, %v752
    %v760 = vxor.u32 %v756, 2147483648
    %v761 = vxor.u32 %v757, 2147483648
    %v762 = vmul.f32 %v760, 1.442695
    %v763 = vpow.pop %v762
    %v764 = vmul.f32 %v761, 1.442695
    %v765 = vpow.pop %v764
    %v766 = vadd.f32 %v763, 1.0
    %v767 = vadd.f32 %v765, 1.0
    %v768 = vrcp.pop %v766
    %v769 = vmul.f32 1.0, %v768
    %v770 = vrcp.pop %v767
    %v771 = vmul.f32 1.0, %v770
    %v772 = vtanh.pop %v758
    %v773 = vxor.u32 %v759, 2147483648
    %v774 = vmul.f32 %v773, 1.442695
    %v775 = vpow.pop %v774
    %v776 = vadd.f32 %v775, 1.0
    %v777 = vrcp.pop %v776
    %v778 = vmul.f32 1.0, %v777
    %v779 = vmul.f32 %v771, 0.0
    %v780 = vmul.f32 %v769, %v772
    %v781 = vadd.f32 %v779, %v780
    %v782 = vtanh.pop %v781
    %v783 = vmul.f32 %v778, %v782
    %784 = vst [vmem:[#allocation3] sm:$0xff] %v783
    %v785 = vld [vmem:[#allocation2 + $0x20] sm:$0xff]
    %v786 = vld [vmem:[#allocation2 + $0x28] sm:$0xff]
    %v787 = vld [vmem:[#allocation2 + $0x30] sm:$0xff]
    %v788 = vld [vmem:[#allocation2 + $0x38] sm:$0xff]
    %v789 = vpack.c.bf16 %v783, %v783
    %790 = vmatprep.subr.bf16.mxu0 %v611
    %791 = vmatpush1.bf16.msra.mxu0 %v610
    %792 = vmatprep.subr.bf16.mxu0 %v615
    %793 = vmatpush1.bf16.msra.mxu0 %v614
    %794 = vmatprep.subr.bf16.mxu0 %v619
    %795 = vmatpush1.bf16.msra.mxu0 %v618
    %796 = vmatprep.subr.bf16.mxu0 %v623
    %797 = vmatpush1.bf16.msra.mxu0 %v622
    %798 = vmatprep.subr.bf16.mxu0 %v627
    %799 = vmatpush1.bf16.msra.mxu0 %v626
    %800 = vmatprep.subr.bf16.mxu0 %v631
    %801 = vmatpush1.bf16.msra.mxu0 %v630
    %802 = vmatprep.subr.bf16.mxu0 %v635
    %803 = vmatpush1.bf16.msra.mxu0 %v634
    %804 = vmatprep.subr.bf16.mxu0 %v639
    %805 = vmatpush1.bf16.msra.mxu0 %v638
    %806 = vmatprep.subr.bf16.mxu0 0
    %807 = vmatpush1.bf16.msra.mxu0 0
    %808 = vmatprep.subr.bf16.mxu0 0
    %809 = vmatpush1.bf16.msra.mxu0 0
    %810 = vmatprep.subr.bf16.mxu0 0
    %811 = vmatpush1.bf16.msra.mxu0 0
    %812 = vmatprep.subr.bf16.mxu0 0
    %813 = vmatpush1.bf16.msra.mxu0 0
    %814 = vmatprep.subr.bf16.mxu0 0
    %815 = vmatpush1.bf16.msra.mxu0 0
    %816 = vmatprep.subr.bf16.mxu0 0
    %817 = vmatpush1.bf16.msra.mxu0 0
    %818 = vmatprep.subr.bf16.mxu0 0
    %819 = vmatpush1.bf16.msra.mxu0 0
    %820 = vmatprep.subr.bf16.mxu0 0
    %821 = vmatpush1.bf16.msra.mxu0 0
    %822 = vmatprep.mubr.bf16.mxu0 0
    %823 = vmatmul.mubr.bf16.gmra.mrb[0].mxu0 %v789
    %v824 = vpop.f32.mrb[0].mxu0
    %v825 = vadd.f32 0.0, %v824
    %v826 = vpop.f32.mrb[0].mxu0
    %v827 = vadd.f32 0.0, %v826
    %v828 = vpop.f32.mrb[0].mxu0
    %v829 = vpop.f32.mrb[0].mxu0
    %830 = vdwg.mxu0
    %831 = vmatprep.subr.bf16.mxu0 %v613
    %832 = vmatpush1.bf16.msra.mxu0 %v612
    %833 = vmatprep.subr.bf16.mxu0 %v617
    %834 = vmatpush1.bf16.msra.mxu0 %v616
    %835 = vmatprep.subr.bf16.mxu0 %v621
    %836 = vmatpush1.bf16.msra.mxu0 %v620
    %837 = vmatprep.subr.bf16.mxu0 %v625
    %838 = vmatpush1.bf16.msra.mxu0 %v624
    %839 = vmatprep.subr.bf16.mxu0 %v629
    %840 = vmatpush1.bf16.msra.mxu0 %v628
    %841 = vmatprep.subr.bf16.mxu0 %v633
    %842 = vmatpush1.bf16.msra.mxu0 %v632
    %843 = vmatprep.subr.bf16.mxu0 %v637
    %844 = vmatpush1.bf16.msra.mxu0 %v636
    %845 = vmatprep.subr.bf16.mxu0 %v641
    %846 = vmatpush1.bf16.msra.mxu0 %v640
    %847 = vmatprep.subr.bf16.mxu0 0
    %848 = vmatpush1.bf16.msra.mxu0 0
    %849 = vmatprep.subr.bf16.mxu0 0
    %850 = vmatpush1.bf16.msra.mxu0 0
    %851 = vmatprep.subr.bf16.mxu0 0
    %852 = vmatpush1.bf16.msra.mxu0 0
    %853 = vmatprep.subr.bf16.mxu0 0
    %854 = vmatpush1.bf16.msra.mxu0 0
    %855 = vmatprep.subr.bf16.mxu0 0
    %856 = vmatpush1.bf16.msra.mxu0 0
    %857 = vmatprep.subr.bf16.mxu0 0
    %858 = vmatpush1.bf16.msra.mxu0 0
    %859 = vmatprep.subr.bf16.mxu0 0
    %860 = vmatpush1.bf16.msra.mxu0 0
    %861 = vmatprep.subr.bf16.mxu0 0
    %862 = vmatpush1.bf16.msra.mxu0 0
    %863 = vmatprep.mubr.bf16.mxu0 0
    %864 = vmatmul.mubr.bf16.gmra.mrb[0].mxu0 %v789
    %v865 = vpop.f32.mrb[0].mxu0
    %v866 = vadd.f32 0.0, %v865
    %v867 = vpop.f32.mrb[0].mxu0
    %v868 = vadd.f32 0.0, %v867
    %v869 = vpop.f32.mrb[0].mxu0
    %v870 = vpop.f32.mrb[0].mxu0
    %871 = vdwg.mxu0
    %v872 = vadd.f32 %v785, %v825
    %v873 = vadd.f32 %v786, %v827
    %v874 = vadd.f32 %v787, %v866
    %v875 = vadd.f32 %v788, %v868
    %v876 = vxor.u32 %v872, 2147483648
    %v877 = vxor.u32 %v873, 2147483648
    %v878 = vmul.f32 %v876, 1.442695
    %v879 = vpow.pop %v878
    %v880 = vmul.f32 %v877, 1.442695
    %v881 = vpow.pop %v880
    %v882 = vadd.f32 %v879, 1.0
    %v883 = vadd.f32 %v881, 1.0
    %v884 = vrcp.pop %v882
    %v885 = vmul.f32 1.0, %v884
    %v886 = vrcp.pop %v883
    %v887 = vmul.f32 1.0, %v886
    %v888 = vtanh.pop %v874
    %v889 = vxor.u32 %v875, 2147483648
    %v890 = vmul.f32 %v889, 1.442695
    %v891 = vpow.pop %v890
    %v892 = vadd.f32 %v891, 1.0
    %v893 = vrcp.pop %v892
    %v894 = vmul.f32 1.0, %v893
    %v895 = vmul.f32 %v887, %v781
    %v896 = vmul.f32 %v885, %v888
    %v897 = vadd.f32 %v895, %v896
    %v898 = vtanh.pop %v897
    %v899 = vmul.f32 %v894, %v898
    %900 = vst [vmem:[#allocation3 + $0x8] sm:$0xff] %v899
    %v901 = vld [vmem:[#allocation2 + $0x40] sm:$0xff]
    %v902 = vld [vmem:[#allocation2 + $0x48] sm:$0xff]
    %v903 = vld [vmem:[#allocation2 + $0x50] sm:$0xff]
    %v904 = vld [vmem:[#allocation2 + $0x58] sm:$0xff]
    %v905 = vpack.c.bf16 %v899, %v899
    %906 = vmatprep.subr.bf16.mxu0 %v611
    %907 = vmatpush1.bf16.msra.mxu0 %v610
    %908 = vmatprep.subr.bf16.mxu0 %v615
    %909 = vmatpush1.bf16.msra.mxu0 %v614
    %910 = vmatprep.subr.bf16.mxu0 %v619
    %911 = vmatpush1.bf16.msra.mxu0 %v618
    %912 = vmatprep.subr.bf16.mxu0 %v623
    %913 = vmatpush1.bf16.msra.mxu0 %v622
    %914 = vmatprep.subr.bf16.mxu0 %v627
    %915 = vmatpush1.bf16.msra.mxu0 %v626
    %916 = vmatprep.subr.bf16.mxu0 %v631
    %917 = vmatpush1.bf16.msra.mxu0 %v630
    %918 = vmatprep.subr.bf16.mxu0 %v635
    %919 = vmatpush1.bf16.msra.mxu0 %v634
    %920 = vmatprep.subr.bf16.mxu0 %v639
    %921 = vmatpush1.bf16.msra.mxu0 %v638
    %922 = vmatprep.subr.bf16.mxu0 0
    %923 = vmatpush1.bf16.msra.mxu0 0
    %924 = vmatprep.subr.bf16.mxu0 0
    %925 = vmatpush1.bf16.msra.mxu0 0
    %926 = vmatprep.subr.bf16.mxu0 0
    %927 = vmatpush1.bf16.msra.mxu0 0
    %928 = vmatprep.subr.bf16.mxu0 0
    %929 = vmatpush1.bf16.msra.mxu0 0
    %930 = vmatprep.subr.bf16.mxu0 0
    %931 = vmatpush1.bf16.msra.mxu0 0
    %932 = vmatprep.subr.bf16.mxu0 0
    %933 = vmatpush1.bf16.msra.mxu0 0
    %934 = vmatprep.subr.bf16.mxu0 0
    %935 = vmatpush1.bf16.msra.mxu0 0
    %936 = vmatprep.subr.bf16.mxu0 0
    %937 = vmatpush1.bf16.msra.mxu0 0
    %938 = vmatprep.mubr.bf16.mxu0 0
    %939 = vmatmul.mubr.bf16.gmra.mrb[0].mxu0 %v905
    %v940 = vpop.f32.mrb[0].mxu0
    %v941 = vadd.f32 0.0, %v940
    %v942 = vpop.f32.mrb[0].mxu0
    %v943 = vadd.f32 0.0, %v942
    %v944 = vpop.f32.mrb[0].mxu0
    %v945 = vpop.f32.mrb[0].mxu0
    %946 = vdwg.mxu0
    %947 = vmatprep.subr.bf16.mxu0 %v613
    %948 = vmatpush1.bf16.msra.mxu0 %v612
    %949 = vmatprep.subr.bf16.mxu0 %v617
    %950 = vmatpush1.bf16.msra.mxu0 %v616
    %951 = vmatprep.subr.bf16.mxu0 %v621
    %952 = vmatpush1.bf16.msra.mxu0 %v620
    %953 = vmatprep.subr.bf16.mxu0 %v625
    %954 = vmatpush1.bf16.msra.mxu0 %v624
    %955 = vmatprep.subr.bf16.mxu0 %v629
    %956 = vmatpush1.bf16.msra.mxu0 %v628
    %957 = vmatprep.subr.bf16.mxu0 %v633
    %958 = vmatpush1.bf16.msra.mxu0 %v632
    %959 = vmatprep.subr.bf16.mxu0 %v637
    %960 = vmatpush1.bf16.msra.mxu0 %v636
    %961 = vmatprep.subr.bf16.mxu0 %v641
    %962 = vmatpush1.bf16.msra.mxu0 %v640
    %963 = vmatprep.subr.bf16.mxu0 0
    %964 = vmatpush1.bf16.msra.mxu0 0
    %965 = vmatprep.subr.bf16.mxu0 0
    %966 = vmatpush1.bf16.msra.mxu0 0
    %967 = vmatprep.subr.bf16.mxu0 0
    %968 = vmatpush1.bf16.msra.mxu0 0
    %969 = vmatprep.subr.bf16.mxu0 0
    %970 = vmatpush1.bf16.msra.mxu0 0
    %971 = vmatprep.subr.bf16.mxu0 0
    %972 = vmatpush1.bf16.msra.mxu0 0
    %973 = vmatprep.subr.bf16.mxu0 0
    %974 = vmatpush1.bf16.msra.mxu0 0
    %975 = vmatprep.subr.bf16.mxu0 0
    %976 = vmatpush1.bf16.msra.mxu0 0
    %977 = vmatprep.subr.bf16.mxu0 0
    %978 = vmatpush1.bf16.msra.mxu0 0
    %979 = vmatprep.mubr.bf16.mxu0 0
    %980 = vmatmul.mubr.bf16.gmra.mrb[0].mxu0 %v905
    %v981 = vpop.f32.mrb[0].mxu0
    %v982 = vadd.f32 0.0, %v981
    %v983 = vpop.f32.mrb[0].mxu0
    %v984 = vadd.f32 0.0, %v983
    %v985 = vpop.f32.mrb[0].mxu0
    %v986 = vpop.f32.mrb[0].mxu0
    %987 = vdwg.mxu0
    %v988 = vadd.f32 %v901, %v941
    %v989 = vadd.f32 %v902, %v943
    %v990 = vadd.f32 %v903, %v982
    %v991 = vadd.f32 %v904, %v984
    %v992 = vxor.u32 %v988, 2147483648
    %v993 = vxor.u32 %v989, 2147483648
    %v994 = vmul.f32 %v992, 1.442695
    %v995 = vpow.pop %v994
    %v996 = vmul.f32 %v993, 1.442695
    %v997 = vpow.pop %v996
    %v998 = vadd.f32 %v995, 1.0
    %v999 = vadd.f32 %v997, 1.0
    %v1000 = vrcp.pop %v998
    %v1001 = vmul.f32 1.0, %v1000
    %v1002 = vrcp.pop %v999
    %v1003 = vmul.f32 1.0, %v1002
    %v1004 = vtanh.pop %v990
    %v1005 = vxor.u32 %v991, 2147483648
    %v1006 = vmul.f32 %v1005, 1.442695
    %v1007 = vpow.pop %v1006
    %v1008 = vadd.f32 %v1007, 1.0
    %v1009 = vrcp.pop %v1008
    %v1010 = vmul.f32 1.0, %v1009
    %v1011 = vmul.f32 %v1003, %v897
    %v1012 = vmul.f32 %v1001, %v1004
    %v1013 = vadd.f32 %v1011, %v1012
    %v1014 = vtanh.pop %v1013
    %v1015 = vmul.f32 %v1010, %v1014
    %1016 = vst [vmem:[#allocation3 + $0x10] sm:$0xff] %v1015
    %v1017 = vld [vmem:[#allocation2 + $0x60] sm:$0xff]
    %v1018 = vld [vmem:[#allocation2 + $0x68] sm:$0xff]
    %v1019 = vld [vmem:[#allocation2 + $0x70] sm:$0xff]
    %v1020 = vld [vmem:[#allocation2 + $0x78] sm:$0xff]
    %v1021 = vpack.c.bf16 %v1015, %v1015
    %1022 = vmatprep.subr.bf16.mxu0 %v611
    %1023 = vmatpush1.bf16.msra.mxu0 %v610
    %1024 = vmatprep.subr.bf16.mxu0 %v615
    %1025 = vmatpush1.bf16.msra.mxu0 %v614
    %1026 = vmatprep.subr.bf16.mxu0 %v619
    %1027 = vmatpush1.bf16.msra.mxu0 %v618
    %1028 = vmatprep.subr.bf16.mxu0 %v623
    %1029 = vmatpush1.bf16.msra.mxu0 %v622
    %1030 = vmatprep.subr.bf16.mxu0 %v627
    %1031 = vmatpush1.bf16.msra.mxu0 %v626
    %1032 = vmatprep.subr.bf16.mxu0 %v631
    %1033 = vmatpush1.bf16.msra.mxu0 %v630
    %1034 = vmatprep.subr.bf16.mxu0 %v635
    %1035 = vmatpush1.bf16.msra.mxu0 %v634
    %1036 = vmatprep.subr.bf16.mxu0 %v639
    %1037 = vmatpush1.bf16.msra.mxu0 %v638
    %1038 = vmatprep.subr.bf16.mxu0 0
    %1039 = vmatpush1.bf16.msra.mxu0 0
    %1040 = vmatprep.subr.bf16.mxu0 0
    %1041 = vmatpush1.bf16.msra.mxu0 0
    %1042 = vmatprep.subr.bf16.mxu0 0
    %1043 = vmatpush1.bf16.msra.mxu0 0
    %1044 = vmatprep.subr.bf16.mxu0 0
    %1045 = vmatpush1.bf16.msra.mxu0 0
    %1046 = vmatprep.subr.bf16.mxu0 0
    %1047 = vmatpush1.bf16.msra.mxu0 0
    %1048 = vmatprep.subr.bf16.mxu0 0
    %1049 = vmatpush1.bf16.msra.mxu0 0
    %1050 = vmatprep.subr.bf16.mxu0 0
    %1051 = vmatpush1.bf16.msra.mxu0 0
    %1052 = vmatprep.subr.bf16.mxu0 0
    %1053 = vmatpush1.bf16.msra.mxu0 0
    %1054 = vmatprep.mubr.bf16.mxu0 0
    %1055 = vmatmul.mubr.bf16.gmra.mrb[0].mxu0 %v1021
    %v1056 = vpop.f32.mrb[0].mxu0
    %v1057 = vadd.f32 0.0, %v1056
    %v1058 = vpop.f32.mrb[0].mxu0
    %v1059 = vadd.f32 0.0, %v1058
    %v1060 = vpop.f32.mrb[0].mxu0
    %v1061 = vpop.f32.mrb[0].mxu0
    %1062 = vdwg.mxu0
    %1063 = vmatprep.subr.bf16.mxu0 %v613
    %1064 = vmatpush1.bf16.msra.mxu0 %v612
    %1065 = vmatprep.subr.bf16.mxu0 %v617
    %1066 = vmatpush1.bf16.msra.mxu0 %v616
    %1067 = vmatprep.subr.bf16.mxu0 %v621
    %1068 = vmatpush1.bf16.msra.mxu0 %v620
    %1069 = vmatprep.subr.bf16.mxu0 %v625
    %1070 = vmatpush1.bf16.msra.mxu0 %v624
    %1071 = vmatprep.subr.bf16.mxu0 %v629
    %1072 = vmatpush1.bf16.msra.mxu0 %v628
    %1073 = vmatprep.subr.bf16.mxu0 %v633
    %1074 = vmatpush1.bf16.msra.mxu0 %v632
    %1075 = vmatprep.subr.bf16.mxu0 %v637
    %1076 = vmatpush1.bf16.msra.mxu0 %v636
    %1077 = vmatprep.subr.bf16.mxu0 %v641
    %1078 = vmatpush1.bf16.msra.mxu0 %v640
    %1079 = vmatprep.subr.bf16.mxu0 0
    %1080 = vmatpush1.bf16.msra.mxu0 0
    %1081 = vmatprep.subr.bf16.mxu0 0
    %1082 = vmatpush1.bf16.msra.mxu0 0
    %1083 = vmatprep.subr.bf16.mxu0 0
    %1084 = vmatpush1.bf16.msra.mxu0 0
    %1085 = vmatprep.subr.bf16.mxu0 0
    %1086 = vmatpush1.bf16.msra.mxu0 0
    %1087 = vmatprep.subr.bf16.mxu0 0
    %1088 = vmatpush1.bf16.msra.mxu0 0
    %1089 = vmatprep.subr.bf16.mxu0 0
    %1090 = vmatpush1.bf16.msra.mxu0 0
    %1091 = vmatprep.subr.bf16.mxu0 0
    %1092 = vmatpush1.bf16.msra.mxu0 0
    %1093 = vmatprep.subr.bf16.mxu0 0
    %1094 = vmatpush1.bf16.msra.mxu0 0
    %1095 = vmatprep.mubr.bf16.mxu0 0
    %1096 = vmatmul.mubr.bf16.gmra.mrb[0].mxu0 %v1021
    %v1097 = vpop.f32.mrb[0].mxu0
    %v1098 = vadd.f32 0.0, %v1097
    %v1099 = vpop.f32.mrb[0].mxu0
    %v1100 = vadd.f32 0.0, %v1099
    %v1101 = vpop.f32.mrb[0].mxu0
    %v1102 = vpop.f32.mrb[0].mxu0
    %1103 = vdwg.mxu0
    %v1104 = vadd.f32 %v1017, %v1057
    %v1105 = vadd.f32 %v1018, %v1059
    %v1106 = vadd.f32 %v1019, %v1098
    %v1107 = vadd.f32 %v1020, %v1100
    %v1108 = vxor.u32 %v1104, 2147483648
    %v1109 = vxor.u32 %v1105, 2147483648
    %v1110 = vmul.f32 %v1108, 1.442695
    %v1111 = vpow.pop %v1110
    %v1112 = vmul.f32 %v1109, 1.442695
    %v1113 = vpow.pop %v1112
    %v1114 = vadd.f32 %v1111, 1.0
    %v1115 = vadd.f32 %v1113, 1.0
    %v1116 = vrcp.pop %v1114
    %v1117 = vmul.f32 1.0, %v1116
    %v1118 = vrcp.pop %v1115
    %v1119 = vmul.f32 1.0, %v1118
    %v1120 = vtanh.pop %v1106
    %v1121 = vxor.u32 %v1107, 2147483648
    %v1122 = vmul.f32 %v1121, 1.442695
    %v1123 = vpow.pop %v1122
    %v1124 = vadd.f32 %v1123, 1.0
    %v1125 = vrcp.pop %v1124
    %v1126 = vmul.f32 1.0, %v1125
    %v1127 = vmul.f32 %v1119, %v1013
    %v1128 = vmul.f32 %v1117, %v1120
    %v1129 = vadd.f32 %v1127, %v1128
    %v1130 = vtanh.pop %v1129
    %v1131 = vmul.f32 %v1126, %v1130
    %1132 = vst [vmem:[#allocation3 + $0x18] sm:$0xff] %v1131
    %v1133 = vld [vmem:[#allocation2 + $0x80] sm:$0xff]
    %v1134 = vld [vmem:[#allocation2 + $0x88] sm:$0xff]
    %v1135 = vld [vmem:[#allocation2 + $0x90] sm:$0xff]
    %v1136 = vld [vmem:[#allocation2 + $0x98] sm:$0xff]
    %v1137 = vpack.c.bf16 %v1131, %v1131
    %1138 = vmatprep.subr.bf16.mxu0 %v611
    %1139 = vmatpush1.bf16.msra.mxu0 %v610
    %1140 = vmatprep.subr.bf16.mxu0 %v615
    %1141 = vmatpush1.bf16.msra.mxu0 %v614
    %1142 = vmatprep.subr.bf16.mxu0 %v619
    %1143 = vmatpush1.bf16.msra.mxu0 %v618
    %1144 = vmatprep.subr.bf16.mxu0 %v623
    %1145 = vmatpush1.bf16.msra.mxu0 %v622
    %1146 = vmatprep.subr.bf16.mxu0 %v627
    %1147 = vmatpush1.bf16.msra.mxu0 %v626
    %1148 = vmatprep.subr.bf16.mxu0 %v631
    %1149 = vmatpush1.bf16.msra.mxu0 %v630
    %1150 = vmatprep.subr.bf16.mxu0 %v635
    %1151 = vmatpush1.bf16.msra.mxu0 %v634
    %1152 = vmatprep.subr.bf16.mxu0 %v639
    %1153 = vmatpush1.bf16.msra.mxu0 %v638
    %1154 = vmatprep.subr.bf16.mxu0 0
    %1155 = vmatpush1.bf16.msra.mxu0 0
    %1156 = vmatprep.subr.bf16.mxu0 0
    %1157 = vmatpush1.bf16.msra.mxu0 0
    %1158 = vmatprep.subr.bf16.mxu0 0
    %1159 = vmatpush1.bf16.msra.mxu0 0
    %1160 = vmatprep.subr.bf16.mxu0 0
    %1161 = vmatpush1.bf16.msra.mxu0 0
    %1162 = vmatprep.subr.bf16.mxu0 0
    %1163 = vmatpush1.bf16.msra.mxu0 0
    %1164 = vmatprep.subr.bf16.mxu0 0
    %1165 = vmatpush1.bf16.msra.mxu0 0
    %1166 = vmatprep.subr.bf16.mxu0 0
    %1167 = vmatpush1.bf16.msra.mxu0 0
    %1168 = vmatprep.subr.bf16.mxu0 0
    %1169 = vmatpush1.bf16.msra.mxu0 0
    %1170 = vmatprep.mubr.bf16.mxu0 0
    %1171 = vmatmul.mubr.bf16.gmra.mrb[0].mxu0 %v1137
    %v1172 = vpop.f32.mrb[0].mxu0
    %v1173 = vadd.f32 0.0, %v1172
    %v1174 = vpop.f32.mrb[0].mxu0
    %v1175 = vadd.f32 0.0, %v1174
    %v1176 = vpop.f32.mrb[0].mxu0
    %v1177 = vpop.f32.mrb[0].mxu0
    %1178 = vdwg.mxu0
    %1179 = vmatprep.subr.bf16.mxu0 %v613
    %1180 = vmatpush1.bf16.msra.mxu0 %v612
    %1181 = vmatprep.subr.bf16.mxu0 %v617
    %1182 = vmatpush1.bf16.msra.mxu0 %v616
    %1183 = vmatprep.subr.bf16.mxu0 %v621
    %1184 = vmatpush1.bf16.msra.mxu0 %v620
    %1185 = vmatprep.subr.bf16.mxu0 %v625
    %1186 = vmatpush1.bf16.msra.mxu0 %v624
    %1187 = vmatprep.subr.bf16.mxu0 %v629
    %1188 = vmatpush1.bf16.msra.mxu0 %v628
    %1189 = vmatprep.subr.bf16.mxu0 %v633
    %1190 = vmatpush1.bf16.msra.mxu0 %v632
    %1191 = vmatprep.subr.bf16.mxu0 %v637
    %1192 = vmatpush1.bf16.msra.mxu0 %v636
    %1193 = vmatprep.subr.bf16.mxu0 %v641
    %1194 = vmatpush1.bf16.msra.mxu0 %v640
    %1195 = vmatprep.subr.bf16.mxu0 0
    %1196 = vmatpush1.bf16.msra.mxu0 0
    %1197 = vmatprep.subr.bf16.mxu0 0
    %1198 = vmatpush1.bf16.msra.mxu0 0
    %1199 = vmatprep.subr.bf16.mxu0 0
    %1200 = vmatpush1.bf16.msra.mxu0 0
    %1201 = vmatprep.subr.bf16.mxu0 0
    %1202 = vmatpush1.bf16.msra.mxu0 0
    %1203 = vmatprep.subr.bf16.mxu0 0
    %1204 = vmatpush1.bf16.msra.mxu0 0
    %1205 = vmatprep.subr.bf16.mxu0 0
    %1206 = vmatpush1.bf16.msra.mxu0 0
    %1207 = vmatprep.subr.bf16.mxu0 0
    %1208 = vmatpush1.bf16.msra.mxu0 0
    %1209 = vmatprep.subr.bf16.mxu0 0
    %1210 = vmatpush1.bf16.msra.mxu0 0
    %1211 = vmatprep.mubr.bf16.mxu0 0
    %1212 = vmatmul.mubr.bf16.gmra.mrb[0].mxu0 %v1137
    %v1213 = vpop.f32.mrb[0].mxu0
    %v1214 = vadd.f32 0.0, %v1213
    %v1215 = vpop.f32.mrb[0].mxu0
    %v1216 = vadd.f32 0.0, %v1215
    %v1217 = vpop.f32.mrb[0].mxu0
    %v1218 = vpop.f32.mrb[0].mxu0
    %1219 = vdwg.mxu0
    %v1220 = vadd.f32 %v1133, %v1173
    %v1221 = vadd.f32 %v1134, %v1175
    %v1222 = vadd.f32 %v1135, %v1214
    %v1223 = vadd.f32 %v1136, %v1216
    %v1224 = vxor.u32 %v1220, 2147483648
    %v1225 = vxor.u32 %v1221, 2147483648
    %v1226 = vmul.f32 %v1224, 1.442695
    %v1227 = vpow.pop %v1226
    %v1228 = vmul.f32 %v1225, 1.442695
    %v1229 = vpow.pop %v1228
    %v1230 = vadd.f32 %v1227, 1.0
    %v1231 = vadd.f32 %v1229, 1.0
    %v1232 = vrcp.pop %v1230
    %v1233 = vmul.f32 1.0, %v1232
    %v1234 = vrcp.pop %v1231
    %v1235 = vmul.f32 1.0, %v1234
    %v1236 = vtanh.pop %v1222
    %v1237 = vxor.u32 %v1223, 2147483648
    %v1238 = vmul.f32 %v1237, 1.442695
    %v1239 = vpow.pop %v1238
    %v1240 = vadd.f32 %v1239, 1.0
    %v1241 = vrcp.pop %v1240
    %v1242 = vmul.f32 1.0, %v1241
    %v1243 = vmul.f32 %v1235, %v1129
    %v1244 = vmul.f32 %v1233, %v1236
    %v1245 = vadd.f32 %v1243, %v1244
    %v1246 = vtanh.pop %v1245
    %v1247 = vmul.f32 %v1242, %v1246
    %1248 = vst [vmem:[#allocation3 + $0x20] sm:$0xff] %v1247
    %v1249 = vld [vmem:[#allocation2 + $0xa0] sm:$0xff]
    %v1250 = vld [vmem:[#allocation2 + $0xa8] sm:$0xff]
    %v1251 = vld [vmem:[#allocation2 + $0xb0] sm:$0xff]
    %v1252 = vld [vmem:[#allocation2 + $0xb8] sm:$0xff]
    %v1253 = vpack.c.bf16 %v1247, %v1247
    %1254 = vmatprep.subr.bf16.mxu0 %v611
    %1255 = vmatpush1.bf16.msra.mxu0 %v610
    %1256 = vmatprep.subr.bf16.mxu0 %v615
    %1257 = vmatpush1.bf16.msra.mxu0 %v614
    %1258 = vmatprep.subr.bf16.mxu0 %v619
    %1259 = vmatpush1.bf16.msra.mxu0 %v618
    %1260 = vmatprep.subr.bf16.mxu0 %v623
    %1261 = vmatpush1.bf16.msra.mxu0 %v622
    %1262 = vmatprep.subr.bf16.mxu0 %v627
    %1263 = vmatpush1.bf16.msra.mxu0 %v626
    %1264 = vmatprep.subr.bf16.mxu0 %v631
    %1265 = vmatpush1.bf16.msra.mxu0 %v630
    %1266 = vmatprep.subr.bf16.mxu0 %v635
    %1267 = vmatpush1.bf16.msra.mxu0 %v634
    %1268 = vmatprep.subr.bf16.mxu0 %v639
    %1269 = vmatpush1.bf16.msra.mxu0 %v638
    %1270 = vmatprep.subr.bf16.mxu0 0
    %1271 = vmatpush1.bf16.msra.mxu0 0
    %1272 = vmatprep.subr.bf16.mxu0 0
    %1273 = vmatpush1.bf16.msra.mxu0 0
    %1274 = vmatprep.subr.bf16.mxu0 0
    %1275 = vmatpush1.bf16.msra.mxu0 0
    %1276 = vmatprep.subr.bf16.mxu0 0
    %1277 = vmatpush1.bf16.msra.mxu0 0
    %1278 = vmatprep.subr.bf16.mxu0 0
    %1279 = vmatpush1.bf16.msra.mxu0 0
    %1280 = vmatprep.subr.bf16.mxu0 0
    %1281 = vmatpush1.bf16.msra.mxu0 0
    %1282 = vmatprep.subr.bf16.mxu0 0
    %1283 = vmatpush1.bf16.msra.mxu0 0
    %1284 = vmatprep.subr.bf16.mxu0 0
    %1285 = vmatpush1.bf16.msra.mxu0 0
    %1286 = vmatprep.mubr.bf16.mxu0 0
    %1287 = vmatmul.mubr.bf16.gmra.mrb[0].mxu0 %v1253
    %v1288 = vpop.f32.mrb[0].mxu0
    %v1289 = vadd.f32 0.0, %v1288
    %v1290 = vpop.f32.mrb[0].mxu0
    %v1291 = vadd.f32 0.0, %v1290
    %v1292 = vpop.f32.mrb[0].mxu0
    %v1293 = vpop.f32.mrb[0].mxu0
    %1294 = vdwg.mxu0
    %1295 = vmatprep.subr.bf16.mxu0 %v613
    %1296 = vmatpush1.bf16.msra.mxu0 %v612
    %1297 = vmatprep.subr.bf16.mxu0 %v617
    %1298 = vmatpush1.bf16.msra.mxu0 %v616
    %1299 = vmatprep.subr.bf16.mxu0 %v621
    %1300 = vmatpush1.bf16.msra.mxu0 %v620
    %1301 = vmatprep.subr.bf16.mxu0 %v625
    %1302 = vmatpush1.bf16.msra.mxu0 %v624
    %1303 = vmatprep.subr.bf16.mxu0 %v629
    %1304 = vmatpush1.bf16.msra.mxu0 %v628
    %1305 = vmatprep.subr.bf16.mxu0 %v633
    %1306 = vmatpush1.bf16.msra.mxu0 %v632
    %1307 = vmatprep.subr.bf16.mxu0 %v637
    %1308 = vmatpush1.bf16.msra.mxu0 %v636
    %1309 = vmatprep.subr.bf16.mxu0 %v641
    %1310 = vmatpush1.bf16.msra.mxu0 %v640
    %1311 = vmatprep.subr.bf16.mxu0 0
    %1312 = vmatpush1.bf16.msra.mxu0 0
    %1313 = vmatprep.subr.bf16.mxu0 0
    %1314 = vmatpush1.bf16.msra.mxu0 0
    %1315 = vmatprep.subr.bf16.mxu0 0
    %1316 = vmatpush1.bf16.msra.mxu0 0
    %1317 = vmatprep.subr.bf16.mxu0 0
    %1318 = vmatpush1.bf16.msra.mxu0 0
    %1319 = vmatprep.subr.bf16.mxu0 0
    %1320 = vmatpush1.bf16.msra.mxu0 0
    %1321 = vmatprep.subr.bf16.mxu0 0
    %1322 = vmatpush1.bf16.msra.mxu0 0
    %1323 = vmatprep.subr.bf16.mxu0 0
    %1324 = vmatpush1.bf16.msra.mxu0 0
    %1325 = vmatprep.subr.bf16.mxu0 0
    %1326 = vmatpush1.bf16.msra.mxu0 0
    %1327 = vmatprep.mubr.bf16.mxu0 0
    %1328 = vmatmul.mubr.bf16.gmra.mrb[0].mxu0 %v1253
    %v1329 = vpop.f32.mrb[0].mxu0
    %v1330 = vadd.f32 0.0, %v1329
    %v1331 = vpop.f32.mrb[0].mxu0
    %v1332 = vadd.f32 0.0, %v1331
    %v1333 = vpop.f32.mrb[0].mxu0
    %v1334 = vpop.f32.mrb[0].mxu0
    %1335 = vdwg.mxu0
    %v1336 = vadd.f32 %v1249, %v1289
    %v1337 = vadd.f32 %v1250, %v1291
    %v1338 = vadd.f32 %v1251, %v1330
    %v1339 = vadd.f32 %v1252, %v1332
    %v1340 = vxor.u32 %v1336, 2147483648
    %v1341 = vxor.u32 %v1337, 2147483648
    %v1342 = vmul.f32 %v1340, 1.442695
    %v1343 = vpow.pop %v1342
    %v1344 = vmul.f32 %v1341, 1.442695
    %v1345 = vpow.pop %v1344
    %v1346 = vadd.f32 %v1343, 1.0
    %v1347 = vadd.f32 %v1345, 1.0
    %v1348 = vrcp.pop %v1346
    %v1349 = vmul.f32 1.0, %v1348
    %v1350 = vrcp.pop %v1347
    %v1351 = vmul.f32 1.0, %v1350
    %v1352 = vtanh.pop %v1338
    %v1353 = vxor.u32 %v1339, 2147483648
    %v1354 = vmul.f32 %v1353, 1.442695
    %v1355 = vpow.pop %v1354
    %v1356 = vadd.f32 %v1355, 1.0
    %v1357 = vrcp.pop %v1356
    %v1358 = vmul.f32 1.0, %v1357
    %v1359 = vmul.f32 %v1351, %v1245
    %v1360 = vmul.f32 %v1349, %v1352
    %v1361 = vadd.f32 %v1359, %v1360
    %v1362 = vtanh.pop %v1361
    %v1363 = vmul.f32 %v1358, %v1362
    %1364 = vst [vmem:[#allocation3 + $0x28] sm:$0xff] %v1363
    %v1365 = vld [vmem:[#allocation2 + $0xc0] sm:$0xff]
    %v1366 = vld [vmem:[#allocation2 + $0xc8] sm:$0xff]
    %v1367 = vld [vmem:[#allocation2 + $0xd0] sm:$0xff]
    %v1368 = vld [vmem:[#allocation2 + $0xd8] sm:$0xff]
    %v1369 = vpack.c.bf16 %v1363, %v1363
    %1370 = vmatprep.subr.bf16.mxu0 %v611
    %1371 = vmatpush1.bf16.msra.mxu0 %v610
    %1372 = vmatprep.subr.bf16.mxu0 %v615
    %1373 = vmatpush1.bf16.msra.mxu0 %v614
    %1374 = vmatprep.subr.bf16.mxu0 %v619
    %1375 = vmatpush1.bf16.msra.mxu0 %v618
    %1376 = vmatprep.subr.bf16.mxu0 %v623
    %1377 = vmatpush1.bf16.msra.mxu0 %v622
    %1378 = vmatprep.subr.bf16.mxu0 %v627
    %1379 = vmatpush1.bf16.msra.mxu0 %v626
    %1380 = vmatprep.subr.bf16.mxu0 %v631
    %1381 = vmatpush1.bf16.msra.mxu0 %v630
    %1382 = vmatprep.subr.bf16.mxu0 %v635
    %1383 = vmatpush1.bf16.msra.mxu0 %v634
    %1384 = vmatprep.subr.bf16.mxu0 %v639
    %1385 = vmatpush1.bf16.msra.mxu0 %v638
    %1386 = vmatprep.subr.bf16.mxu0 0
    %1387 = vmatpush1.bf16.msra.mxu0 0
    %1388 = vmatprep.subr.bf16.mxu0 0
    %1389 = vmatpush1.bf16.msra.mxu0 0
    %1390 = vmatprep.subr.bf16.mxu0 0
    %1391 = vmatpush1.bf16.msra.mxu0 0
    %1392 = vmatprep.subr.bf16.mxu0 0
    %1393 = vmatpush1.bf16.msra.mxu0 0
    %1394 = vmatprep.subr.bf16.mxu0 0
    %1395 = vmatpush1.bf16.msra.mxu0 0
    %1396 = vmatprep.subr.bf16.mxu0 0
    %1397 = vmatpush1.bf16.msra.mxu0 0
    %1398 = vmatprep.subr.bf16.mxu0 0
    %1399 = vmatpush1.bf16.msra.mxu0 0
    %1400 = vmatprep.subr.bf16.mxu0 0
    %1401 = vmatpush1.bf16.msra.mxu0 0
    %1402 = vmatprep.mubr.bf16.mxu0 0
    %1403 = vmatmul.mubr.bf16.gmra.mrb[0].mxu0 %v1369
    %v1404 = vpop.f32.mrb[0].mxu0
    %v1405 = vadd.f32 0.0, %v1404
    %v1406 = vpop.f32.mrb[0].mxu0
    %v1407 = vadd.f32 0.0, %v1406
    %v1408 = vpop.f32.mrb[0].mxu0
    %v1409 = vpop.f32.mrb[0].mxu0
    %1410 = vdwg.mxu0
    %1411 = vmatprep.subr.bf16.mxu0 %v613
    %1412 = vmatpush1.bf16.msra.mxu0 %v612
    %1413 = vmatprep.subr.bf16.mxu0 %v617
    %1414 = vmatpush1.bf16.msra.mxu0 %v616
    %1415 = vmatprep.subr.bf16.mxu0 %v621
    %1416 = vmatpush1.bf16.msra.mxu0 %v620
    %1417 = vmatprep.subr.bf16.mxu0 %v625
    %1418 = vmatpush1.bf16.msra.mxu0 %v624
    %1419 = vmatprep.subr.bf16.mxu0 %v629
    %1420 = vmatpush1.bf16.msra.mxu0 %v628
    %1421 = vmatprep.subr.bf16.mxu0 %v633
    %1422 = vmatpush1.bf16.msra.mxu0 %v632
    %1423 = vmatprep.subr.bf16.mxu0 %v637
    %1424 = vmatpush1.bf16.msra.mxu0 %v636
    %1425 = vmatprep.subr.bf16.mxu0 %v641
    %1426 = vmatpush1.bf16.msra.mxu0 %v640
    %1427 = vmatprep.subr.bf16.mxu0 0
    %1428 = vmatpush1.bf16.msra.mxu0 0
    %1429 = vmatprep.subr.bf16.mxu0 0
    %1430 = vmatpush1.bf16.msra.mxu0 0
    %1431 = vmatprep.subr.bf16.mxu0 0
    %1432 = vmatpush1.bf16.msra.mxu0 0
    %1433 = vmatprep.subr.bf16.mxu0 0
    %1434 = vmatpush1.bf16.msra.mxu0 0
    %1435 = vmatprep.subr.bf16.mxu0 0
    %1436 = vmatpush1.bf16.msra.mxu0 0
    %1437 = vmatprep.subr.bf16.mxu0 0
    %1438 = vmatpush1.bf16.msra.mxu0 0
    %1439 = vmatprep.subr.bf16.mxu0 0
    %1440 = vmatpush1.bf16.msra.mxu0 0
    %1441 = vmatprep.subr.bf16.mxu0 0
    %1442 = vmatpush1.bf16.msra.mxu0 0
    %1443 = vmatprep.mubr.bf16.mxu0 0
    %1444 = vmatmul.mubr.bf16.gmra.mrb[0].mxu0 %v1369
    %v1445 = vpop.f32.mrb[0].mxu0
    %v1446 = vadd.f32 0.0, %v1445
    %v1447 = vpop.f32.mrb[0].mxu0
    %v1448 = vadd.f32 0.0, %v1447
    %v1449 = vpop.f32.mrb[0].mxu0
    %v1450 = vpop.f32.mrb[0].mxu0
    %1451 = vdwg.mxu0
    %v1452 = vadd.f32 %v1365, %v1405
    %v1453 = vadd.f32 %v1366, %v1407
    %v1454 = vadd.f32 %v1367, %v1446
    %v1455 = vadd.f32 %v1368, %v1448
    %v1456 = vxor.u32 %v1452, 2147483648
    %v1457 = vxor.u32 %v1453, 2147483648
    %v1458 = vmul.f32 %v1456, 1.442695
    %v1459 = vpow.pop %v1458
    %v1460 = vmul.f32 %v1457, 1.442695
    %v1461 = vpow.pop %v1460
    %v1462 = vadd.f32 %v1459, 1.0
    %v1463 = vadd.f32 %v1461, 1.0
    %v1464 = vrcp.pop %v1462
    %v1465 = vmul.f32 1.0, %v1464
    %v1466 = vrcp.pop %v1463
    %v1467 = vmul.f32 1.0, %v1466
    %v1468 = vtanh.pop %v1454
    %v1469 = vxor.u32 %v1455, 2147483648
    %v1470 = vmul.f32 %v1469, 1.442695
    %v1471 = vpow.pop %v1470
    %v1472 = vadd.f32 %v1471, 1.0
    %v1473 = vrcp.pop %v1472
    %v1474 = vmul.f32 1.0, %v1473
    %v1475 = vmul.f32 %v1467, %v1361
    %v1476 = vmul.f32 %v1465, %v1468
    %v1477 = vadd.f32 %v1475, %v1476
    %v1478 = vtanh.pop %v1477
    %v1479 = vmul.f32 %v1474, %v1478
    %1480 = vst [vmem:[#allocation3 + $0x30] sm:$0xff] %v1479
    %v1481 = vld [vmem:[#allocation2 + $0xe0] sm:$0xff]
    %v1482 = vld [vmem:[#allocation2 + $0xe8] sm:$0xff]
    %v1483 = vld [vmem:[#allocation2 + $0xf0] sm:$0xff]
    %v1484 = vld [vmem:[#allocation2 + $0xf8] sm:$0xff]
    %v1485 = vpack.c.bf16 %v1479, %v1479
    %1486 = vmatprep.subr.bf16.mxu0 %v611
    %1487 = vmatpush1.bf16.msra.mxu0 %v610
    %1488 = vmatprep.subr.bf16.mxu0 %v615
    %1489 = vmatpush1.bf16.msra.mxu0 %v614
    %1490 = vmatprep.subr.bf16.mxu0 %v619
    %1491 = vmatpush1.bf16.msra.mxu0 %v618
    %1492 = vmatprep.subr.bf16.mxu0 %v623
    %1493 = vmatpush1.bf16.msra.mxu0 %v622
    %1494 = vmatprep.subr.bf16.mxu0 %v627
    %1495 = vmatpush1.bf16.msra.mxu0 %v626
    %1496 = vmatprep.subr.bf16.mxu0 %v631
    %1497 = vmatpush1.bf16.msra.mxu0 %v630
    %1498 = vmatprep.subr.bf16.mxu0 %v635
    %1499 = vmatpush1.bf16.msra.mxu0 %v634
    %1500 = vmatprep.subr.bf16.mxu0 %v639
    %1501 = vmatpush1.bf16.msra.mxu0 %v638
    %1502 = vmatprep.subr.bf16.mxu0 0
    %1503 = vmatpush1.bf16.msra.mxu0 0
    %1504 = vmatprep.subr.bf16.mxu0 0
    %1505 = vmatpush1.bf16.msra.mxu0 0
    %1506 = vmatprep.subr.bf16.mxu0 0
    %1507 = vmatpush1.bf16.msra.mxu0 0
    %1508 = vmatprep.subr.bf16.mxu0 0
    %1509 = vmatpush1.bf16.msra.mxu0 0
    %1510 = vmatprep.subr.bf16.mxu0 0
    %1511 = vmatpush1.bf16.msra.mxu0 0
    %1512 = vmatprep.subr.bf16.mxu0 0
    %1513 = vmatpush1.bf16.msra.mxu0 0
    %1514 = vmatprep.subr.bf16.mxu0 0
    %1515 = vmatpush1.bf16.msra.mxu0 0
    %1516 = vmatprep.subr.bf16.mxu0 0
    %1517 = vmatpush1.bf16.msra.mxu0 0
    %1518 = vmatprep.mubr.bf16.mxu0 0
    %1519 = vmatmul.mubr.bf16.gmra.mrb[0].mxu0 %v1485
    %v1520 = vpop.f32.mrb[0].mxu0
    %v1521 = vadd.f32 0.0, %v1520
    %v1522 = vpop.f32.mrb[0].mxu0
    %v1523 = vadd.f32 0.0, %v1522
    %v1524 = vpop.f32.mrb[0].mxu0
    %v1525 = vpop.f32.mrb[0].mxu0
    %1526 = vdwg.mxu0
    %1527 = vmatprep.subr.bf16.mxu0 %v613
    %1528 = vmatpush1.bf16.msra.mxu0 %v612
    %1529 = vmatprep.subr.bf16.mxu0 %v617
    %1530 = vmatpush1.bf16.msra.mxu0 %v616
    %1531 = vmatprep.subr.bf16.mxu0 %v621
    %1532 = vmatpush1.bf16.msra.mxu0 %v620
    %1533 = vmatprep.subr.bf16.mxu0 %v625
    %1534 = vmatpush1.bf16.msra.mxu0 %v624
    %1535 = vmatprep.subr.bf16.mxu0 %v629
    %1536 = vmatpush1.bf16.msra.mxu0 %v628
    %1537 = vmatprep.subr.bf16.mxu0 %v633
    %1538 = vmatpush1.bf16.msra.mxu0 %v632
    %1539 = vmatprep.subr.bf16.mxu0 %v637
    %1540 = vmatpush1.bf16.msra.mxu0 %v636
    %1541 = vmatprep.subr.bf16.mxu0 %v641
    %1542 = vmatpush1.bf16.msra.mxu0 %v640
    %1543 = vmatprep.subr.bf16.mxu0 0
    %1544 = vmatpush1.bf16.msra.mxu0 0
    %1545 = vmatprep.subr.bf16.mxu0 0
    %1546 = vmatpush1.bf16.msra.mxu0 0
    %1547 = vmatprep.subr.bf16.mxu0 0
    %1548 = vmatpush1.bf16.msra.mxu0 0
    %1549 = vmatprep.subr.bf16.mxu0 0
    %1550 = vmatpush1.bf16.msra.mxu0 0
    %1551 = vmatprep.subr.bf16.mxu0 0
    %1552 = vmatpush1.bf16.msra.mxu0 0
    %1553 = vmatprep.subr.bf16.mxu0 0
    %1554 = vmatpush1.bf16.msra.mxu0 0
    %1555 = vmatprep.subr.bf16.mxu0 0
    %1556 = vmatpush1.bf16.msra.mxu0 0
    %1557 = vmatprep.subr.bf16.mxu0 0
    %1558 = vmatpush1.bf16.msra.mxu0 0
    %1559 = vmatprep.mubr.bf16.mxu0 0
    %1560 = vmatmul.mubr.bf16.gmra.mrb[0].mxu0 %v1485
    %v1561 = vpop.f32.mrb[0].mxu0
    %v1562 = vadd.f32 0.0, %v1561
    %v1563 = vpop.f32.mrb[0].mxu0
    %v1564 = vadd.f32 0.0, %v1563
    %v1565 = vpop.f32.mrb[0].mxu0
    %v1566 = vpop.f32.mrb[0].mxu0
    %1567 = vdwg.mxu0
    %v1568 = vadd.f32 %v1481, %v1521
    %v1569 = vadd.f32 %v1482, %v1523
    %v1570 = vadd.f32 %v1483, %v1562
    %v1571 = vadd.f32 %v1484, %v1564
    %v1572 = vxor.u32 %v1568, 2147483648
    %v1573 = vxor.u32 %v1569, 2147483648
    %v1574 = vmul.f32 %v1572, 1.442695
    %v1575 = vpow.pop %v1574
    %v1576 = vmul.f32 %v1573, 1.442695
    %v1577 = vpow.pop %v1576
    %v1578 = vadd.f32 %v1575, 1.0
    %v1579 = vadd.f32 %v1577, 1.0
    %v1580 = vrcp.pop %v1578
    %v1581 = vmul.f32 1.0, %v1580
    %v1582 = vrcp.pop %v1579
    %v1583 = vmul.f32 1.0, %v1582
    %v1584 = vtanh.pop %v1570
    %v1585 = vxor.u32 %v1571, 2147483648
    %v1586 = vmul.f32 %v1585, 1.442695
    %v1587 = vpow.pop %v1586
    %v1588 = vadd.f32 %v1587, 1.0
    %v1589 = vrcp.pop %v1588
    %v1590 = vmul.f32 1.0, %v1589
    %v1591 = vmul.f32 %v1583, %v1477
    %v1592 = vmul.f32 %v1581, %v1584
    %v1593 = vadd.f32 %v1591, %v1592
    %v1594 = vtanh.pop %v1593
    %v1595 = vmul.f32 %v1590, %v1594
    %1596 = vst [vmem:[#allocation3 + $0x38] sm:$0xff] %v1595
    %v1597 = vld [vmem:[#allocation3] sm:$0xff]
    %v1598 = vld [vmem:[#allocation3 + $0x38] sm:$0xff]
    %v1599 = vsel %vm131, %v1597, %v1598
    %1600 = vst [vmem:[#allocation3] sm:$0xff] %v1599
    %v1601 = vsel %vm131, %v1598, %v1597
    %1602 = vst [vmem:[#allocation3 + $0x38] sm:$0xff] %v1601
    %v1603 = vld [vmem:[#allocation3 + $0x8] sm:$0xff]
    %v1604 = vld [vmem:[#allocation3 + $0x30] sm:$0xff]
    %v1605 = vsel %vm131, %v1603, %v1604
    %1606 = vst [vmem:[#allocation3 + $0x8] sm:$0xff] %v1605
    %v1607 = vsel %vm131, %v1604, %v1603
    %1608 = vst [vmem:[#allocation3 + $0x30] sm:$0xff] %v1607
    %v1609 = vld [vmem:[#allocation3 + $0x10] sm:$0xff]
    %v1610 = vld [vmem:[#allocation3 + $0x28] sm:$0xff]
    %v1611 = vsel %vm131, %v1609, %v1610
    %1612 = vst [vmem:[#allocation3 + $0x10] sm:$0xff] %v1611
    %v1613 = vsel %vm131, %v1610, %v1609
    %1614 = vst [vmem:[#allocation3 + $0x28] sm:$0xff] %v1613
    %v1615 = vld [vmem:[#allocation3 + $0x18] sm:$0xff]
    %v1616 = vld [vmem:[#allocation3 + $0x20] sm:$0xff]
    %v1617 = vsel %vm131, %v1615, %v1616
    %1618 = vst [vmem:[#allocation3 + $0x18] sm:$0xff] %v1617
    %v1619 = vsel %vm131, %v1616, %v1615
    %1620 = vst [vmem:[#allocation3 + $0x20] sm:$0xff] %v1619
    %v1621 = vld [vmem:[#allocation3] sm:$0xff]
    %v1622 = vld [vmem:[#allocation3 + $0x8] sm:$0xff]
    %v1623 = vld [vmem:[#allocation3 + $0x10] sm:$0xff]
    %v1624 = vld [vmem:[#allocation3 + $0x18] sm:$0xff]
    %v1625 = vld [vmem:[#allocation3 + $0x20] sm:$0xff]
    %v1626 = vld [vmem:[#allocation3 + $0x28] sm:$0xff]
    %v1627 = vld [vmem:[#allocation3 + $0x30] sm:$0xff]
    %v1628 = vld [vmem:[#allocation3 + $0x38] sm:$0xff]
    %v1629 = vpack.c.bf16 %v1622, %v1621
    %v1630 = vpack.c.bf16 %v1624, %v1623
    %v1631 = vpack.c.bf16 %v1626, %v1625
    %v1632 = vpack.c.bf16 %v1628, %v1627
    %v1633 = vld [vmem:[#allocation6] sm:$0xff]
    %v1634 = vld [vmem:[#allocation6 + $0x8] sm:$0xff]
    %v1635 = vld [vmem:[#allocation6 + $0x10] sm:$0xff]
    %v1636 = vld [vmem:[#allocation6 + $0x18] sm:$0xff]
    %v1637 = vld [vmem:[#allocation6 + $0x20] sm:$0xff]
    %v1638 = vld [vmem:[#allocation6 + $0x28] sm:$0xff]
    %v1639 = vld [vmem:[#allocation6 + $0x30] sm:$0xff]
    %v1640 = vld [vmem:[#allocation6 + $0x38] sm:$0xff]
    %v1641 = vld [vmem:[#allocation6 + $0x40] sm:$0xff]
    %v1642 = vld [vmem:[#allocation6 + $0x48] sm:$0xff]
    %v1643 = vld [vmem:[#allocation6 + $0x50] sm:$0xff]
    %v1644 = vld [vmem:[#allocation6 + $0x58] sm:$0xff]
    %v1645 = vld [vmem:[#allocation6 + $0x60] sm:$0xff]
    %v1646 = vld [vmem:[#allocation6 + $0x68] sm:$0xff]
    %v1647 = vld [vmem:[#allocation6 + $0x70] sm:$0xff]
    %v1648 = vld [vmem:[#allocation6 + $0x78] sm:$0xff]
    %v1649 = vld [vmem:[#allocation6 + $0x80] sm:$0xff]
    %v1650 = vld [vmem:[#allocation6 + $0x88] sm:$0xff]
    %v1651 = vld [vmem:[#allocation6 + $0x90] sm:$0xff]
    %v1652 = vld [vmem:[#allocation6 + $0x98] sm:$0xff]
    %v1653 = vld [vmem:[#allocation6 + $0xa0] sm:$0xff]
    %v1654 = vld [vmem:[#allocation6 + $0xa8] sm:$0xff]
    %v1655 = vld [vmem:[#allocation6 + $0xb0] sm:$0xff]
    %v1656 = vld [vmem:[#allocation6 + $0xb8] sm:$0xff]
    %v1657 = vld [vmem:[#allocation6 + $0xc0] sm:$0xff]
    %v1658 = vld [vmem:[#allocation6 + $0xc8] sm:$0xff]
    %v1659 = vld [vmem:[#allocation6 + $0xd0] sm:$0xff]
    %v1660 = vld [vmem:[#allocation6 + $0xd8] sm:$0xff]
    %v1661 = vld [vmem:[#allocation6 + $0xe0] sm:$0xff]
    %v1662 = vld [vmem:[#allocation6 + $0xe8] sm:$0xff]
    %v1663 = vld [vmem:[#allocation6 + $0xf0] sm:$0xff]
    %v1664 = vld [vmem:[#allocation6 + $0xf8] sm:$0xff]
    %v1665 = vld [vmem:[#allocation8] sm:$0xff]
    %v1666 = vld [vmem:[#allocation8 + $0x8] sm:$0xff]
    %v1667 = vld [vmem:[#allocation8 + $0x10] sm:$0xff]
    %v1668 = vld [vmem:[#allocation8 + $0x18] sm:$0xff]
    %v1669 = vld [vmem:[#allocation8 + $0x20] sm:$0xff]
    %v1670 = vld [vmem:[#allocation8 + $0x28] sm:$0xff]
    %v1671 = vld [vmem:[#allocation8 + $0x30] sm:$0xff]
    %v1672 = vld [vmem:[#allocation8 + $0x38] sm:$0xff]
    %v1673 = vld [vmem:[#allocation8 + $0x40] sm:$0xff]
    %v1674 = vld [vmem:[#allocation8 + $0x48] sm:$0xff]
    %v1675 = vld [vmem:[#allocation8 + $0x50] sm:$0xff]
    %v1676 = vld [vmem:[#allocation8 + $0x58] sm:$0xff]
    %v1677 = vld [vmem:[#allocation8 + $0x60] sm:$0xff]
    %v1678 = vld [vmem:[#allocation8 + $0x68] sm:$0xff]
    %v1679 = vld [vmem:[#allocation8 + $0x70] sm:$0xff]
    %v1680 = vld [vmem:[#allocation8 + $0x78] sm:$0xff]
    %v1681 = vld [vmem:[#allocation8 + $0x80] sm:$0xff]
    %v1682 = vld [vmem:[#allocation8 + $0x88] sm:$0xff]
    %v1683 = vld [vmem:[#allocation8 + $0x90] sm:$0xff]
    %v1684 = vld [vmem:[#allocation8 + $0x98] sm:$0xff]
    %v1685 = vld [vmem:[#allocation8 + $0xa0] sm:$0xff]
    %v1686 = vld [vmem:[#allocation8 + $0xa8] sm:$0xff]
    %v1687 = vld [vmem:[#allocation8 + $0xb0] sm:$0xff]
    %v1688 = vld [vmem:[#allocation8 + $0xb8] sm:$0xff]
    %v1689 = vld [vmem:[#allocation8 + $0xc0] sm:$0xff]
    %v1690 = vld [vmem:[#allocation8 + $0xc8] sm:$0xff]
    %v1691 = vld [vmem:[#allocation8 + $0xd0] sm:$0xff]
    %v1692 = vld [vmem:[#allocation8 + $0xd8] sm:$0xff]
    %v1693 = vld [vmem:[#allocation8 + $0xe0] sm:$0xff]
    %v1694 = vld [vmem:[#allocation8 + $0xe8] sm:$0xff]
    %v1695 = vld [vmem:[#allocation8 + $0xf0] sm:$0xff]
    %v1696 = vld [vmem:[#allocation8 + $0xf8] sm:$0xff]
    %v1697 = vld [vmem:[%s6] sm:$0xf]
    %v1699 = vlaneseq
    %v1700 = vshrl.u32 %v1699, 7
    %v1701 = vsub.s32 0, %v1700
    %v1702 = vrot.slane %v1697, %v1701
    %v1703 = vlaneseq
    %v1704 = vshrl.u32 %v1703, 7
    %v1705 = vsub.s32 1, %v1704
    %v1706 = vrot.slane %v1697, %v1705
    %v1707 = vlaneseq
    %v1708 = vshrl.u32 %v1707, 7
    %v1709 = vsub.s32 2, %v1708
    %v1710 = vrot.slane %v1697, %v1709
    %v1711 = vlaneseq
    %v1712 = vshrl.u32 %v1711, 7
    %v1713 = vsub.s32 3, %v1712
    %v1714 = vrot.slane %v1697, %v1713
    %v1751 = vunpack.c.l.b16 %v1633
    %v1752 = vunpack.c.h.b16 %v1633
    %v1753 = vunpack.c.l.b16 %v1634
    %v1754 = vunpack.c.h.b16 %v1634
    %v1755 = vunpack.c.l.b16 %v1635
    %v1756 = vunpack.c.h.b16 %v1635
    %v1757 = vunpack.c.l.b16 %v1636
    %v1758 = vunpack.c.h.b16 %v1636
    %v1759 = vunpack.c.l.b16 %v1637
    %v1760 = vunpack.c.h.b16 %v1637
    %v1761 = vunpack.c.l.b16 %v1638
    %v1762 = vunpack.c.h.b16 %v1638
    %v1763 = vunpack.c.l.b16 %v1639
    %v1764 = vunpack.c.h.b16 %v1639
    %v1765 = vunpack.c.l.b16 %v1640
    %v1766 = vunpack.c.h.b16 %v1640
    %v1767 = vunpack.c.l.b16 %v1641
    %v1768 = vunpack.c.h.b16 %v1641
    %v1769 = vunpack.c.l.b16 %v1642
    %v1770 = vunpack.c.h.b16 %v1642
    %v1771 = vunpack.c.l.b16 %v1643
    %v1772 = vunpack.c.h.b16 %v1643
    %v1773 = vunpack.c.l.b16 %v1644
    %v1774 = vunpack.c.h.b16 %v1644
    %v1775 = vunpack.c.l.b16 %v1645
    %v1776 = vunpack.c.h.b16 %v1645
    %v1777 = vunpack.c.l.b16 %v1646
    %v1778 = vunpack.c.h.b16 %v1646
    %v1779 = vunpack.c.l.b16 %v1647
    %v1780 = vunpack.c.h.b16 %v1647
    %v1781 = vunpack.c.l.b16 %v1648
    %v1782 = vunpack.c.h.b16 %v1648
    %v1783 = vunpack.c.l.b16 %v1649
    %v1784 = vunpack.c.h.b16 %v1649
    %v1785 = vunpack.c.l.b16 %v1650
    %v1786 = vunpack.c.h.b16 %v1650
    %v1787 = vunpack.c.l.b16 %v1651
    %v1788 = vunpack.c.h.b16 %v1651
    %v1789 = vunpack.c.l.b16 %v1652
    %v1790 = vunpack.c.h.b16 %v1652
    %v1791 = vunpack.c.l.b16 %v1653
    %v1792 = vunpack.c.h.b16 %v1653
    %v1793 = vunpack.c.l.b16 %v1654
    %v1794 = vunpack.c.h.b16 %v1654
    %v1795 = vunpack.c.l.b16 %v1655
    %v1796 = vunpack.c.h.b16 %v1655
    %v1797 = vunpack.c.l.b16 %v1656
    %v1798 = vunpack.c.h.b16 %v1656
    %v1799 = vunpack.c.l.b16 %v1657
    %v1800 = vunpack.c.h.b16 %v1657
    %v1801 = vunpack.c.l.b16 %v1658
    %v1802 = vunpack.c.h.b16 %v1658
    %v1803 = vunpack.c.l.b16 %v1659
    %v1804 = vunpack.c.h.b16 %v1659
    %v1805 = vunpack.c.l.b16 %v1660
    %v1806 = vunpack.c.h.b16 %v1660
    %v1807 = vunpack.c.l.b16 %v1661
    %v1808 = vunpack.c.h.b16 %v1661
    %v1809 = vunpack.c.l.b16 %v1662
    %v1810 = vunpack.c.h.b16 %v1662
    %v1811 = vunpack.c.l.b16 %v1663
    %v1812 = vunpack.c.h.b16 %v1663
    %v1813 = vunpack.c.l.b16 %v1664
    %v1814 = vunpack.c.h.b16 %v1664
    %v1815 = vpack.c.b16 %v1755, %v1751
    %v1816 = vpack.c.b16 %v1756, %v1752
    %v1817 = vpack.c.b16 %v1757, %v1753
    %v1818 = vpack.c.b16 %v1758, %v1754
    %v1819 = vpack.c.b16 %v1763, %v1759
    %v1820 = vpack.c.b16 %v1764, %v1760
    %v1821 = vpack.c.b16 %v1765, %v1761
    %v1822 = vpack.c.b16 %v1766, %v1762
    %v1823 = vpack.c.b16 %v1771, %v1767
    %v1824 = vpack.c.b16 %v1772, %v1768
    %v1825 = vpack.c.b16 %v1773, %v1769
    %v1826 = vpack.c.b16 %v1774, %v1770
    %v1827 = vpack.c.b16 %v1779, %v1775
    %v1828 = vpack.c.b16 %v1780, %v1776
    %v1829 = vpack.c.b16 %v1781, %v1777
    %v1830 = vpack.c.b16 %v1782, %v1778
    %v1831 = vpack.c.b16 %v1787, %v1783
    %v1832 = vpack.c.b16 %v1788, %v1784
    %v1833 = vpack.c.b16 %v1789, %v1785
    %v1834 = vpack.c.b16 %v1790, %v1786
    %v1835 = vpack.c.b16 %v1795, %v1791
    %v1836 = vpack.c.b16 %v1796, %v1792
    %v1837 = vpack.c.b16 %v1797, %v1793
    %v1838 = vpack.c.b16 %v1798, %v1794
    %v1839 = vpack.c.b16 %v1803, %v1799
    %v1840 = vpack.c.b16 %v1804, %v1800
    %v1841 = vpack.c.b16 %v1805, %v1801
    %v1842 = vpack.c.b16 %v1806, %v1802
    %v1843 = vpack.c.b16 %v1811, %v1807
    %v1844 = vpack.c.b16 %v1812, %v1808
    %v1845 = vpack.c.b16 %v1813, %v1809
    %v1846 = vpack.c.b16 %v1814, %v1810
    %1879 = vmatprep.subr.bf16.mxu0 %v1816
    %1880 = vmatpush1.bf16.msra.mxu0 %v1815
    %1881 = vmatprep.subr.bf16.mxu0 %v1820
    %1882 = vmatpush1.bf16.msra.mxu0 %v1819
    %1883 = vmatprep.subr.bf16.mxu0 %v1824
    %1884 = vmatpush1.bf16.msra.mxu0 %v1823
    %1885 = vmatprep.subr.bf16.mxu0 %v1828
    %1886 = vmatpush1.bf16.msra.mxu0 %v1827
    %1887 = vmatprep.subr.bf16.mxu0 %v1832
    %1888 = vmatpush1.bf16.msra.mxu0 %v1831
    %1889 = vmatprep.subr.bf16.mxu0 %v1836
    %1890 = vmatpush1.bf16.msra.mxu0 %v1835
    %1891 = vmatprep.subr.bf16.mxu0 %v1840
    %1892 = vmatpush1.bf16.msra.mxu0 %v1839
    %1893 = vmatprep.subr.bf16.mxu0 %v1844
    %1894 = vmatpush1.bf16.msra.mxu0 %v1843
    %1895 = vmatprep.subr.bf16.mxu0 0
    %1896 = vmatpush1.bf16.msra.mxu0 0
    %1897 = vmatprep.subr.bf16.mxu0 0
    %1898 = vmatpush1.bf16.msra.mxu0 0
    %1899 = vmatprep.subr.bf16.mxu0 0
    %1900 = vmatpush1.bf16.msra.mxu0 0
    %1901 = vmatprep.subr.bf16.mxu0 0
    %1902 = vmatpush1.bf16.msra.mxu0 0
    %1903 = vmatprep.subr.bf16.mxu0 0
    %1904 = vmatpush1.bf16.msra.mxu0 0
    %1905 = vmatprep.subr.bf16.mxu0 0
    %1906 = vmatpush1.bf16.msra.mxu0 0
    %1907 = vmatprep.subr.bf16.mxu0 0
    %1908 = vmatpush1.bf16.msra.mxu0 0
    %1909 = vmatprep.subr.bf16.mxu0 0
    %1910 = vmatpush1.bf16.msra.mxu0 0
    %1911 = vmatprep.mubr.bf16.mxu0 0
    %1912 = vmatmul.mubr.bf16.gmra.mrb[0].mxu0 %v1629
    %v1913 = vpop.f32.mrb[0].mxu0
    %v1914 = vadd.f32 %v1702, %v1913
    %v1915 = vpop.f32.mrb[0].mxu0
    %v1916 = vadd.f32 %v1706, %v1915
    %v1917 = vpop.f32.mrb[0].mxu0
    %v1918 = vadd.f32 %v1702, %v1917
    %v1919 = vpop.f32.mrb[0].mxu0
    %v1920 = vadd.f32 %v1706, %v1919
    %1921 = vmatprep.mubr.bf16.mxu0 0
    %1922 = vmatmul.mubr.bf16.gmra.mrb[0].mxu0 %v1630
    %v1923 = vpop.f32.mrb[0].mxu0
    %v1924 = vadd.f32 %v1702, %v1923
    %v1925 = vpop.f32.mrb[0].mxu0
    %v1926 = vadd.f32 %v1706, %v1925
    %v1927 = vpop.f32.mrb[0].mxu0
    %v1928 = vadd.f32 %v1702, %v1927
    %v1929 = vpop.f32.mrb[0].mxu0
    %v1930 = vadd.f32 %v1706, %v1929
    %1931 = vmatprep.mubr.bf16.mxu0 0
    %1932 = vmatmul.mubr.bf16.gmra.mrb[0].mxu0 %v1631
    %v1933 = vpop.f32.mrb[0].mxu0
    %v1934 = vadd.f32 %v1702, %v1933
    %v1935 = vpop.f32.mrb[0].mxu0
    %v1936 = vadd.f32 %v1706, %v1935
    %v1937 = vpop.f32.mrb[0].mxu0
    %v1938 = vadd.f32 %v1702, %v1937
    %v1939 = vpop.f32.mrb[0].mxu0
    %v1940 = vadd.f32 %v1706, %v1939
    %1941 = vmatprep.mubr.bf16.mxu0 0
    %1942 = vmatmul.mubr.bf16.gmra.mrb[0].mxu0 %v1632
    %v1943 = vpop.f32.mrb[0].mxu0
    %v1944 = vadd.f32 %v1702, %v1943
    %v1945 = vpop.f32.mrb[0].mxu0
    %v1946 = vadd.f32 %v1706, %v1945
    %v1947 = vpop.f32.mrb[0].mxu0
    %v1948 = vadd.f32 %v1702, %v1947
    %v1949 = vpop.f32.mrb[0].mxu0
    %v1950 = vadd.f32 %v1706, %v1949
    %1951 = vdwg.mxu0
    %1952 = vmatprep.subr.bf16.mxu0 %v1818
    %1953 = vmatpush1.bf16.msra.mxu0 %v1817
    %1954 = vmatprep.subr.bf16.mxu0 %v1822
    %1955 = vmatpush1.bf16.msra.mxu0 %v1821
    %1956 = vmatprep.subr.bf16.mxu0 %v1826
    %1957 = vmatpush1.bf16.msra.mxu0 %v1825
    %1958 = vmatprep.subr.bf16.mxu0 %v1830
    %1959 = vmatpush1.bf16.msra.mxu0 %v1829
    %1960 = vmatprep.subr.bf16.mxu0 %v1834
    %1961 = vmatpush1.bf16.msra.mxu0 %v1833
    %1962 = vmatprep.subr.bf16.mxu0 %v1838
    %1963 = vmatpush1.bf16.msra.mxu0 %v1837
    %1964 = vmatprep.subr.bf16.mxu0 %v1842
    %1965 = vmatpush1.bf16.msra.mxu0 %v1841
    %1966 = vmatprep.subr.bf16.mxu0 %v1846
    %1967 = vmatpush1.bf16.msra.mxu0 %v1845
    %1968 = vmatprep.subr.bf16.mxu0 0
    %1969 = vmatpush1.bf16.msra.mxu0 0
    %1970 = vmatprep.subr.bf16.mxu0 0
    %1971 = vmatpush1.bf16.msra.mxu0 0
    %1972 = vmatprep.subr.bf16.mxu0 0
    %1973 = vmatpush1.bf16.msra.mxu0 0
    %1974 = vmatprep.subr.bf16.mxu0 0
    %1975 = vmatpush1.bf16.msra.mxu0 0
    %1976 = vmatprep.subr.bf16.mxu0 0
    %1977 = vmatpush1.bf16.msra.mxu0 0
    %1978 = vmatprep.subr.bf16.mxu0 0
    %1979 = vmatpush1.bf16.msra.mxu0 0
    %1980 = vmatprep.subr.bf16.mxu0 0
    %1981 = vmatpush1.bf16.msra.mxu0 0
    %1982 = vmatprep.subr.bf16.mxu0 0
    %1983 = vmatpush1.bf16.msra.mxu0 0
    %1984 = vmatprep.mubr.bf16.mxu0 0
    %1985 = vmatmul.mubr.bf16.gmra.mrb[0].mxu0 %v1629
    %v1986 = vpop.f32.mrb[0].mxu0
    %v1987 = vadd.f32 %v1710, %v1986
    %v1988 = vpop.f32.mrb[0].mxu0
    %v1989 = vadd.f32 %v1714, %v1988
    %v1990 = vpop.f32.mrb[0].mxu0
    %v1991 = vadd.f32 %v1710, %v1990
    %v1992 = vpop.f32.mrb[0].mxu0
    %v1993 = vadd.f32 %v1714, %v1992
    %1994 = vmatprep.mubr.bf16.mxu0 0
    %1995 = vmatmul.mubr.bf16.gmra.mrb[0].mxu0 %v1630
    %v1996 = vpop.f32.mrb[0].mxu0
    %v1997 = vadd.f32 %v1710, %v1996
    %v1998 = vpop.f32.mrb[0].mxu0
    %v1999 = vadd.f32 %v1714, %v1998
    %v2000 = vpop.f32.mrb[0].mxu0
    %v2001 = vadd.f32 %v1710, %v2000
    %v2002 = vpop.f32.mrb[0].mxu0
    %v2003 = vadd.f32 %v1714, %v2002
    %2004 = vmatprep.mubr.bf16.mxu0 0
    %2005 = vmatmul.mubr.bf16.gmra.mrb[0].mxu0 %v1631
    %v2006 = vpop.f32.mrb[0].mxu0
    %v2007 = vadd.f32 %v1710, %v2006
    %v2008 = vpop.f32.mrb[0].mxu0
    %v2009 = vadd.f32 %v1714, %v2008
    %v2010 = vpop.f32.mrb[0].mxu0
    %v2011 = vadd.f32 %v1710, %v2010
    %v2012 = vpop.f32.mrb[0].mxu0
    %v2013 = vadd.f32 %v1714, %v2012
    %2014 = vmatprep.mubr.bf16.mxu0 0
    %2015 = vmatmul.mubr.bf16.gmra.mrb[0].mxu0 %v1632
    %v2016 = vpop.f32.mrb[0].mxu0
    %v2017 = vadd.f32 %v1710, %v2016
    %v2018 = vpop.f32.mrb[0].mxu0
    %v2019 = vadd.f32 %v1714, %v2018
    %v2020 = vpop.f32.mrb[0].mxu0
    %v2021 = vadd.f32 %v1710, %v2020
    %v2022 = vpop.f32.mrb[0].mxu0
    %v2023 = vadd.f32 %v1714, %v2022
    %2024 = vdwg.mxu0
    %2025 = vst [vmem:[#allocation2] sm:$0xff] %v1914
    %2026 = vst [vmem:[#allocation2 + $0x8] sm:$0xff] %v1916
    %2027 = vst [vmem:[#allocation2 + $0x10] sm:$0xff] %v1987
    %2028 = vst [vmem:[#allocation2 + $0x18] sm:$0xff] %v1989
    %2029 = vst [vmem:[#allocation2 + $0x20] sm:$0xff] %v1918
    %2030 = vst [vmem:[#allocation2 + $0x28] sm:$0xff] %v1920
    %2031 = vst [vmem:[#allocation2 + $0x30] sm:$0xff] %v1991
    %2032 = vst [vmem:[#allocation2 + $0x38] sm:$0xff] %v1993
    %2033 = vst [vmem:[#allocation2 + $0x40] sm:$0xff] %v1924
    %2034 = vst [vmem:[#allocation2 + $0x48] sm:$0xff] %v1926
    %2035 = vst [vmem:[#allocation2 + $0x50] sm:$0xff] %v1997
    %2036 = vst [vmem:[#allocation2 + $0x58] sm:$0xff] %v1999
    %2037 = vst [vmem:[#allocation2 + $0x60] sm:$0xff] %v1928
    %2038 = vst [vmem:[#allocation2 + $0x68] sm:$0xff] %v1930
    %2039 = vst [vmem:[#allocation2 + $0x70] sm:$0xff] %v2001
    %2040 = vst [vmem:[#allocation2 + $0x78] sm:$0xff] %v2003
    %2041 = vst [vmem:[#allocation2 + $0x80] sm:$0xff] %v1934
    %2042 = vst [vmem:[#allocation2 + $0x88] sm:$0xff] %v1936
    %2043 = vst [vmem:[#allocation2 + $0x90] sm:$0xff] %v2007
    %2044 = vst [vmem:[#allocation2 + $0x98] sm:$0xff] %v2009
    %2045 = vst [vmem:[#allocation2 + $0xa0] sm:$0xff] %v1938
    %2046 = vst [vmem:[#allocation2 + $0xa8] sm:$0xff] %v1940
    %2047 = vst [vmem:[#allocation2 + $0xb0] sm:$0xff] %v2011
    %2048 = vst [vmem:[#allocation2 + $0xb8] sm:$0xff] %v2013
    %2049 = vst [vmem:[#allocation2 + $0xc0] sm:$0xff] %v1944
    %2050 = vst [vmem:[#allocation2 + $0xc8] sm:$0xff] %v1946
    %2051 = vst [vmem:[#allocation2 + $0xd0] sm:$0xff] %v2017
    %2052 = vst [vmem:[#allocation2 + $0xd8] sm:$0xff] %v2019
    %2053 = vst [vmem:[#allocation2 + $0xe0] sm:$0xff] %v1948
    %2054 = vst [vmem:[#allocation2 + $0xe8] sm:$0xff] %v1950
    %2055 = vst [vmem:[#allocation2 + $0xf0] sm:$0xff] %v2021
    %2056 = vst [vmem:[#allocation2 + $0xf8] sm:$0xff] %v2023
    %v2057 = vld [vmem:[#allocation2] sm:$0xff]
    %v2058 = vld [vmem:[#allocation2 + $0x8] sm:$0xff]
    %v2059 = vld [vmem:[#allocation2 + $0x10] sm:$0xff]
    %v2060 = vld [vmem:[#allocation2 + $0x18] sm:$0xff]
    %v2061 = vld [vmem:[#allocation2 + $0xe0] sm:$0xff]
    %v2062 = vld [vmem:[#allocation2 + $0xe8] sm:$0xff]
    %v2063 = vld [vmem:[#allocation2 + $0xf0] sm:$0xff]
    %v2064 = vld [vmem:[#allocation2 + $0xf8] sm:$0xff]
    %v2065 = vsel %vm127, %v2057, %v2061
    %v2066 = vsel %vm128, %v2058, %v2062
    %v2067 = vsel %vm129, %v2059, %v2063
    %v2068 = vsel %vm130, %v2060, %v2064
    %2069 = vst [vmem:[#allocation2] sm:$0xff] %v2065
    %2070 = vst [vmem:[#allocation2 + $0x8] sm:$0xff] %v2066
    %2071 = vst [vmem:[#allocation2 + $0x10] sm:$0xff] %v2067
    %2072 = vst [vmem:[#allocation2 + $0x18] sm:$0xff] %v2068
    %v2073 = vsel %vm127, %v2061, %v2057
    %v2074 = vsel %vm128, %v2062, %v2058
    %v2075 = vsel %vm129, %v2063, %v2059
    %v2076 = vsel %vm130, %v2064, %v2060
    %2077 = vst [vmem:[#allocation2 + $0xe0] sm:$0xff] %v2073
    %2078 = vst [vmem:[#allocation2 + $0xe8] sm:$0xff] %v2074
    %2079 = vst [vmem:[#allocation2 + $0xf0] sm:$0xff] %v2075
    %2080 = vst [vmem:[#allocation2 + $0xf8] sm:$0xff] %v2076
    %v2081 = vld [vmem:[#allocation2 + $0x20] sm:$0xff]
    %v2082 = vld [vmem:[#allocation2 + $0x28] sm:$0xff]
    %v2083 = vld [vmem:[#allocation2 + $0x30] sm:$0xff]
    %v2084 = vld [vmem:[#allocation2 + $0x38] sm:$0xff]
    %v2085 = vld [vmem:[#allocation2 + $0xc0] sm:$0xff]
    %v2086 = vld [vmem:[#allocation2 + $0xc8] sm:$0xff]
    %v2087 = vld [vmem:[#allocation2 + $0xd0] sm:$0xff]
    %v2088 = vld [vmem:[#allocation2 + $0xd8] sm:$0xff]
    %v2089 = vsel %vm127, %v2081, %v2085
    %v2090 = vsel %vm128, %v2082, %v2086
    %v2091 = vsel %vm129, %v2083, %v2087
    %v2092 = vsel %vm130, %v2084, %v2088
    %2093 = vst [vmem:[#allocation2 + $0x20] sm:$0xff] %v2089
    %2094 = vst [vmem:[#allocation2 + $0x28] sm:$0xff] %v2090
    %2095 = vst [vmem:[#allocation2 + $0x30] sm:$0xff] %v2091
    %2096 = vst [vmem:[#allocation2 + $0x38] sm:$0xff] %v2092
    %v2097 = vsel %vm127, %v2085, %v2081
    %v2098 = vsel %vm128, %v2086, %v2082
    %v2099 = vsel %vm129, %v2087, %v2083
    %v2100 = vsel %vm130, %v2088, %v2084
    %2101 = vst [vmem:[#allocation2 + $0xc0] sm:$0xff] %v2097
    %2102 = vst [vmem:[#allocation2 + $0xc8] sm:$0xff] %v2098
    %2103 = vst [vmem:[#allocation2 + $0xd0] sm:$0xff] %v2099
    %2104 = vst [vmem:[#allocation2 + $0xd8] sm:$0xff] %v2100
    %v2105 = vld [vmem:[#allocation2 + $0x40] sm:$0xff]
    %v2106 = vld [vmem:[#allocation2 + $0x48] sm:$0xff]
    %v2107 = vld [vmem:[#allocation2 + $0x50] sm:$0xff]
    %v2108 = vld [vmem:[#allocation2 + $0x58] sm:$0xff]
    %v2109 = vld [vmem:[#allocation2 + $0xa0] sm:$0xff]
    %v2110 = vld [vmem:[#allocation2 + $0xa8] sm:$0xff]
    %v2111 = vld [vmem:[#allocation2 + $0xb0] sm:$0xff]
    %v2112 = vld [vmem:[#allocation2 + $0xb8] sm:$0xff]
    %v2113 = vsel %vm127, %v2105, %v2109
    %v2114 = vsel %vm128, %v2106, %v2110
    %v2115 = vsel %vm129, %v2107, %v2111
    %v2116 = vsel %vm130, %v2108, %v2112
    %2117 = vst [vmem:[#allocation2 + $0x40] sm:$0xff] %v2113
    %2118 = vst [vmem:[#allocation2 + $0x48] sm:$0xff] %v2114
    %2119 = vst [vmem:[#allocation2 + $0x50] sm:$0xff] %v2115
    %2120 = vst [vmem:[#allocation2 + $0x58] sm:$0xff] %v2116
    %v2121 = vsel %vm127, %v2109, %v2105
    %v2122 = vsel %vm128, %v2110, %v2106
    %v2123 = vsel %vm129, %v2111, %v2107
    %v2124 = vsel %vm130, %v2112, %v2108
    %2125 = vst [vmem:[#allocation2 + $0xa0] sm:$0xff] %v2121
    %2126 = vst [vmem:[#allocation2 + $0xa8] sm:$0xff] %v2122
    %2127 = vst [vmem:[#allocation2 + $0xb0] sm:$0xff] %v2123
    %2128 = vst [vmem:[#allocation2 + $0xb8] sm:$0xff] %v2124
    %v2129 = vld [vmem:[#allocation2 + $0x60] sm:$0xff]
    %v2130 = vld [vmem:[#allocation2 + $0x68] sm:$0xff]
    %v2131 = vld [vmem:[#allocation2 + $0x70] sm:$0xff]
    %v2132 = vld [vmem:[#allocation2 + $0x78] sm:$0xff]
    %v2133 = vld [vmem:[#allocation2 + $0x80] sm:$0xff]
    %v2134 = vld [vmem:[#allocation2 + $0x88] sm:$0xff]
    %v2135 = vld [vmem:[#allocation2 + $0x90] sm:$0xff]
    %v2136 = vld [vmem:[#allocation2 + $0x98] sm:$0xff]
    %v2137 = vsel %vm127, %v2129, %v2133
    %v2138 = vsel %vm128, %v2130, %v2134
    %v2139 = vsel %vm129, %v2131, %v2135
    %v2140 = vsel %vm130, %v2132, %v2136
    %2141 = vst [vmem:[#allocation2 + $0x60] sm:$0xff] %v2137
    %2142 = vst [vmem:[#allocation2 + $0x68] sm:$0xff] %v2138
    %2143 = vst [vmem:[#allocation2 + $0x70] sm:$0xff] %v2139
    %2144 = vst [vmem:[#allocation2 + $0x78] sm:$0xff] %v2140
    %v2145 = vsel %vm127, %v2133, %v2129
    %v2146 = vsel %vm128, %v2134, %v2130
    %v2147 = vsel %vm129, %v2135, %v2131
    %v2148 = vsel %vm130, %v2136, %v2132
    %2149 = vst [vmem:[#allocation2 + $0x80] sm:$0xff] %v2145
    %2150 = vst [vmem:[#allocation2 + $0x88] sm:$0xff] %v2146
    %2151 = vst [vmem:[#allocation2 + $0x90] sm:$0xff] %v2147
    %2152 = vst [vmem:[#allocation2 + $0x98] sm:$0xff] %v2148
    %v2153 = vld [vmem:[#allocation2] sm:$0xff]
    %v2154 = vld [vmem:[#allocation2 + $0x8] sm:$0xff]
    %v2155 = vld [vmem:[#allocation2 + $0x10] sm:$0xff]
    %v2156 = vld [vmem:[#allocation2 + $0x18] sm:$0xff]
    %v2189 = vunpack.c.l.b16 %v1665
    %v2190 = vunpack.c.h.b16 %v1665
    %v2191 = vunpack.c.l.b16 %v1666
    %v2192 = vunpack.c.h.b16 %v1666
    %v2193 = vunpack.c.l.b16 %v1667
    %v2194 = vunpack.c.h.b16 %v1667
    %v2195 = vunpack.c.l.b16 %v1668
    %v2196 = vunpack.c.h.b16 %v1668
    %v2197 = vunpack.c.l.b16 %v1669
    %v2198 = vunpack.c.h.b16 %v1669
    %v2199 = vunpack.c.l.b16 %v1670
    %v2200 = vunpack.c.h.b16 %v1670
    %v2201 = vunpack.c.l.b16 %v1671
    %v2202 = vunpack.c.h.b16 %v1671
    %v2203 = vunpack.c.l.b16 %v1672
    %v2204 = vunpack.c.h.b16 %v1672
    %v2205 = vunpack.c.l.b16 %v1673
    %v2206 = vunpack.c.h.b16 %v1673
    %v2207 = vunpack.c.l.b16 %v1674
    %v2208 = vunpack.c.h.b16 %v1674
    %v2209 = vunpack.c.l.b16 %v1675
    %v2210 = vunpack.c.h.b16 %v1675
    %v2211 = vunpack.c.l.b16 %v1676
    %v2212 = vunpack.c.h.b16 %v1676
    %v2213 = vunpack.c.l.b16 %v1677
    %v2214 = vunpack.c.h.b16 %v1677
    %v2215 = vunpack.c.l.b16 %v1678
    %v2216 = vunpack.c.h.b16 %v1678
    %v2217 = vunpack.c.l.b16 %v1679
    %v2218 = vunpack.c.h.b16 %v1679
    %v2219 = vunpack.c.l.b16 %v1680
    %v2220 = vunpack.c.h.b16 %v1680
    %v2221 = vunpack.c.l.b16 %v1681
    %v2222 = vunpack.c.h.b16 %v1681
    %v2223 = vunpack.c.l.b16 %v1682
    %v2224 = vunpack.c.h.b16 %v1682
    %v2225 = vunpack.c.l.b16 %v1683
    %v2226 = vunpack.c.h.b16 %v1683
    %v2227 = vunpack.c.l.b16 %v1684
    %v2228 = vunpack.c.h.b16 %v1684
    %v2229 = vunpack.c.l.b16 %v1685
    %v2230 = vunpack.c.h.b16 %v1685
    %v2231 = vunpack.c.l.b16 %v1686
    %v2232 = vunpack.c.h.b16 %v1686
    %v2233 = vunpack.c.l.b16 %v1687
    %v2234 = vunpack.c.h.b16 %v1687
    %v2235 = vunpack.c.l.b16 %v1688
    %v2236 = vunpack.c.h.b16 %v1688
    %v2237 = vunpack.c.l.b16 %v1689
    %v2238 = vunpack.c.h.b16 %v1689
    %v2239 = vunpack.c.l.b16 %v1690
    %v2240 = vunpack.c.h.b16 %v1690
    %v2241 = vunpack.c.l.b16 %v1691
    %v2242 = vunpack.c.h.b16 %v1691
    %v2243 = vunpack.c.l.b16 %v1692
    %v2244 = vunpack.c.h.b16 %v1692
    %v2245 = vunpack.c.l.b16 %v1693
    %v2246 = vunpack.c.h.b16 %v1693
    %v2247 = vunpack.c.l.b16 %v1694
    %v2248 = vunpack.c.h.b16 %v1694
    %v2249 = vunpack.c.l.b16 %v1695
    %v2250 = vunpack.c.h.b16 %v1695
    %v2251 = vunpack.c.l.b16 %v1696
    %v2252 = vunpack.c.h.b16 %v1696
    %v2253 = vpack.c.b16 %v2193, %v2189
    %v2254 = vpack.c.b16 %v2194, %v2190
    %v2255 = vpack.c.b16 %v2195, %v2191
    %v2256 = vpack.c.b16 %v2196, %v2192
    %v2257 = vpack.c.b16 %v2201, %v2197
    %v2258 = vpack.c.b16 %v2202, %v2198
    %v2259 = vpack.c.b16 %v2203, %v2199
    %v2260 = vpack.c.b16 %v2204, %v2200
    %v2261 = vpack.c.b16 %v2209, %v2205
    %v2262 = vpack.c.b16 %v2210, %v2206
    %v2263 = vpack.c.b16 %v2211, %v2207
    %v2264 = vpack.c.b16 %v2212, %v2208
    %v2265 = vpack.c.b16 %v2217, %v2213
    %v2266 = vpack.c.b16 %v2218, %v2214
    %v2267 = vpack.c.b16 %v2219, %v2215
    %v2268 = vpack.c.b16 %v2220, %v2216
    %v2269 = vpack.c.b16 %v2225, %v2221
    %v2270 = vpack.c.b16 %v2226, %v2222
    %v2271 = vpack.c.b16 %v2227, %v2223
    %v2272 = vpack.c.b16 %v2228, %v2224
    %v2273 = vpack.c.b16 %v2233, %v2229
    %v2274 = vpack.c.b16 %v2234, %v2230
    %v2275 = vpack.c.b16 %v2235, %v2231
    %v2276 = vpack.c.b16 %v2236, %v2232
    %v2277 = vpack.c.b16 %v2241, %v2237
    %v2278 = vpack.c.b16 %v2242, %v2238
    %v2279 = vpack.c.b16 %v2243, %v2239
    %v2280 = vpack.c.b16 %v2244, %v2240
    %v2281 = vpack.c.b16 %v2249, %v2245
    %v2282 = vpack.c.b16 %v2250, %v2246
    %v2283 = vpack.c.b16 %v2251, %v2247
    %v2284 = vpack.c.b16 %v2252, %v2248
    %2317 = vmatprep.subr.bf16.mxu0 %v2254
    %2318 = vmatpush1.bf16.msra.mxu0 %v2253
    %2319 = vmatprep.subr.bf16.mxu0 %v2258
    %2320 = vmatpush1.bf16.msra.mxu0 %v2257
    %2321 = vmatprep.subr.bf16.mxu0 %v2262
    %2322 = vmatpush1.bf16.msra.mxu0 %v2261
    %2323 = vmatprep.subr.bf16.mxu0 %v2266
    %2324 = vmatpush1.bf16.msra.mxu0 %v2265
    %2325 = vmatprep.subr.bf16.mxu0 %v2270
    %2326 = vmatpush1.bf16.msra.mxu0 %v2269
    %2327 = vmatprep.subr.bf16.mxu0 %v2274
    %2328 = vmatpush1.bf16.msra.mxu0 %v2273
    %2329 = vmatprep.subr.bf16.mxu0 %v2278
    %2330 = vmatpush1.bf16.msra.mxu0 %v2277
    %2331 = vmatprep.subr.bf16.mxu0 %v2282
    %2332 = vmatpush1.bf16.msra.mxu0 %v2281
    %2333 = vmatprep.subr.bf16.mxu0 0
    %2334 = vmatpush1.bf16.msra.mxu0 0
    %2335 = vmatprep.subr.bf16.mxu0 0
    %2336 = vmatpush1.bf16.msra.mxu0 0
    %2337 = vmatprep.subr.bf16.mxu0 0
    %2338 = vmatpush1.bf16.msra.mxu0 0
    %2339 = vmatprep.subr.bf16.mxu0 0
    %2340 = vmatpush1.bf16.msra.mxu0 0
    %2341 = vmatprep.subr.bf16.mxu0 0
    %2342 = vmatpush1.bf16.msra.mxu0 0
    %2343 = vmatprep.subr.bf16.mxu0 0
    %2344 = vmatpush1.bf16.msra.mxu0 0
    %2345 = vmatprep.subr.bf16.mxu0 0
    %2346 = vmatpush1.bf16.msra.mxu0 0
    %2347 = vmatprep.subr.bf16.mxu0 0
    %2348 = vmatpush1.bf16.msra.mxu0 0
    %2349 = vmatprep.mubr.bf16.mxu0 0
    %2350 = vmatmul.mubr.bf16.gmra.mrb[0].mxu0 0
    %v2351 = vpop.f32.mrb[0].mxu0
    %v2352 = vadd.f32 0.0, %v2351
    %v2353 = vpop.f32.mrb[0].mxu0
    %v2354 = vadd.f32 0.0, %v2353
    %v2355 = vpop.f32.mrb[0].mxu0
    %v2356 = vpop.f32.mrb[0].mxu0
    %2357 = vdwg.mxu0
    %2358 = vmatprep.subr.bf16.mxu0 %v2256
    %2359 = vmatpush1.bf16.msra.mxu0 %v2255
    %2360 = vmatprep.subr.bf16.mxu0 %v2260
    %2361 = vmatpush1.bf16.msra.mxu0 %v2259
    %2362 = vmatprep.subr.bf16.mxu0 %v2264
    %2363 = vmatpush1.bf16.msra.mxu0 %v2263
    %2364 = vmatprep.subr.bf16.mxu0 %v2268
    %2365 = vmatpush1.bf16.msra.mxu0 %v2267
    %2366 = vmatprep.subr.bf16.mxu0 %v2272
    %2367 = vmatpush1.bf16.msra.mxu0 %v2271
    %2368 = vmatprep.subr.bf16.mxu0 %v2276
    %2369 = vmatpush1.bf16.msra.mxu0 %v2275
    %2370 = vmatprep.subr.bf16.mxu0 %v2280
    %2371 = vmatpush1.bf16.msra.mxu0 %v2279
    %2372 = vmatprep.subr.bf16.mxu0 %v2284
    %2373 = vmatpush1.bf16.msra.mxu0 %v2283
    %2374 = vmatprep.subr.bf16.mxu0 0
    %2375 = vmatpush1.bf16.msra.mxu0 0
    %2376 = vmatprep.subr.bf16.mxu0 0
    %2377 = vmatpush1.bf16.msra.mxu0 0
    %2378 = vmatprep.subr.bf16.mxu0 0
    %2379 = vmatpush1.bf16.msra.mxu0 0
    %2380 = vmatprep.subr.bf16.mxu0 0
    %2381 = vmatpush1.bf16.msra.mxu0 0
    %2382 = vmatprep.subr.bf16.mxu0 0
    %2383 = vmatpush1.bf16.msra.mxu0 0
    %2384 = vmatprep.subr.bf16.mxu0 0
    %2385 = vmatpush1.bf16.msra.mxu0 0
    %2386 = vmatprep.subr.bf16.mxu0 0
    %2387 = vmatpush1.bf16.msra.mxu0 0
    %2388 = vmatprep.subr.bf16.mxu0 0
    %2389 = vmatpush1.bf16.msra.mxu0 0
    %2390 = vmatprep.mubr.bf16.mxu0 0
    %2391 = vmatmul.mubr.bf16.gmra.mrb[0].mxu0 0
    %v2392 = vpop.f32.mrb[0].mxu0
    %v2393 = vadd.f32 0.0, %v2392
    %v2394 = vpop.f32.mrb[0].mxu0
    %v2395 = vadd.f32 0.0, %v2394
    %v2396 = vpop.f32.mrb[0].mxu0
    %v2397 = vpop.f32.mrb[0].mxu0
    %2398 = vdwg.mxu0
    %v2399 = vadd.f32 %v2153, %v2352
    %v2400 = vadd.f32 %v2154, %v2354
    %v2401 = vadd.f32 %v2155, %v2393
    %v2402 = vadd.f32 %v2156, %v2395
    %v2403 = vxor.u32 %v2399, 2147483648
    %v2404 = vxor.u32 %v2400, 2147483648
    %v2405 = vmul.f32 %v2403, 1.442695
    %v2406 = vpow.pop %v2405
    %v2407 = vmul.f32 %v2404, 1.442695
    %v2408 = vpow.pop %v2407
    %v2409 = vadd.f32 %v2406, 1.0
    %v2410 = vadd.f32 %v2408, 1.0
    %v2411 = vrcp.pop %v2409
    %v2412 = vmul.f32 1.0, %v2411
    %v2413 = vrcp.pop %v2410
    %v2414 = vmul.f32 1.0, %v2413
    %v2415 = vtanh.pop %v2401
    %v2416 = vxor.u32 %v2402, 2147483648
    %v2417 = vmul.f32 %v2416, 1.442695
    %v2418 = vpow.pop %v2417
    %v2419 = vadd.f32 %v2418, 1.0
    %v2420 = vrcp.pop %v2419
    %v2421 = vmul.f32 1.0, %v2420
    %v2422 = vmul.f32 %v2414, 0.0
    %v2423 = vmul.f32 %v2412, %v2415
    %v2424 = vadd.f32 %v2422, %v2423
    %v2425 = vtanh.pop %v2424
    %v2426 = vmul.f32 %v2421, %v2425
    %v2427 = vld [vmem:[#allocation2 + $0x20] sm:$0xff]
    %v2428 = vld [vmem:[#allocation2 + $0x28] sm:$0xff]
    %v2429 = vld [vmem:[#allocation2 + $0x30] sm:$0xff]
    %v2430 = vld [vmem:[#allocation2 + $0x38] sm:$0xff]
    %v2431 = vpack.c.bf16 %v2426, %v2426
    %2432 = vmatprep.subr.bf16.mxu0 %v2254
    %2433 = vmatpush1.bf16.msra.mxu0 %v2253
    %2434 = vmatprep.subr.bf16.mxu0 %v2258
    %2435 = vmatpush1.bf16.msra.mxu0 %v2257
    %2436 = vmatprep.subr.bf16.mxu0 %v2262
    %2437 = vmatpush1.bf16.msra.mxu0 %v2261
    %2438 = vmatprep.subr.bf16.mxu0 %v2266
    %2439 = vmatpush1.bf16.msra.mxu0 %v2265
    %2440 = vmatprep.subr.bf16.mxu0 %v2270
    %2441 = vmatpush1.bf16.msra.mxu0 %v2269
    %2442 = vmatprep.subr.bf16.mxu0 %v2274
    %2443 = vmatpush1.bf16.msra.mxu0 %v2273
    %2444 = vmatprep.subr.bf16.mxu0 %v2278
    %2445 = vmatpush1.bf16.msra.mxu0 %v2277
    %2446 = vmatprep.subr.bf16.mxu0 %v2282
    %2447 = vmatpush1.bf16.msra.mxu0 %v2281
    %2448 = vmatprep.subr.bf16.mxu0 0
    %2449 = vmatpush1.bf16.msra.mxu0 0
    %2450 = vmatprep.subr.bf16.mxu0 0
    %2451 = vmatpush1.bf16.msra.mxu0 0
    %2452 = vmatprep.subr.bf16.mxu0 0
    %2453 = vmatpush1.bf16.msra.mxu0 0
    %2454 = vmatprep.subr.bf16.mxu0 0
    %2455 = vmatpush1.bf16.msra.mxu0 0
    %2456 = vmatprep.subr.bf16.mxu0 0
    %2457 = vmatpush1.bf16.msra.mxu0 0
    %2458 = vmatprep.subr.bf16.mxu0 0
    %2459 = vmatpush1.bf16.msra.mxu0 0
    %2460 = vmatprep.subr.bf16.mxu0 0
    %2461 = vmatpush1.bf16.msra.mxu0 0
    %2462 = vmatprep.subr.bf16.mxu0 0
    %2463 = vmatpush1.bf16.msra.mxu0 0
    %2464 = vmatprep.mubr.bf16.mxu0 0
    %2465 = vmatmul.mubr.bf16.gmra.mrb[0].mxu0 %v2431
    %v2466 = vpop.f32.mrb[0].mxu0
    %v2467 = vadd.f32 0.0, %v2466
    %v2468 = vpop.f32.mrb[0].mxu0
    %v2469 = vadd.f32 0.0, %v2468
    %v2470 = vpop.f32.mrb[0].mxu0
    %v2471 = vpop.f32.mrb[0].mxu0
    %2472 = vdwg.mxu0
    %2473 = vmatprep.subr.bf16.mxu0 %v2256
    %2474 = vmatpush1.bf16.msra.mxu0 %v2255
    %2475 = vmatprep.subr.bf16.mxu0 %v2260
    %2476 = vmatpush1.bf16.msra.mxu0 %v2259
    %2477 = vmatprep.subr.bf16.mxu0 %v2264
    %2478 = vmatpush1.bf16.msra.mxu0 %v2263
    %2479 = vmatprep.subr.bf16.mxu0 %v2268
    %2480 = vmatpush1.bf16.msra.mxu0 %v2267
    %2481 = vmatprep.subr.bf16.mxu0 %v2272
    %2482 = vmatpush1.bf16.msra.mxu0 %v2271
    %2483 = vmatprep.subr.bf16.mxu0 %v2276
    %2484 = vmatpush1.bf16.msra.mxu0 %v2275
    %2485 = vmatprep.subr.bf16.mxu0 %v2280
    %2486 = vmatpush1.bf16.msra.mxu0 %v2279
    %2487 = vmatprep.subr.bf16.mxu0 %v2284
    %2488 = vmatpush1.bf16.msra.mxu0 %v2283
    %2489 = vmatprep.subr.bf16.mxu0 0
    %2490 = vmatpush1.bf16.msra.mxu0 0
    %2491 = vmatprep.subr.bf16.mxu0 0
    %2492 = vmatpush1.bf16.msra.mxu0 0
    %2493 = vmatprep.subr.bf16.mxu0 0
    %2494 = vmatpush1.bf16.msra.mxu0 0
    %2495 = vmatprep.subr.bf16.mxu0 0
    %2496 = vmatpush1.bf16.msra.mxu0 0
    %2497 = vmatprep.subr.bf16.mxu0 0
    %2498 = vmatpush1.bf16.msra.mxu0 0
    %2499 = vmatprep.subr.bf16.mxu0 0
    %2500 = vmatpush1.bf16.msra.mxu0 0
    %2501 = vmatprep.subr.bf16.mxu0 0
    %2502 = vmatpush1.bf16.msra.mxu0 0
    %2503 = vmatprep.subr.bf16.mxu0 0
    %2504 = vmatpush1.bf16.msra.mxu0 0
    %2505 = vmatprep.mubr.bf16.mxu0 0
    %2506 = vmatmul.mubr.bf16.gmra.mrb[0].mxu0 %v2431
    %v2507 = vpop.f32.mrb[0].mxu0
    %v2508 = vadd.f32 0.0, %v2507
    %v2509 = vpop.f32.mrb[0].mxu0
    %v2510 = vadd.f32 0.0, %v2509
    %v2511 = vpop.f32.mrb[0].mxu0
    %v2512 = vpop.f32.mrb[0].mxu0
    %2513 = vdwg.mxu0
    %v2514 = vadd.f32 %v2427, %v2467
    %v2515 = vadd.f32 %v2428, %v2469
    %v2516 = vadd.f32 %v2429, %v2508
    %v2517 = vadd.f32 %v2430, %v2510
    %v2518 = vxor.u32 %v2514, 2147483648
    %v2519 = vxor.u32 %v2515, 2147483648
    %v2520 = vmul.f32 %v2518, 1.442695
    %v2521 = vpow.pop %v2520
    %v2522 = vmul.f32 %v2519, 1.442695
    %v2523 = vpow.pop %v2522
    %v2524 = vadd.f32 %v2521, 1.0
    %v2525 = vadd.f32 %v2523, 1.0
    %v2526 = vrcp.pop %v2524
    %v2527 = vmul.f32 1.0, %v2526
    %v2528 = vrcp.pop %v2525
    %v2529 = vmul.f32 1.0, %v2528
    %v2530 = vtanh.pop %v2516
    %v2531 = vxor.u32 %v2517, 2147483648
    %v2532 = vmul.f32 %v2531, 1.442695
    %v2533 = vpow.pop %v2532
    %v2534 = vadd.f32 %v2533, 1.0
    %v2535 = vrcp.pop %v2534
    %v2536 = vmul.f32 1.0, %v2535
    %v2537 = vmul.f32 %v2529, %v2424
    %v2538 = vmul.f32 %v2527, %v2530
    %v2539 = vadd.f32 %v2537, %v2538
    %v2540 = vtanh.pop %v2539
    %v2541 = vmul.f32 %v2536, %v2540
    %v2542 = vld [vmem:[#allocation2 + $0x40] sm:$0xff]
    %v2543 = vld [vmem:[#allocation2 + $0x48] sm:$0xff]
    %v2544 = vld [vmem:[#allocation2 + $0x50] sm:$0xff]
    %v2545 = vld [vmem:[#allocation2 + $0x58] sm:$0xff]
    %v2546 = vpack.c.bf16 %v2541, %v2541
    %2547 = vmatprep.subr.bf16.mxu0 %v2254
    %2548 = vmatpush1.bf16.msra.mxu0 %v2253
    %2549 = vmatprep.subr.bf16.mxu0 %v2258
    %2550 = vmatpush1.bf16.msra.mxu0 %v2257
    %2551 = vmatprep.subr.bf16.mxu0 %v2262
    %2552 = vmatpush1.bf16.msra.mxu0 %v2261
    %2553 = vmatprep.subr.bf16.mxu0 %v2266
    %2554 = vmatpush1.bf16.msra.mxu0 %v2265
    %2555 = vmatprep.subr.bf16.mxu0 %v2270
    %2556 = vmatpush1.bf16.msra.mxu0 %v2269
    %2557 = vmatprep.subr.bf16.mxu0 %v2274
    %2558 = vmatpush1.bf16.msra.mxu0 %v2273
    %2559 = vmatprep.subr.bf16.mxu0 %v2278
    %2560 = vmatpush1.bf16.msra.mxu0 %v2277
    %2561 = vmatprep.subr.bf16.mxu0 %v2282
    %2562 = vmatpush1.bf16.msra.mxu0 %v2281
    %2563 = vmatprep.subr.bf16.mxu0 0
    %2564 = vmatpush1.bf16.msra.mxu0 0
    %2565 = vmatprep.subr.bf16.mxu0 0
    %2566 = vmatpush1.bf16.msra.mxu0 0
    %2567 = vmatprep.subr.bf16.mxu0 0
    %2568 = vmatpush1.bf16.msra.mxu0 0
    %2569 = vmatprep.subr.bf16.mxu0 0
    %2570 = vmatpush1.bf16.msra.mxu0 0
    %2571 = vmatprep.subr.bf16.mxu0 0
    %2572 = vmatpush1.bf16.msra.mxu0 0
    %2573 = vmatprep.subr.bf16.mxu0 0
    %2574 = vmatpush1.bf16.msra.mxu0 0
    %2575 = vmatprep.subr.bf16.mxu0 0
    %2576 = vmatpush1.bf16.msra.mxu0 0
    %2577 = vmatprep.subr.bf16.mxu0 0
    %2578 = vmatpush1.bf16.msra.mxu0 0
    %2579 = vmatprep.mubr.bf16.mxu0 0
    %2580 = vmatmul.mubr.bf16.gmra.mrb[0].mxu0 %v2546
    %v2581 = vpop.f32.mrb[0].mxu0
    %v2582 = vadd.f32 0.0, %v2581
    %v2583 = vpop.f32.mrb[0].mxu0
    %v2584 = vadd.f32 0.0, %v2583
    %v2585 = vpop.f32.mrb[0].mxu0
    %v2586 = vpop.f32.mrb[0].mxu0
    %2587 = vdwg.mxu0
    %2588 = vmatprep.subr.bf16.mxu0 %v2256
    %2589 = vmatpush1.bf16.msra.mxu0 %v2255
    %2590 = vmatprep.subr.bf16.mxu0 %v2260
    %2591 = vmatpush1.bf16.msra.mxu0 %v2259
    %2592 = vmatprep.subr.bf16.mxu0 %v2264
    %2593 = vmatpush1.bf16.msra.mxu0 %v2263
    %2594 = vmatprep.subr.bf16.mxu0 %v2268
    %2595 = vmatpush1.bf16.msra.mxu0 %v2267
    %2596 = vmatprep.subr.bf16.mxu0 %v2272
    %2597 = vmatpush1.bf16.msra.mxu0 %v2271
    %2598 = vmatprep.subr.bf16.mxu0 %v2276
    %2599 = vmatpush1.bf16.msra.mxu0 %v2275
    %2600 = vmatprep.subr.bf16.mxu0 %v2280
    %2601 = vmatpush1.bf16.msra.mxu0 %v2279
    %2602 = vmatprep.subr.bf16.mxu0 %v2284
    %2603 = vmatpush1.bf16.msra.mxu0 %v2283
    %2604 = vmatprep.subr.bf16.mxu0 0
    %2605 = vmatpush1.bf16.msra.mxu0 0
    %2606 = vmatprep.subr.bf16.mxu0 0
    %2607 = vmatpush1.bf16.msra.mxu0 0
    %2608 = vmatprep.subr.bf16.mxu0 0
    %2609 = vmatpush1.bf16.msra.mxu0 0
    %2610 = vmatprep.subr.bf16.mxu0 0
    %2611 = vmatpush1.bf16.msra.mxu0 0
    %2612 = vmatprep.subr.bf16.mxu0 0
    %2613 = vmatpush1.bf16.msra.mxu0 0
    %2614 = vmatprep.subr.bf16.mxu0 0
    %2615 = vmatpush1.bf16.msra.mxu0 0
    %2616 = vmatprep.subr.bf16.mxu0 0
    %2617 = vmatpush1.bf16.msra.mxu0 0
    %2618 = vmatprep.subr.bf16.mxu0 0
    %2619 = vmatpush1.bf16.msra.mxu0 0
    %2620 = vmatprep.mubr.bf16.mxu0 0
    %2621 = vmatmul.mubr.bf16.gmra.mrb[0].mxu0 %v2546
    %v2622 = vpop.f32.mrb[0].mxu0
    %v2623 = vadd.f32 0.0, %v2622
    %v2624 = vpop.f32.mrb[0].mxu0
    %v2625 = vadd.f32 0.0, %v2624
    %v2626 = vpop.f32.mrb[0].mxu0
    %v2627 = vpop.f32.mrb[0].mxu0
    %2628 = vdwg.mxu0
    %v2629 = vadd.f32 %v2542, %v2582
    %v2630 = vadd.f32 %v2543, %v2584
    %v2631 = vadd.f32 %v2544, %v2623
    %v2632 = vadd.f32 %v2545, %v2625
    %v2633 = vxor.u32 %v2629, 2147483648
    %v2634 = vxor.u32 %v2630, 2147483648
    %v2635 = vmul.f32 %v2633, 1.442695
    %v2636 = vpow.pop %v2635
    %v2637 = vmul.f32 %v2634, 1.442695
    %v2638 = vpow.pop %v2637
    %v2639 = vadd.f32 %v2636, 1.0
    %v2640 = vadd.f32 %v2638, 1.0
    %v2641 = vrcp.pop %v2639
    %v2642 = vmul.f32 1.0, %v2641
    %v2643 = vrcp.pop %v2640
    %v2644 = vmul.f32 1.0, %v2643
    %v2645 = vtanh.pop %v2631
    %v2646 = vxor.u32 %v2632, 2147483648
    %v2647 = vmul.f32 %v2646, 1.442695
    %v2648 = vpow.pop %v2647
    %v2649 = vadd.f32 %v2648, 1.0
    %v2650 = vrcp.pop %v2649
    %v2651 = vmul.f32 1.0, %v2650
    %v2652 = vmul.f32 %v2644, %v2539
    %v2653 = vmul.f32 %v2642, %v2645
    %v2654 = vadd.f32 %v2652, %v2653
    %v2655 = vtanh.pop %v2654
    %v2656 = vmul.f32 %v2651, %v2655
    %v2657 = vld [vmem:[#allocation2 + $0x60] sm:$0xff]
    %v2658 = vld [vmem:[#allocation2 + $0x68] sm:$0xff]
    %v2659 = vld [vmem:[#allocation2 + $0x70] sm:$0xff]
    %v2660 = vld [vmem:[#allocation2 + $0x78] sm:$0xff]
    %v2661 = vpack.c.bf16 %v2656, %v2656
    %2662 = vmatprep.subr.bf16.mxu0 %v2254
    %2663 = vmatpush1.bf16.msra.mxu0 %v2253
    %2664 = vmatprep.subr.bf16.mxu0 %v2258
    %2665 = vmatpush1.bf16.msra.mxu0 %v2257
    %2666 = vmatprep.subr.bf16.mxu0 %v2262
    %2667 = vmatpush1.bf16.msra.mxu0 %v2261
    %2668 = vmatprep.subr.bf16.mxu0 %v2266
    %2669 = vmatpush1.bf16.msra.mxu0 %v2265
    %2670 = vmatprep.subr.bf16.mxu0 %v2270
    %2671 = vmatpush1.bf16.msra.mxu0 %v2269
    %2672 = vmatprep.subr.bf16.mxu0 %v2274
    %2673 = vmatpush1.bf16.msra.mxu0 %v2273
    %2674 = vmatprep.subr.bf16.mxu0 %v2278
    %2675 = vmatpush1.bf16.msra.mxu0 %v2277
    %2676 = vmatprep.subr.bf16.mxu0 %v2282
    %2677 = vmatpush1.bf16.msra.mxu0 %v2281
    %2678 = vmatprep.subr.bf16.mxu0 0
    %2679 = vmatpush1.bf16.msra.mxu0 0
    %2680 = vmatprep.subr.bf16.mxu0 0
    %2681 = vmatpush1.bf16.msra.mxu0 0
    %2682 = vmatprep.subr.bf16.mxu0 0
    %2683 = vmatpush1.bf16.msra.mxu0 0
    %2684 = vmatprep.subr.bf16.mxu0 0
    %2685 = vmatpush1.bf16.msra.mxu0 0
    %2686 = vmatprep.subr.bf16.mxu0 0
    %2687 = vmatpush1.bf16.msra.mxu0 0
    %2688 = vmatprep.subr.bf16.mxu0 0
    %2689 = vmatpush1.bf16.msra.mxu0 0
    %2690 = vmatprep.subr.bf16.mxu0 0
    %2691 = vmatpush1.bf16.msra.mxu0 0
    %2692 = vmatprep.subr.bf16.mxu0 0
    %2693 = vmatpush1.bf16.msra.mxu0 0
    %2694 = vmatprep.mubr.bf16.mxu0 0
    %2695 = vmatmul.mubr.bf16.gmra.mrb[0].mxu0 %v2661
    %v2696 = vpop.f32.mrb[0].mxu0
    %v2697 = vadd.f32 0.0, %v2696
    %v2698 = vpop.f32.mrb[0].mxu0
    %v2699 = vadd.f32 0.0, %v2698
    %v2700 = vpop.f32.mrb[0].mxu0
    %v2701 = vpop.f32.mrb[0].mxu0
    %2702 = vdwg.mxu0
    %2703 = vmatprep.subr.bf16.mxu0 %v2256
    %2704 = vmatpush1.bf16.msra.mxu0 %v2255
    %2705 = vmatprep.subr.bf16.mxu0 %v2260
    %2706 = vmatpush1.bf16.msra.mxu0 %v2259
    %2707 = vmatprep.subr.bf16.mxu0 %v2264
    %2708 = vmatpush1.bf16.msra.mxu0 %v2263
    %2709 = vmatprep.subr.bf16.mxu0 %v2268
    %2710 = vmatpush1.bf16.msra.mxu0 %v2267
    %2711 = vmatprep.subr.bf16.mxu0 %v2272
    %2712 = vmatpush1.bf16.msra.mxu0 %v2271
    %2713 = vmatprep.subr.bf16.mxu0 %v2276
    %2714 = vmatpush1.bf16.msra.mxu0 %v2275
    %2715 = vmatprep.subr.bf16.mxu0 %v2280
    %2716 = vmatpush1.bf16.msra.mxu0 %v2279
    %2717 = vmatprep.subr.bf16.mxu0 %v2284
    %2718 = vmatpush1.bf16.msra.mxu0 %v2283
    %2719 = vmatprep.subr.bf16.mxu0 0
    %2720 = vmatpush1.bf16.msra.mxu0 0
    %2721 = vmatprep.subr.bf16.mxu0 0
    %2722 = vmatpush1.bf16.msra.mxu0 0
    %2723 = vmatprep.subr.bf16.mxu0 0
    %2724 = vmatpush1.bf16.msra.mxu0 0
    %2725 = vmatprep.subr.bf16.mxu0 0
    %2726 = vmatpush1.bf16.msra.mxu0 0
    %2727 = vmatprep.subr.bf16.mxu0 0
    %2728 = vmatpush1.bf16.msra.mxu0 0
    %2729 = vmatprep.subr.bf16.mxu0 0
    %2730 = vmatpush1.bf16.msra.mxu0 0
    %2731 = vmatprep.subr.bf16.mxu0 0
    %2732 = vmatpush1.bf16.msra.mxu0 0
    %2733 = vmatprep.subr.bf16.mxu0 0
    %2734 = vmatpush1.bf16.msra.mxu0 0
    %2735 = vmatprep.mubr.bf16.mxu0 0
    %2736 = vmatmul.mubr.bf16.gmra.mrb[0].mxu0 %v2661
    %v2737 = vpop.f32.mrb[0].mxu0
    %v2738 = vadd.f32 0.0, %v2737
    %v2739 = vpop.f32.mrb[0].mxu0
    %v2740 = vadd.f32 0.0, %v2739
    %v2741 = vpop.f32.mrb[0].mxu0
    %v2742 = vpop.f32.mrb[0].mxu0
    %2743 = vdwg.mxu0
    %v2744 = vadd.f32 %v2657, %v2697
    %v2745 = vadd.f32 %v2658, %v2699
    %v2746 = vadd.f32 %v2659, %v2738
    %v2747 = vadd.f32 %v2660, %v2740
    %v2748 = vxor.u32 %v2744, 2147483648
    %v2749 = vxor.u32 %v2745, 2147483648
    %v2750 = vmul.f32 %v2748, 1.442695
    %v2751 = vpow.pop %v2750
    %v2752 = vmul.f32 %v2749, 1.442695
    %v2753 = vpow.pop %v2752
    %v2754 = vadd.f32 %v2751, 1.0
    %v2755 = vadd.f32 %v2753, 1.0
    %v2756 = vrcp.pop %v2754
    %v2757 = vmul.f32 1.0, %v2756
    %v2758 = vrcp.pop %v2755
    %v2759 = vmul.f32 1.0, %v2758
    %v2760 = vtanh.pop %v2746
    %v2761 = vxor.u32 %v2747, 2147483648
    %v2762 = vmul.f32 %v2761, 1.442695
    %v2763 = vpow.pop %v2762
    %v2764 = vadd.f32 %v2763, 1.0
    %v2765 = vrcp.pop %v2764
    %v2766 = vmul.f32 1.0, %v2765
    %v2767 = vmul.f32 %v2759, %v2654
    %v2768 = vmul.f32 %v2757, %v2760
    %v2769 = vadd.f32 %v2767, %v2768
    %v2770 = vtanh.pop %v2769
    %v2771 = vmul.f32 %v2766, %v2770
    %v2772 = vld [vmem:[#allocation2 + $0x80] sm:$0xff]
    %v2773 = vld [vmem:[#allocation2 + $0x88] sm:$0xff]
    %v2774 = vld [vmem:[#allocation2 + $0x90] sm:$0xff]
    %v2775 = vld [vmem:[#allocation2 + $0x98] sm:$0xff]
    %v2776 = vpack.c.bf16 %v2771, %v2771
    %2777 = vmatprep.subr.bf16.mxu0 %v2254
    %2778 = vmatpush1.bf16.msra.mxu0 %v2253
    %2779 = vmatprep.subr.bf16.mxu0 %v2258
    %2780 = vmatpush1.bf16.msra.mxu0 %v2257
    %2781 = vmatprep.subr.bf16.mxu0 %v2262
    %2782 = vmatpush1.bf16.msra.mxu0 %v2261
    %2783 = vmatprep.subr.bf16.mxu0 %v2266
    %2784 = vmatpush1.bf16.msra.mxu0 %v2265
    %2785 = vmatprep.subr.bf16.mxu0 %v2270
    %2786 = vmatpush1.bf16.msra.mxu0 %v2269
    %2787 = vmatprep.subr.bf16.mxu0 %v2274
    %2788 = vmatpush1.bf16.msra.mxu0 %v2273
    %2789 = vmatprep.subr.bf16.mxu0 %v2278
    %2790 = vmatpush1.bf16.msra.mxu0 %v2277
    %2791 = vmatprep.subr.bf16.mxu0 %v2282
    %2792 = vmatpush1.bf16.msra.mxu0 %v2281
    %2793 = vmatprep.subr.bf16.mxu0 0
    %2794 = vmatpush1.bf16.msra.mxu0 0
    %2795 = vmatprep.subr.bf16.mxu0 0
    %2796 = vmatpush1.bf16.msra.mxu0 0
    %2797 = vmatprep.subr.bf16.mxu0 0
    %2798 = vmatpush1.bf16.msra.mxu0 0
    %2799 = vmatprep.subr.bf16.mxu0 0
    %2800 = vmatpush1.bf16.msra.mxu0 0
    %2801 = vmatprep.subr.bf16.mxu0 0
    %2802 = vmatpush1.bf16.msra.mxu0 0
    %2803 = vmatprep.subr.bf16.mxu0 0
    %2804 = vmatpush1.bf16.msra.mxu0 0
    %2805 = vmatprep.subr.bf16.mxu0 0
    %2806 = vmatpush1.bf16.msra.mxu0 0
    %2807 = vmatprep.subr.bf16.mxu0 0
    %2808 = vmatpush1.bf16.msra.mxu0 0
    %2809 = vmatprep.mubr.bf16.mxu0 0
    %2810 = vmatmul.mubr.bf16.gmra.mrb[0].mxu0 %v2776
    %v2811 = vpop.f32.mrb[0].mxu0
    %v2812 = vadd.f32 0.0, %v2811
    %v2813 = vpop.f32.mrb[0].mxu0
    %v2814 = vadd.f32 0.0, %v2813
    %v2815 = vpop.f32.mrb[0].mxu0
    %v2816 = vpop.f32.mrb[0].mxu0
    %2817 = vdwg.mxu0
    %2818 = vmatprep.subr.bf16.mxu0 %v2256
    %2819 = vmatpush1.bf16.msra.mxu0 %v2255
    %2820 = vmatprep.subr.bf16.mxu0 %v2260
    %2821 = vmatpush1.bf16.msra.mxu0 %v2259
    %2822 = vmatprep.subr.bf16.mxu0 %v2264
    %2823 = vmatpush1.bf16.msra.mxu0 %v2263
    %2824 = vmatprep.subr.bf16.mxu0 %v2268
    %2825 = vmatpush1.bf16.msra.mxu0 %v2267
    %2826 = vmatprep.subr.bf16.mxu0 %v2272
    %2827 = vmatpush1.bf16.msra.mxu0 %v2271
    %2828 = vmatprep.subr.bf16.mxu0 %v2276
    %2829 = vmatpush1.bf16.msra.mxu0 %v2275
    %2830 = vmatprep.subr.bf16.mxu0 %v2280
    %2831 = vmatpush1.bf16.msra.mxu0 %v2279
    %2832 = vmatprep.subr.bf16.mxu0 %v2284
    %2833 = vmatpush1.bf16.msra.mxu0 %v2283
    %2834 = vmatprep.subr.bf16.mxu0 0
    %2835 = vmatpush1.bf16.msra.mxu0 0
    %2836 = vmatprep.subr.bf16.mxu0 0
    %2837 = vmatpush1.bf16.msra.mxu0 0
    %2838 = vmatprep.subr.bf16.mxu0 0
    %2839 = vmatpush1.bf16.msra.mxu0 0
    %2840 = vmatprep.subr.bf16.mxu0 0
    %2841 = vmatpush1.bf16.msra.mxu0 0
    %2842 = vmatprep.subr.bf16.mxu0 0
    %2843 = vmatpush1.bf16.msra.mxu0 0
    %2844 = vmatprep.subr.bf16.mxu0 0
    %2845 = vmatpush1.bf16.msra.mxu0 0
    %2846 = vmatprep.subr.bf16.mxu0 0
    %2847 = vmatpush1.bf16.msra.mxu0 0
    %2848 = vmatprep.subr.bf16.mxu0 0
    %2849 = vmatpush1.bf16.msra.mxu0 0
    %2850 = vmatprep.mubr.bf16.mxu0 0
    %2851 = vmatmul.mubr.bf16.gmra.mrb[0].mxu0 %v2776
    %v2852 = vpop.f32.mrb[0].mxu0
    %v2853 = vadd.f32 0.0, %v2852
    %v2854 = vpop.f32.mrb[0].mxu0
    %v2855 = vadd.f32 0.0, %v2854
    %v2856 = vpop.f32.mrb[0].mxu0
    %v2857 = vpop.f32.mrb[0].mxu0
    %2858 = vdwg.mxu0
    %v2859 = vadd.f32 %v2772, %v2812
    %v2860 = vadd.f32 %v2773, %v2814
    %v2861 = vadd.f32 %v2774, %v2853
    %v2862 = vadd.f32 %v2775, %v2855
    %v2863 = vxor.u32 %v2859, 2147483648
    %v2864 = vxor.u32 %v2860, 2147483648
    %v2865 = vmul.f32 %v2863, 1.442695
    %v2866 = vpow.pop %v2865
    %v2867 = vmul.f32 %v2864, 1.442695
    %v2868 = vpow.pop %v2867
    %v2869 = vadd.f32 %v2866, 1.0
    %v2870 = vadd.f32 %v2868, 1.0
    %v2871 = vrcp.pop %v2869
    %v2872 = vmul.f32 1.0, %v2871
    %v2873 = vrcp.pop %v2870
    %v2874 = vmul.f32 1.0, %v2873
    %v2875 = vtanh.pop %v2861
    %v2876 = vxor.u32 %v2862, 2147483648
    %v2877 = vmul.f32 %v2876, 1.442695
    %v2878 = vpow.pop %v2877
    %v2879 = vadd.f32 %v2878, 1.0
    %v2880 = vrcp.pop %v2879
    %v2881 = vmul.f32 1.0, %v2880
    %v2882 = vmul.f32 %v2874, %v2769
    %v2883 = vmul.f32 %v2872, %v2875
    %v2884 = vadd.f32 %v2882, %v2883
    %v2885 = vtanh.pop %v2884
    %v2886 = vmul.f32 %v2881, %v2885
    %v2887 = vld [vmem:[#allocation2 + $0xa0] sm:$0xff]
    %v2888 = vld [vmem:[#allocation2 + $0xa8] sm:$0xff]
    %v2889 = vld [vmem:[#allocation2 + $0xb0] sm:$0xff]
    %v2890 = vld [vmem:[#allocation2 + $0xb8] sm:$0xff]
    %v2891 = vpack.c.bf16 %v2886, %v2886
    %2892 = vmatprep.subr.bf16.mxu0 %v2254
    %2893 = vmatpush1.bf16.msra.mxu0 %v2253
    %2894 = vmatprep.subr.bf16.mxu0 %v2258
    %2895 = vmatpush1.bf16.msra.mxu0 %v2257
    %2896 = vmatprep.subr.bf16.mxu0 %v2262
    %2897 = vmatpush1.bf16.msra.mxu0 %v2261
    %2898 = vmatprep.subr.bf16.mxu0 %v2266
    %2899 = vmatpush1.bf16.msra.mxu0 %v2265
    %2900 = vmatprep.subr.bf16.mxu0 %v2270
    %2901 = vmatpush1.bf16.msra.mxu0 %v2269
    %2902 = vmatprep.subr.bf16.mxu0 %v2274
    %2903 = vmatpush1.bf16.msra.mxu0 %v2273
    %2904 = vmatprep.subr.bf16.mxu0 %v2278
    %2905 = vmatpush1.bf16.msra.mxu0 %v2277
    %2906 = vmatprep.subr.bf16.mxu0 %v2282
    %2907 = vmatpush1.bf16.msra.mxu0 %v2281
    %2908 = vmatprep.subr.bf16.mxu0 0
    %2909 = vmatpush1.bf16.msra.mxu0 0
    %2910 = vmatprep.subr.bf16.mxu0 0
    %2911 = vmatpush1.bf16.msra.mxu0 0
    %2912 = vmatprep.subr.bf16.mxu0 0
    %2913 = vmatpush1.bf16.msra.mxu0 0
    %2914 = vmatprep.subr.bf16.mxu0 0
    %2915 = vmatpush1.bf16.msra.mxu0 0
    %2916 = vmatprep.subr.bf16.mxu0 0
    %2917 = vmatpush1.bf16.msra.mxu0 0
    %2918 = vmatprep.subr.bf16.mxu0 0
    %2919 = vmatpush1.bf16.msra.mxu0 0
    %2920 = vmatprep.subr.bf16.mxu0 0
    %2921 = vmatpush1.bf16.msra.mxu0 0
    %2922 = vmatprep.subr.bf16.mxu0 0
    %2923 = vmatpush1.bf16.msra.mxu0 0
    %2924 = vmatprep.mubr.bf16.mxu0 0
    %2925 = vmatmul.mubr.bf16.gmra.mrb[0].mxu0 %v2891
    %v2926 = vpop.f32.mrb[0].mxu0
    %v2927 = vadd.f32 0.0, %v2926
    %v2928 = vpop.f32.mrb[0].mxu0
    %v2929 = vadd.f32 0.0, %v2928
    %v2930 = vpop.f32.mrb[0].mxu0
    %v2931 = vpop.f32.mrb[0].mxu0
    %2932 = vdwg.mxu0
    %2933 = vmatprep.subr.bf16.mxu0 %v2256
    %2934 = vmatpush1.bf16.msra.mxu0 %v2255
    %2935 = vmatprep.subr.bf16.mxu0 %v2260
    %2936 = vmatpush1.bf16.msra.mxu0 %v2259
    %2937 = vmatprep.subr.bf16.mxu0 %v2264
    %2938 = vmatpush1.bf16.msra.mxu0 %v2263
    %2939 = vmatprep.subr.bf16.mxu0 %v2268
    %2940 = vmatpush1.bf16.msra.mxu0 %v2267
    %2941 = vmatprep.subr.bf16.mxu0 %v2272
    %2942 = vmatpush1.bf16.msra.mxu0 %v2271
    %2943 = vmatprep.subr.bf16.mxu0 %v2276
    %2944 = vmatpush1.bf16.msra.mxu0 %v2275
    %2945 = vmatprep.subr.bf16.mxu0 %v2280
    %2946 = vmatpush1.bf16.msra.mxu0 %v2279
    %2947 = vmatprep.subr.bf16.mxu0 %v2284
    %2948 = vmatpush1.bf16.msra.mxu0 %v2283
    %2949 = vmatprep.subr.bf16.mxu0 0
    %2950 = vmatpush1.bf16.msra.mxu0 0
    %2951 = vmatprep.subr.bf16.mxu0 0
    %2952 = vmatpush1.bf16.msra.mxu0 0
    %2953 = vmatprep.subr.bf16.mxu0 0
    %2954 = vmatpush1.bf16.msra.mxu0 0
    %2955 = vmatprep.subr.bf16.mxu0 0
    %2956 = vmatpush1.bf16.msra.mxu0 0
    %2957 = vmatprep.subr.bf16.mxu0 0
    %2958 = vmatpush1.bf16.msra.mxu0 0
    %2959 = vmatprep.subr.bf16.mxu0 0
    %2960 = vmatpush1.bf16.msra.mxu0 0
    %2961 = vmatprep.subr.bf16.mxu0 0
    %2962 = vmatpush1.bf16.msra.mxu0 0
    %2963 = vmatprep.subr.bf16.mxu0 0
    %2964 = vmatpush1.bf16.msra.mxu0 0
    %2965 = vmatprep.mubr.bf16.mxu0 0
    %2966 = vmatmul.mubr.bf16.gmra.mrb[0].mxu0 %v2891
    %v2967 = vpop.f32.mrb[0].mxu0
    %v2968 = vadd.f32 0.0, %v2967
    %v2969 = vpop.f32.mrb[0].mxu0
    %v2970 = vadd.f32 0.0, %v2969
    %v2971 = vpop.f32.mrb[0].mxu0
    %v2972 = vpop.f32.mrb[0].mxu0
    %2973 = vdwg.mxu0
    %v2974 = vadd.f32 %v2887, %v2927
    %v2975 = vadd.f32 %v2888, %v2929
    %v2976 = vadd.f32 %v2889, %v2968
    %v2977 = vadd.f32 %v2890, %v2970
    %v2978 = vxor.u32 %v2974, 2147483648
    %v2979 = vxor.u32 %v2975, 2147483648
    %v2980 = vmul.f32 %v2978, 1.442695
    %v2981 = vpow.pop %v2980
    %v2982 = vmul.f32 %v2979, 1.442695
    %v2983 = vpow.pop %v2982
    %v2984 = vadd.f32 %v2981, 1.0
    %v2985 = vadd.f32 %v2983, 1.0
    %v2986 = vrcp.pop %v2984
    %v2987 = vmul.f32 1.0, %v2986
    %v2988 = vrcp.pop %v2985
    %v2989 = vmul.f32 1.0, %v2988
    %v2990 = vtanh.pop %v2976
    %v2991 = vxor.u32 %v2977, 2147483648
    %v2992 = vmul.f32 %v2991, 1.442695
    %v2993 = vpow.pop %v2992
    %v2994 = vadd.f32 %v2993, 1.0
    %v2995 = vrcp.pop %v2994
    %v2996 = vmul.f32 1.0, %v2995
    %v2997 = vmul.f32 %v2989, %v2884
    %v2998 = vmul.f32 %v2987, %v2990
    %v2999 = vadd.f32 %v2997, %v2998
    %v3000 = vtanh.pop %v2999
    %v3001 = vmul.f32 %v2996, %v3000
    %v3002 = vld [vmem:[#allocation2 + $0xc0] sm:$0xff]
    %v3003 = vld [vmem:[#allocation2 + $0xc8] sm:$0xff]
    %v3004 = vld [vmem:[#allocation2 + $0xd0] sm:$0xff]
    %v3005 = vld [vmem:[#allocation2 + $0xd8] sm:$0xff]
    %v3006 = vpack.c.bf16 %v3001, %v3001
    %3007 = vmatprep.subr.bf16.mxu0 %v2254
    %3008 = vmatpush1.bf16.msra.mxu0 %v2253
    %3009 = vmatprep.subr.bf16.mxu0 %v2258
    %3010 = vmatpush1.bf16.msra.mxu0 %v2257
    %3011 = vmatprep.subr.bf16.mxu0 %v2262
    %3012 = vmatpush1.bf16.msra.mxu0 %v2261
    %3013 = vmatprep.subr.bf16.mxu0 %v2266
    %3014 = vmatpush1.bf16.msra.mxu0 %v2265
    %3015 = vmatprep.subr.bf16.mxu0 %v2270
    %3016 = vmatpush1.bf16.msra.mxu0 %v2269
    %3017 = vmatprep.subr.bf16.mxu0 %v2274
    %3018 = vmatpush1.bf16.msra.mxu0 %v2273
    %3019 = vmatprep.subr.bf16.mxu0 %v2278
    %3020 = vmatpush1.bf16.msra.mxu0 %v2277
    %3021 = vmatprep.subr.bf16.mxu0 %v2282
    %3022 = vmatpush1.bf16.msra.mxu0 %v2281
    %3023 = vmatprep.subr.bf16.mxu0 0
    %3024 = vmatpush1.bf16.msra.mxu0 0
    %3025 = vmatprep.subr.bf16.mxu0 0
    %3026 = vmatpush1.bf16.msra.mxu0 0
    %3027 = vmatprep.subr.bf16.mxu0 0
    %3028 = vmatpush1.bf16.msra.mxu0 0
    %3029 = vmatprep.subr.bf16.mxu0 0
    %3030 = vmatpush1.bf16.msra.mxu0 0
    %3031 = vmatprep.subr.bf16.mxu0 0
    %3032 = vmatpush1.bf16.msra.mxu0 0
    %3033 = vmatprep.subr.bf16.mxu0 0
    %3034 = vmatpush1.bf16.msra.mxu0 0
    %3035 = vmatprep.subr.bf16.mxu0 0
    %3036 = vmatpush1.bf16.msra.mxu0 0
    %3037 = vmatprep.subr.bf16.mxu0 0
    %3038 = vmatpush1.bf16.msra.mxu0 0
    %3039 = vmatprep.mubr.bf16.mxu0 0
    %3040 = vmatmul.mubr.bf16.gmra.mrb[0].mxu0 %v3006
    %v3041 = vpop.f32.mrb[0].mxu0
    %v3042 = vadd.f32 0.0, %v3041
    %v3043 = vpop.f32.mrb[0].mxu0
    %v3044 = vadd.f32 0.0, %v3043
    %v3045 = vpop.f32.mrb[0].mxu0
    %v3046 = vpop.f32.mrb[0].mxu0
    %3047 = vdwg.mxu0
    %3048 = vmatprep.subr.bf16.mxu0 %v2256
    %3049 = vmatpush1.bf16.msra.mxu0 %v2255
    %3050 = vmatprep.subr.bf16.mxu0 %v2260
    %3051 = vmatpush1.bf16.msra.mxu0 %v2259
    %3052 = vmatprep.subr.bf16.mxu0 %v2264
    %3053 = vmatpush1.bf16.msra.mxu0 %v2263
    %3054 = vmatprep.subr.bf16.mxu0 %v2268
    %3055 = vmatpush1.bf16.msra.mxu0 %v2267
    %3056 = vmatprep.subr.bf16.mxu0 %v2272
    %3057 = vmatpush1.bf16.msra.mxu0 %v2271
    %3058 = vmatprep.subr.bf16.mxu0 %v2276
    %3059 = vmatpush1.bf16.msra.mxu0 %v2275
    %3060 = vmatprep.subr.bf16.mxu0 %v2280
    %3061 = vmatpush1.bf16.msra.mxu0 %v2279
    %3062 = vmatprep.subr.bf16.mxu0 %v2284
    %3063 = vmatpush1.bf16.msra.mxu0 %v2283
    %3064 = vmatprep.subr.bf16.mxu0 0
    %3065 = vmatpush1.bf16.msra.mxu0 0
    %3066 = vmatprep.subr.bf16.mxu0 0
    %3067 = vmatpush1.bf16.msra.mxu0 0
    %3068 = vmatprep.subr.bf16.mxu0 0
    %3069 = vmatpush1.bf16.msra.mxu0 0
    %3070 = vmatprep.subr.bf16.mxu0 0
    %3071 = vmatpush1.bf16.msra.mxu0 0
    %3072 = vmatprep.subr.bf16.mxu0 0
    %3073 = vmatpush1.bf16.msra.mxu0 0
    %3074 = vmatprep.subr.bf16.mxu0 0
    %3075 = vmatpush1.bf16.msra.mxu0 0
    %3076 = vmatprep.subr.bf16.mxu0 0
    %3077 = vmatpush1.bf16.msra.mxu0 0
    %3078 = vmatprep.subr.bf16.mxu0 0
    %3079 = vmatpush1.bf16.msra.mxu0 0
    %3080 = vmatprep.mubr.bf16.mxu0 0
    %3081 = vmatmul.mubr.bf16.gmra.mrb[0].mxu0 %v3006
    %v3082 = vpop.f32.mrb[0].mxu0
    %v3083 = vadd.f32 0.0, %v3082
    %v3084 = vpop.f32.mrb[0].mxu0
    %v3085 = vadd.f32 0.0, %v3084
    %v3086 = vpop.f32.mrb[0].mxu0
    %v3087 = vpop.f32.mrb[0].mxu0
    %3088 = vdwg.mxu0
    %v3089 = vadd.f32 %v3002, %v3042
    %v3090 = vadd.f32 %v3003, %v3044
    %v3091 = vadd.f32 %v3004, %v3083
    %v3092 = vadd.f32 %v3005, %v3085
    %v3093 = vxor.u32 %v3089, 2147483648
    %v3094 = vxor.u32 %v3090, 2147483648
    %v3095 = vmul.f32 %v3093, 1.442695
    %v3096 = vpow.pop %v3095
    %v3097 = vmul.f32 %v3094, 1.442695
    %v3098 = vpow.pop %v3097
    %v3099 = vadd.f32 %v3096, 1.0
    %v3100 = vadd.f32 %v3098, 1.0
    %v3101 = vrcp.pop %v3099
    %v3102 = vmul.f32 1.0, %v3101
    %v3103 = vrcp.pop %v3100
    %v3104 = vmul.f32 1.0, %v3103
    %v3105 = vtanh.pop %v3091
    %v3106 = vxor.u32 %v3092, 2147483648
    %v3107 = vmul.f32 %v3106, 1.442695
    %v3108 = vpow.pop %v3107
    %v3109 = vadd.f32 %v3108, 1.0
    %v3110 = vrcp.pop %v3109
    %v3111 = vmul.f32 1.0, %v3110
    %v3112 = vmul.f32 %v3104, %v2999
    %v3113 = vmul.f32 %v3102, %v3105
    %v3114 = vadd.f32 %v3112, %v3113
    %v3115 = vtanh.pop %v3114
    %v3116 = vmul.f32 %v3111, %v3115
    %v3117 = vld [vmem:[#allocation2 + $0xe0] sm:$0xff]
    %v3118 = vld [vmem:[#allocation2 + $0xe8] sm:$0xff]
    %v3119 = vld [vmem:[#allocation2 + $0xf0] sm:$0xff]
    %v3120 = vld [vmem:[#allocation2 + $0xf8] sm:$0xff]
    %v3121 = vpack.c.bf16 %v3116, %v3116
    %3122 = vmatprep.subr.bf16.mxu0 %v2254
    %3123 = vmatpush1.bf16.msra.mxu0 %v2253
    %3124 = vmatprep.subr.bf16.mxu0 %v2258
    %3125 = vmatpush1.bf16.msra.mxu0 %v2257
    %3126 = vmatprep.subr.bf16.mxu0 %v2262
    %3127 = vmatpush1.bf16.msra.mxu0 %v2261
    %3128 = vmatprep.subr.bf16.mxu0 %v2266
    %3129 = vmatpush1.bf16.msra.mxu0 %v2265
    %3130 = vmatprep.subr.bf16.mxu0 %v2270
    %3131 = vmatpush1.bf16.msra.mxu0 %v2269
    %3132 = vmatprep.subr.bf16.mxu0 %v2274
    %3133 = vmatpush1.bf16.msra.mxu0 %v2273
    %3134 = vmatprep.subr.bf16.mxu0 %v2278
    %3135 = vmatpush1.bf16.msra.mxu0 %v2277
    %3136 = vmatprep.subr.bf16.mxu0 %v2282
    %3137 = vmatpush1.bf16.msra.mxu0 %v2281
    %3138 = vmatprep.subr.bf16.mxu0 0
    %3139 = vmatpush1.bf16.msra.mxu0 0
    %3140 = vmatprep.subr.bf16.mxu0 0
    %3141 = vmatpush1.bf16.msra.mxu0 0
    %3142 = vmatprep.subr.bf16.mxu0 0
    %3143 = vmatpush1.bf16.msra.mxu0 0
    %3144 = vmatprep.subr.bf16.mxu0 0
    %3145 = vmatpush1.bf16.msra.mxu0 0
    %3146 = vmatprep.subr.bf16.mxu0 0
    %3147 = vmatpush1.bf16.msra.mxu0 0
    %3148 = vmatprep.subr.bf16.mxu0 0
    %3149 = vmatpush1.bf16.msra.mxu0 0
    %3150 = vmatprep.subr.bf16.mxu0 0
    %3151 = vmatpush1.bf16.msra.mxu0 0
    %3152 = vmatprep.subr.bf16.mxu0 0
    %3153 = vmatpush1.bf16.msra.mxu0 0
    %3154 = vmatprep.mubr.bf16.mxu0 0
    %3155 = vmatmul.mubr.bf16.gmra.mrb[0].mxu0 %v3121
    %v3156 = vpop.f32.mrb[0].mxu0
    %v3157 = vadd.f32 0.0, %v3156
    %v3158 = vpop.f32.mrb[0].mxu0
    %v3159 = vadd.f32 0.0, %v3158
    %v3160 = vpop.f32.mrb[0].mxu0
    %v3161 = vpop.f32.mrb[0].mxu0
    %3162 = vdwg.mxu0
    %3163 = vmatprep.subr.bf16.mxu0 %v2256
    %3164 = vmatpush1.bf16.msra.mxu0 %v2255
    %3165 = vmatprep.subr.bf16.mxu0 %v2260
    %3166 = vmatpush1.bf16.msra.mxu0 %v2259
    %3167 = vmatprep.subr.bf16.mxu0 %v2264
    %3168 = vmatpush1.bf16.msra.mxu0 %v2263
    %3169 = vmatprep.subr.bf16.mxu0 %v2268
    %3170 = vmatpush1.bf16.msra.mxu0 %v2267
    %3171 = vmatprep.subr.bf16.mxu0 %v2272
    %3172 = vmatpush1.bf16.msra.mxu0 %v2271
    %3173 = vmatprep.subr.bf16.mxu0 %v2276
    %3174 = vmatpush1.bf16.msra.mxu0 %v2275
    %3175 = vmatprep.subr.bf16.mxu0 %v2280
    %3176 = vmatpush1.bf16.msra.mxu0 %v2279
    %3177 = vmatprep.subr.bf16.mxu0 %v2284
    %3178 = vmatpush1.bf16.msra.mxu0 %v2283
    %3179 = vmatprep.subr.bf16.mxu0 0
    %3180 = vmatpush1.bf16.msra.mxu0 0
    %3181 = vmatprep.subr.bf16.mxu0 0
    %3182 = vmatpush1.bf16.msra.mxu0 0
    %3183 = vmatprep.subr.bf16.mxu0 0
    %3184 = vmatpush1.bf16.msra.mxu0 0
    %3185 = vmatprep.subr.bf16.mxu0 0
    %3186 = vmatpush1.bf16.msra.mxu0 0
    %3187 = vmatprep.subr.bf16.mxu0 0
    %3188 = vmatpush1.bf16.msra.mxu0 0
    %3189 = vmatprep.subr.bf16.mxu0 0
    %3190 = vmatpush1.bf16.msra.mxu0 0
    %3191 = vmatprep.subr.bf16.mxu0 0
    %3192 = vmatpush1.bf16.msra.mxu0 0
    %3193 = vmatprep.subr.bf16.mxu0 0
    %3194 = vmatpush1.bf16.msra.mxu0 0
    %3195 = vmatprep.mubr.bf16.mxu0 0
    %3196 = vmatmul.mubr.bf16.gmra.mrb[0].mxu0 %v3121
    %v3197 = vpop.f32.mrb[0].mxu0
    %v3198 = vadd.f32 0.0, %v3197
    %v3199 = vpop.f32.mrb[0].mxu0
    %v3200 = vadd.f32 0.0, %v3199
    %v3201 = vpop.f32.mrb[0].mxu0
    %v3202 = vpop.f32.mrb[0].mxu0
    %3203 = vdwg.mxu0
    %v3204 = vadd.f32 %v3117, %v3157
    %v3205 = vadd.f32 %v3118, %v3159
    %v3206 = vadd.f32 %v3119, %v3198
    %v3207 = vadd.f32 %v3120, %v3200
    %v3208 = vxor.u32 %v3204, 2147483648
    %v3209 = vxor.u32 %v3205, 2147483648
    %v3210 = vmul.f32 %v3208, 1.442695
    %v3211 = vpow.pop %v3210
    %v3212 = vmul.f32 %v3209, 1.442695
    %v3213 = vpow.pop %v3212
    %v3214 = vadd.f32 %v3211, 1.0
    %v3215 = vadd.f32 %v3213, 1.0
    %v3216 = vrcp.pop %v3214
    %v3217 = vmul.f32 1.0, %v3216
    %v3218 = vrcp.pop %v3215
    %v3219 = vmul.f32 1.0, %v3218
    %v3220 = vtanh.pop %v3206
    %v3221 = vxor.u32 %v3207, 2147483648
    %v3222 = vmul.f32 %v3221, 1.442695
    %v3223 = vpow.pop %v3222
    %v3224 = vadd.f32 %v3223, 1.0
    %v3225 = vrcp.pop %v3224
    %v3226 = vmul.f32 1.0, %v3225
    %v3227 = vmul.f32 %v3219, %v3114
    %v3228 = vmul.f32 %v3217, %v3220
    %v3229 = vadd.f32 %v3227, %v3228
    %v3230 = vtanh.pop %v3229
    %v3231 = vmul.f32 %v3226, %v3230
    %v3232 = vsel %vm131, %v3231, %v2426
    %v3233 = vpack.c.bf16 %v3232, %v3232
    %v3234 = vld [vmem:[%s7] sm:$0xf]
    %v3235 = vld [vmem:[%s7 + $0x4] sm:$0xf]
    %v3236 = vld [vmem:[%s7 + $0x8] sm:$0xf]
    %v3237 = vld [vmem:[%s7 + $0xc] sm:$0xf]
    %v3238 = vld [vmem:[%s7 + $0x10] sm:$0xf]
    %v3239 = vld [vmem:[%s7 + $0x14] sm:$0xf]
    %v3240 = vld [vmem:[%s7 + $0x18] sm:$0xf]
    %v3241 = vld [vmem:[%s7 + $0x1c] sm:$0xf]
    %v3242 = vld [vmem:[%s7 + $0x20] sm:$0xf]
    %v3243 = vld [vmem:[%s7 + $0x24] sm:$0xf]
    %v3244 = vld [vmem:[%s7 + $0x28] sm:$0xf]
    %v3245 = vld [vmem:[%s7 + $0x2c] sm:$0xf]
    %v3246 = vld [vmem:[%s7 + $0x30] sm:$0xf]
    %v3247 = vld [vmem:[%s7 + $0x34] sm:$0xf]
    %v3248 = vld [vmem:[%s7 + $0x38] sm:$0xf]
    %v3249 = vld [vmem:[%s7 + $0x3c] sm:$0xf]
    %v3250 = vld [vmem:[%s8] sm:$0x1]
    %v3252 = vlaneseq
    %v3253 = vshrl.u32 %v3252, 7
    %v3254 = vsub.s32 0, %v3253
    %v3255 = vrot.slane %v3250, %v3254
    %v3273 = vunpack.c.l.b16 %v3234
    %v3274 = vunpack.c.l.b16 %v3235
    %v3275 = vunpack.c.l.b16 %v3236
    %v3276 = vunpack.c.l.b16 %v3237
    %v3277 = vunpack.c.l.b16 %v3238
    %v3278 = vunpack.c.l.b16 %v3239
    %v3279 = vunpack.c.l.b16 %v3240
    %v3280 = vunpack.c.l.b16 %v3241
    %v3281 = vunpack.c.l.b16 %v3242
    %v3282 = vunpack.c.l.b16 %v3243
    %v3283 = vunpack.c.l.b16 %v3244
    %v3284 = vunpack.c.l.b16 %v3245
    %v3285 = vunpack.c.l.b16 %v3246
    %v3286 = vunpack.c.l.b16 %v3247
    %v3287 = vunpack.c.l.b16 %v3248
    %v3288 = vunpack.c.l.b16 %v3249
    %v3289 = vpack.c.b16 %v3274, %v3273
    %v3290 = vpack.c.b16 %v3276, %v3275
    %v3291 = vpack.c.b16 %v3278, %v3277
    %v3292 = vpack.c.b16 %v3280, %v3279
    %v3293 = vpack.c.b16 %v3282, %v3281
    %v3294 = vpack.c.b16 %v3284, %v3283
    %v3295 = vpack.c.b16 %v3286, %v3285
    %v3296 = vpack.c.b16 %v3288, %v3287
    %3305 = vmatprep.subr.bf16.mxu0 0
    %3306 = vmatpush1.bf16.msra.mxu0 %v3289
    %3307 = vmatprep.subr.bf16.mxu0 0
    %3308 = vmatpush1.bf16.msra.mxu0 %v3290
    %3309 = vmatprep.subr.bf16.mxu0 0
    %3310 = vmatpush1.bf16.msra.mxu0 %v3291
    %3311 = vmatprep.subr.bf16.mxu0 0
    %3312 = vmatpush1.bf16.msra.mxu0 %v3292
    %3313 = vmatprep.subr.bf16.mxu0 0
    %3314 = vmatpush1.bf16.msra.mxu0 %v3293
    %3315 = vmatprep.subr.bf16.mxu0 0
    %3316 = vmatpush1.bf16.msra.mxu0 %v3294
    %3317 = vmatprep.subr.bf16.mxu0 0
    %3318 = vmatpush1.bf16.msra.mxu0 %v3295
    %3319 = vmatprep.subr.bf16.mxu0 0
    %3320 = vmatpush1.bf16.msra.mxu0 %v3296
    %3321 = vmatprep.subr.bf16.mxu0 0
    %3322 = vmatpush1.bf16.msra.mxu0 0
    %3323 = vmatprep.subr.bf16.mxu0 0
    %3324 = vmatpush1.bf16.msra.mxu0 0
    %3325 = vmatprep.subr.bf16.mxu0 0
    %3326 = vmatpush1.bf16.msra.mxu0 0
    %3327 = vmatprep.subr.bf16.mxu0 0
    %3328 = vmatpush1.bf16.msra.mxu0 0
    %3329 = vmatprep.subr.bf16.mxu0 0
    %3330 = vmatpush1.bf16.msra.mxu0 0
    %3331 = vmatprep.subr.bf16.mxu0 0
    %3332 = vmatpush1.bf16.msra.mxu0 0
    %3333 = vmatprep.subr.bf16.mxu0 0
    %3334 = vmatpush1.bf16.msra.mxu0 0
    %3335 = vmatprep.subr.bf16.mxu0 0
    %3336 = vmatpush1.bf16.msra.mxu0 0
    %3337 = vmatprep.mubr.bf16.mxu0 0
    %3338 = vmatmul.mubr.bf16.gmra.mrb[0].mxu0 %v3233
    %v3339 = vpop.f32.mrb[0].mxu0
    %v3340 = vadd.f32 %v3255, %v3339
    %v3341 = vpop.f32.mrb[0].mxu0
    %v3342 = vpop.f32.mrb[0].mxu0
    %v3343 = vpop.f32.mrb[0].mxu0
    %3344 = vdwg.mxu0
    %vm3345 = vcmask 31744
    %3346 = vst.msk [vmem:[%s9] sm:$0xff] %vm3345, %v3340
    // Predicated region
    $region50: #{tpu_custom_call.1} parent=1 // pred_check
      _
    $region51: #{tpu_custom_call.1} parent=1 // pred_check_branch
      %3348 = sbr.rel (0) target = $region53
    $region52: #{tpu_custom_call.1} parent=1 // pred_region
      _
    $region53: #{tpu_custom_call.1} parent=1 // pred_fallthru
      _
    // Predicated region
    $region54: #{tpu_custom_call.1} parent=1 // pred_check
      _
    $region55: #{tpu_custom_call.1} parent=1 // pred_check_branch
      %3350 = sbr.rel (0) target = $region57
    $region56: #{tpu_custom_call.1} parent=1 // pred_region
      _
    $region57: #{tpu_custom_call.1} parent=1 // pred_fallthru
      _
    %3351 = vsyncpa [#allocation5], 1
    %3352 = vsyncpa [#allocation7], 1

</llo_original>
